<compile_context>
chip_gen: v7x
topology: tpu7x:2x2x1
jax: 0.10.0
libtpu: 0.0.40
codegen_flags: <defaults>
</compile_context>

<pallas_src>
import numpy as np
import jax
import jax.numpy as jnp
from jax import lax
from jax.experimental import pallas as pl
from jax.experimental.pallas import tpu as pltpu


_FC_TK_CAP = 16384                    # fc K-tile cap (multiple of 128)
_CONV_VMEM_LIMIT = 48 * 1024 * 1024
_FC_VMEM_LIMIT = 48 * 1024 * 1024


def _round_up(x, m):
    return ((x + m - 1) // m) * m


def _fc_k_tile(k_pad):
    return k_pad if k_pad <= _FC_TK_CAP else _FC_TK_CAP


# ---------------------------------------------------------------------------
# Fused conv pipeline kernel:
#   BN -> pad -> conv1 -> ReLU -> pool -> pad -> conv2 -> ReLU -> pool
# ---------------------------------------------------------------------------
def _zero_pad_border(ref):
    """Zero only the 2-wide border strips of a (H+4, W+4, C) padded scratch.

    The interior is fully overwritten each grid step, so whole-buffer zeroing
    (which burns the store slot) is unnecessary; border-only zeroing every
    step is also correct when the batch axis is sharded across cores.
    """
    fh, fw, c = ref.shape
    ih = fh - 4
    zr = jnp.zeros((2, fw, c), jnp.float32)
    zc = jnp.zeros((ih, 2, c), jnp.float32)
    ref[0:2, :, :] = zr
    ref[fh - 2:fh, :, :] = zr
    ref[2:2 + ih, 0:2, :] = zc
    ref[2:2 + ih, fw - 2:fw, :] = zc


def _fused_conv_kernel(x_ref, scale_ref, shift_ref, w1_ref, b1_ref,
                       w2_ref, b2_ref, s1e_ref, s1o_ref, s2e_ref, s2o_ref,
                       o_ref,
                       pad1_ref, h1_ref, p1pad_ref, h2_ref,
                       lhs1_ref, lhs2_ref):
    f32 = jnp.float32
    _, H, W, CIN = x_ref.shape
    H1, W1, C1 = h1_ref.shape                       # conv1 output
    P1H, P1W = p1pad_ref.shape[0] - 4, p1pad_ref.shape[1] - 4   # pool1 output
    H2, W2, C2 = h2_ref.shape                       # conv2 output
    P2H, P2W = o_ref.shape[1], o_ref.shape[2]       # pool2 output

    # --- BatchNorm2d (eval): running stats folded into scale/shift at prep.
    xb = x_ref[0] * scale_ref[...] + shift_ref[...]              # (H, W, CIN)

    # --- ZeroPad2d(2): zero only the borders, write the BN'd interior.
    _zero_pad_border(pad1_ref)
    pad1_ref[2:2 + H, 2:2 + W, :] = xb

    # --- Conv1 + bias + ReLU: one (W1, 9*CIN)@(9*CIN, C1) matmul per row.
    #     3x3 taps folded into the contraction via a small im2col row built
    #     in VMEM (9 narrow lane-slot stores, then one dense dot).
    w1 = w1_ref[...]                                             # (9*CIN, C1)
    b1 = b1_ref[...]                                             # (1, C1)

    def conv1_row(r, carry):
        for kh in range(3):
            for kw in range(3):
                j = kh * 3 + kw
                lhs1_ref[:, j * CIN:(j + 1) * CIN] = \
                    pad1_ref[r + kh, kw:kw + W1, :]
        z = jnp.dot(lhs1_ref[...], w1, preferred_element_type=f32) + b1
        h1_ref[r] = jnp.maximum(z, 0.0)     # dropout (eval) = identity; ReLU
        return carry

    lax.fori_loop(0, H1, conv1_row, 0)

    # --- MaxPool2d(2,2) on h1 into the zero-padded conv2 input.
    #     Row-pair max on the VPU; column compaction via tiny one-hot
    #     selector matmuls passed in as constants (hoisted out of the kernel).
    _zero_pad_border(p1pad_ref)
    s1e, s1o = s1e_ref[...], s1o_ref[...]

    def pool1_row(i, carry):
        rmax = jnp.maximum(h1_ref[2 * i], h1_ref[2 * i + 1])     # (W1, C1)
        pooled = jnp.maximum(
            jnp.dot(s1e, rmax, preferred_element_type=f32),
            jnp.dot(s1o, rmax, preferred_element_type=f32))      # (P1W, C1)
        p1pad_ref[2 + i, 2:2 + P1W, :] = pooled
        return carry

    lax.fori_loop(0, P1H, pool1_row, 0)

    # --- Conv2 + bias + ReLU: one (W2, 9*C1)@(9*C1, C2) matmul per row.
    w2 = w2_ref[...]                                             # (9*C1, C2)
    b2 = b2_ref[...]                                             # (1, C2)

    def conv2_row(r, carry):
        for kh in range(3):
            for kw in range(3):
                j = kh * 3 + kw
                lhs2_ref[:, j * C1:(j + 1) * C1] = \
                    p1pad_ref[r + kh, kw:kw + W2, :]
        z = jnp.dot(lhs2_ref[...], w2, preferred_element_type=f32) + b2
        h2_ref[r] = jnp.maximum(z, 0.0)
        return carry

    lax.fori_loop(0, H2, conv2_row, 0)

    # --- MaxPool2d(2,2) on h2 straight into the NHWC output tile.
    s2e, s2o = s2e_ref[...], s2o_ref[...]

    def pool2_row(i, carry):
        rmax = jnp.maximum(h2_ref[2 * i], h2_ref[2 * i + 1])     # (W2, C2)
        o_ref[0, i, :, :] = jnp.maximum(
            jnp.dot(s2e, rmax, preferred_element_type=f32),
            jnp.dot(s2o, rmax, preferred_element_type=f32))      # (P2W, C2)
        return carry

    lax.fori_loop(0, P2H, pool2_row, 0)


def pallas_conv_stack(x_nhwc, scale, shift, w1r, b1, w2r, b2,
                      s1e, s1o, s2e, s2o):
    n, h, w, cin = x_nhwc.shape
    c1 = w1r.shape[-1]
    c2 = w2r.shape[-1]
    ch1, cw1 = h + 2, w + 2              # conv1 out spatial (pad 2, k 3)
    ph1, pw1 = ch1 // 2, cw1 // 2        # pool1 out spatial
    ch2, cw2 = ph1 + 2, pw1 + 2          # conv2 out spatial
    ph2, pw2 = ch2 // 2, cw2 // 2        # pool2 out spatial

    c2d = lambda b: (0, 0)               # replicated small 2-D blocks

    return pl.pallas_call(
        _fused_conv_kernel,
        out_shape=jax.ShapeDtypeStruct((n, ph2, pw2, c2), jnp.float32),
        grid=(n,),
        in_specs=[
            pl.BlockSpec((1, h, w, cin), lambda b: (b, 0, 0, 0)),
            pl.BlockSpec((1, cin), c2d),
            pl.BlockSpec((1, cin), c2d),
            pl.BlockSpec((9 * cin, c1), c2d),
            pl.BlockSpec((1, c1), c2d),
            pl.BlockSpec((9 * c1, c2), c2d),
            pl.BlockSpec((1, c2), c2d),
            pl.BlockSpec((pw1, cw1), c2d),
            pl.BlockSpec((pw1, cw1), c2d),
            pl.BlockSpec((pw2, cw2), c2d),
            pl.BlockSpec((pw2, cw2), c2d),
        ],
        out_specs=pl.BlockSpec((1, ph2, pw2, c2), lambda b: (b, 0, 0, 0)),
        scratch_shapes=[
            pltpu.VMEM((h + 4, w + 4, cin), jnp.float32),      # padded BN input
            pltpu.VMEM((ch1, cw1, c1), jnp.float32),           # conv1 + ReLU
            pltpu.VMEM((ph1 + 4, pw1 + 4, c1), jnp.float32),   # padded pool1
            pltpu.VMEM((ch2, cw2, c2), jnp.float32),           # conv2 + ReLU
            pltpu.VMEM((cw1, 9 * cin), jnp.float32),           # conv1 im2col row
            pltpu.VMEM((cw2, 9 * c1), jnp.float32),            # conv2 im2col row
        ],
        compiler_params=pltpu.CompilerParams(
            dimension_semantics=("parallel",),                 # shards over TCs
            vmem_limit_bytes=_CONV_VMEM_LIMIT),
    )(x_nhwc, scale, shift, w1r, b1, w2r, b2, s1e, s1o, s2e, s2o)


# ---------------------------------------------------------------------------
# K-tiled fully-connected layer: transposed (10, K) lane-dense weight stream,
# large K tiles (K zero-padded at prep so no divisibility constraint).
# ---------------------------------------------------------------------------
def _fc_kernel(x_ref, wt_ref, b_ref, o_ref, acc_ref):
    @pl.when(pl.program_id(0) == 0)
    def _():
        acc_ref[...] = jnp.zeros_like(acc_ref)

    acc_ref[...] += lax.dot_general(
        x_ref[...], wt_ref[...],
        dimension_numbers=(((1,), (1,)), ((), ())),
        preferred_element_type=jnp.float32)

    @pl.when(pl.program_id(0) == pl.num_programs(0) - 1)
    def _():
        o_ref[...] = (acc_ref[...] + b_ref[...]).astype(o_ref.dtype)


def pallas_fc(x, wt, b):
    m, k_pad = x.shape
    nout, k_w = wt.shape
    assert k_w == k_pad
    tk = _fc_k_tile(k_pad)
    assert k_pad % tk == 0
    return pl.pallas_call(
        _fc_kernel,
        out_shape=jax.ShapeDtypeStruct((m, nout), jnp.float32),
        grid=(k_pad // tk,),
        in_specs=[
            pl.BlockSpec((m, tk), lambda ki: (0, ki)),
            pl.BlockSpec((nout, tk), lambda ki: (0, ki)),
            pl.BlockSpec((1, nout), lambda ki: (0, 0)),
        ],
        out_specs=pl.BlockSpec((m, nout), lambda ki: (0, 0)),
        scratch_shapes=[pltpu.VMEM((m, nout), jnp.float32)],
        compiler_params=pltpu.CompilerParams(
            dimension_semantics=("arbitrary",),
            vmem_limit_bytes=_FC_VMEM_LIMIT),
    )(x, wt, b)


# ---------------------------------------------------------------------------
# Parameter prep (one-time) and forward pass
# ---------------------------------------------------------------------------
def _pool_selectors(nout, nin):
    """One-hot (nout, nin) matrices picking columns 2*j and 2*j+1."""
    r = np.arange(nout)[:, None]
    c = np.arange(nin)[None, :]
    even = (c == 2 * r).astype(np.float32)
    odd = (c == 2 * r + 1).astype(np.float32)
    return jnp.asarray(even), jnp.asarray(odd)


def prepare_params(params, input_hw, eps=1e-5):
    """Fold BN stats, fold conv taps into the contraction dim, pre-permute /
    transpose / zero-pad the fc weight, and build constant pool selectors."""
    h, w = input_hw
    ch1, cw1 = h + 2, w + 2
    ph1, pw1 = ch1 // 2, cw1 // 2
    ch2, cw2 = ph1 + 2, pw1 + 2
    ph2, pw2 = ch2 // 2, cw2 // 2

    cin, c1 = params["w1"].shape[2], params["w1"].shape[3]
    c2 = params["w2"].shape[3]

    scale = params["gamma"] / jnp.sqrt(params["rvar"] + eps)
    shift = params["beta"] - params["rmean"] * scale

    # (3,3,Cin,Cout) -> (9*Cin, Cout): taps folded into the contraction dim.
    w1r = params["w1"].reshape(9 * cin, c1)
    w2r = params["w2"].reshape(9 * c1, c2)

    # fc: rows permuted from torch NCHW-flatten to NHWC-flatten order,
    # transposed to (10, K) (lane-dense along K), K zero-padded to tile size.
    k = ph2 * pw2 * c2
    wfc = params["wfc"].reshape(c2, ph2, pw2, -1).transpose(1, 2, 0, 3)
    wfc_t = wfc.reshape(k, -1).T                                   # (10, K)
    tk = _fc_k_tile(_round_up(k, 128))
    k_pad = _round_up(k, tk)
    if k_pad != k:
        wfc_t = jnp.pad(wfc_t, ((0, 0), (0, k_pad - k)))

    s1e, s1o = _pool_selectors(pw1, cw1)
    s2e, s2o = _pool_selectors(pw2, cw2)

    return {
        "scale": scale.reshape(1, -1),
        "shift": shift.reshape(1, -1),
        "w1r": w1r, "b1": params["b1"].reshape(1, -1),
        "w2r": w2r, "b2": params["b2"].reshape(1, -1),
        "s1e": s1e, "s1o": s1o, "s2e": s2e, "s2o": s2o,
        "wfc_t": wfc_t, "bfc": params["bfc"].reshape(1, -1),
    }


def forward(x_nchw, p):
    x = jnp.transpose(x_nchw, (0, 2, 3, 1)).astype(jnp.float32)   # NCHW -> NHWC
    feats = pallas_conv_stack(x, p["scale"], p["shift"], p["w1r"], p["b1"],
                              p["w2r"], p["b2"], p["s1e"], p["s1o"],
                              p["s2e"], p["s2o"])
    n = feats.shape[0]
    flat = feats.reshape(n, -1)            # NHWC flatten; wfc rows pre-permuted
    k_pad = p["wfc_t"].shape[1]
    if flat.shape[1] != k_pad:
        flat = jnp.pad(flat, ((0, 0), (0, k_pad - flat.shape[1])))
    return pallas_fc(flat, p["wfc_t"], p["bfc"])


# ---------------------------------------------------------------------------
# Pure-JAX reference (for correctness check), on the original torch-layout params
# ---------------------------------------------------------------------------
def reference(x_nchw, params, eps=1e-5):
    x = jnp.transpose(x_nchw, (0, 2, 3, 1)).astype(jnp.float32)
    scale = params["gamma"] / jnp.sqrt(params["rvar"] + eps)
    shift = params["beta"] - params["rmean"] * scale
    b1 = x * scale + shift
    pa1 = jnp.pad(b1, ((0, 0), (2, 2), (2, 2), (0, 0)))
    z1 = lax.conv_general_dilated(pa1, params["w1"], (1, 1), "VALID",
                                  dimension_numbers=("NHWC", "HWIO", "NHWC")) + params["b1"]
    h1 = jnp.maximum(z1, 0.0)
    p1 = lax.reduce_window(h1, -jnp.inf, lax.max, (1, 2, 2, 1), (1, 2, 2, 1), "VALID")
    pa2 = jnp.pad(p1, ((0, 0), (2, 2), (2, 2), (0, 0)))
    z2 = lax.conv_general_dilated(pa2, params["w2"], (1, 1), "VALID",
                                  dimension_numbers=("NHWC", "HWIO", "NHWC")) + params["b2"]
    h2 = jnp.maximum(z2, 0.0)
    p2 = lax.reduce_window(h2, -jnp.inf, lax.max, (1, 2, 2, 1), (1, 2, 2, 1), "VALID")
    n = p2.shape[0]
    flat = jnp.transpose(p2, (0, 3, 1, 2)).reshape(n, -1)   # torch NCHW flatten
    return flat @ params["wfc"] + params["bfc"]


# ---------------------------------------------------------------------------
if __name__ == "__main__":
    key = jax.random.PRNGKey(0)
    ks = jax.random.split(key, 11)

    N, C, S = 2, 4, 16                      # small NCHW input: (2, 4, 16, 16)
    s1 = (S + 2) // 2                       # after conv1 + pool1
    s2 = (s1 + 2) // 2                      # after conv2 + pool2
    fc_in = 128 * s2 * s2                   # = 3200 for S=16

    params = {
        "gamma": 1.0 + 0.1 * jax.random.normal(ks[0], (C,), jnp.float32),
        "beta":  0.1 * jax.random.normal(ks[1], (C,), jnp.float32),
        "rmean": 0.1 * jax.random.normal(ks[2], (C,), jnp.float32),
        "rvar":  1.0 + 0.1 * jnp.abs(jax.random.normal(ks[3], (C,), jnp.float32)),
        "w1": 0.10 * jax.random.normal(ks[4], (3, 3, 4, 16), jnp.float32),    # HWIO
        "b1": 0.10 * jax.random.normal(ks[5], (16,), jnp.float32),
        "w2": 0.05 * jax.random.normal(ks[6], (3, 3, 16, 128), jnp.float32),  # HWIO
        "b2": 0.05 * jax.random.normal(ks[7], (128,), jnp.float32),
        "wfc": 0.02 * jax.random.normal(ks[8], (fc_in, 10), jnp.float32),
        "bfc": 0.02 * jax.random.normal(ks[9], (10,), jnp.float32),
    }
    x = jax.random.normal(ks[10], (N, C, S, S), jnp.float32)

    prepped = prepare_params(params, (S, S))
    out = jax.block_until_ready(jax.jit(forward)(x, prepped))
    ref = jax.block_until_ready(reference(x, params))

    assert out.shape == (N, 10), out.shape
    if not np.allclose(np.asarray(out), np.asarray(ref), rtol=1e-3, atol=1e-3):
        raise AssertionError("Pallas output does not match JAX reference")

    print("KERNEL_OK")
</pallas_src>

<mosaic_0001>
module attributes {stable_mosaic.version = 11 : i64} {
  func.func @_fused_conv_kernel(%arg0: i32, %arg1: memref<1x16x16x4xf32, #tpu.memory_space<vmem>>, %arg2: memref<1x4xf32, #tpu.memory_space<vmem>>, %arg3: memref<1x4xf32, #tpu.memory_space<vmem>>, %arg4: memref<36x16xf32, #tpu.memory_space<vmem>>, %arg5: memref<1x16xf32, #tpu.memory_space<vmem>>, %arg6: memref<144x128xf32, #tpu.memory_space<vmem>>, %arg7: memref<1x128xf32, #tpu.memory_space<vmem>>, %arg8: memref<9x18xf32, #tpu.memory_space<vmem>>, %arg9: memref<9x18xf32, #tpu.memory_space<vmem>>, %arg10: memref<5x11xf32, #tpu.memory_space<vmem>>, %arg11: memref<5x11xf32, #tpu.memory_space<vmem>>, %arg12: memref<1x5x5x128xf32, #tpu.memory_space<vmem>>, %arg13: memref<20x20x4xf32, #tpu.memory_space<vmem>>, %arg14: memref<18x18x16xf32, #tpu.memory_space<vmem>>, %arg15: memref<13x13x16xf32, #tpu.memory_space<vmem>>, %arg16: memref<11x11x128xf32, #tpu.memory_space<vmem>>, %arg17: memref<18x36xf32, #tpu.memory_space<vmem>>, %arg18: memref<11x144xf32, #tpu.memory_space<vmem>>) attributes {dimension_semantics = [#tpu.dimension_semantics<parallel>], iteration_bounds = array<i64: 2>, scalar_prefetch = 0 : i64, scratch_operands = 6 : i64, tpu.core_type = #tpu.core_type<tc>, window_params = [{transform_indices = @transform_0, window_bounds = array<i64: 1, 16, 16, 4>}, {pipeline_mode = #tpu.pipeline_mode<synchronous>, transform_indices = @transform_1, window_bounds = array<i64: 1, 4>}, {pipeline_mode = #tpu.pipeline_mode<synchronous>, transform_indices = @transform_2, window_bounds = array<i64: 1, 4>}, {pipeline_mode = #tpu.pipeline_mode<synchronous>, transform_indices = @transform_3, window_bounds = array<i64: 36, 16>}, {pipeline_mode = #tpu.pipeline_mode<synchronous>, transform_indices = @transform_4, window_bounds = array<i64: 1, 16>}, {pipeline_mode = #tpu.pipeline_mode<synchronous>, transform_indices = @transform_5, window_bounds = array<i64: 144, 128>}, {pipeline_mode = #tpu.pipeline_mode<synchronous>, transform_indices = @transform_6, window_bounds = array<i64: 1, 128>}, {pipeline_mode = #tpu.pipeline_mode<synchronous>, transform_indices = @transform_7, window_bounds = array<i64: 9, 18>}, {pipeline_mode = #tpu.pipeline_mode<synchronous>, transform_indices = @transform_8, window_bounds = array<i64: 9, 18>}, {pipeline_mode = #tpu.pipeline_mode<synchronous>, transform_indices = @transform_9, window_bounds = array<i64: 5, 11>}, {pipeline_mode = #tpu.pipeline_mode<synchronous>, transform_indices = @transform_10, window_bounds = array<i64: 5, 11>}, {transform_indices = @transform_11, window_bounds = array<i64: 1, 5, 5, 128>}]} {
    %c0 = arith.constant 0 : index
    %c0_0 = arith.constant 0 : index
    %c0_1 = arith.constant 0 : index
    %c0_2 = arith.constant 0 : index
    %0 = vector.load %arg1[%c0, %c0_0, %c0_1, %c0_2] : memref<1x16x16x4xf32, #tpu.memory_space<vmem>>, vector<1x16x16x4xf32>
    %1 = vector.shape_cast %0 : vector<1x16x16x4xf32> to vector<16x16x4xf32>
    %c0_3 = arith.constant 0 : index
    %c0_4 = arith.constant 0 : index
    %2 = vector.load %arg2[%c0_3, %c0_4] : memref<1x4xf32, #tpu.memory_space<vmem>>, vector<1x4xf32>
    %3 = vector.shape_cast %2 : vector<1x4xf32> to vector<1x1x4xf32>
    %4 = vector.broadcast %3 : vector<1x1x4xf32> to vector<16x16x4xf32>
    %5 = arith.mulf %1, %4 : vector<16x16x4xf32>
    %c0_5 = arith.constant 0 : index
    %c0_6 = arith.constant 0 : index
    %6 = vector.load %arg3[%c0_5, %c0_6] : memref<1x4xf32, #tpu.memory_space<vmem>>, vector<1x4xf32>
    %7 = vector.shape_cast %6 : vector<1x4xf32> to vector<1x1x4xf32>
    %8 = vector.broadcast %7 : vector<1x1x4xf32> to vector<16x16x4xf32>
    %9 = arith.addf %5, %8 : vector<16x16x4xf32>
    %cst = arith.constant 0.000000e+00 : f32
    %10 = vector.broadcast %cst : f32 to vector<2x20x4xf32>
    %cst_7 = arith.constant 0.000000e+00 : f32
    %11 = vector.broadcast %cst_7 : f32 to vector<16x2x4xf32>
    %c0_8 = arith.constant 0 : index
    %c0_9 = arith.constant 0 : index
    %c0_10 = arith.constant 0 : index
    %12 = vector.load %arg13[%c0_8, %c0_9, %c0_10] : memref<20x20x4xf32, #tpu.memory_space<vmem>>, vector<2x20x4xf32>
    tpu.vector_store %arg13[%c0_8, %c0_9, %c0_10], %10 {strides = array<i32>} : memref<20x20x4xf32, #tpu.memory_space<vmem>>, vector<2x20x4xf32>,
    %c18 = arith.constant 18 : index
    %c0_11 = arith.constant 0 : index
    %c0_12 = arith.constant 0 : index
    %13 = vector.load %arg13[%c18, %c0_11, %c0_12] : memref<20x20x4xf32, #tpu.memory_space<vmem>>, vector<2x20x4xf32>
    tpu.vector_store %arg13[%c18, %c0_11, %c0_12], %10 {strides = array<i32>} : memref<20x20x4xf32, #tpu.memory_space<vmem>>, vector<2x20x4xf32>,
    %c2 = arith.constant 2 : index
    %c0_13 = arith.constant 0 : index
    %c0_14 = arith.constant 0 : index
    %14 = vector.load %arg13[%c2, %c0_13, %c0_14] : memref<20x20x4xf32, #tpu.memory_space<vmem>>, vector<16x2x4xf32>
    tpu.vector_store %arg13[%c2, %c0_13, %c0_14], %11 {strides = array<i32>} : memref<20x20x4xf32, #tpu.memory_space<vmem>>, vector<16x2x4xf32>,
    %c2_15 = arith.constant 2 : index
    %c18_16 = arith.constant 18 : index
    %c0_17 = arith.constant 0 : index
    %15 = vector.load %arg13[%c2_15, %c18_16, %c0_17] : memref<20x20x4xf32, #tpu.memory_space<vmem>>, vector<16x2x4xf32>
    tpu.vector_store %arg13[%c2_15, %c18_16, %c0_17], %11 {strides = array<i32>} : memref<20x20x4xf32, #tpu.memory_space<vmem>>, vector<16x2x4xf32>,
    %c2_18 = arith.constant 2 : index
    %c2_19 = arith.constant 2 : index
    %c0_20 = arith.constant 0 : index
    %16 = vector.load %arg13[%c2_18, %c2_19, %c0_20] : memref<20x20x4xf32, #tpu.memory_space<vmem>>, vector<16x16x4xf32>
    tpu.vector_store %arg13[%c2_18, %c2_19, %c0_20], %9 {strides = array<i32>} : memref<20x20x4xf32, #tpu.memory_space<vmem>>, vector<16x16x4xf32>,
    %c0_21 = arith.constant 0 : index
    %c0_22 = arith.constant 0 : index
    %17 = vector.load %arg4[%c0_21, %c0_22] : memref<36x16xf32, #tpu.memory_space<vmem>>, vector<36x16xf32>
    %c0_23 = arith.constant 0 : index
    %c0_24 = arith.constant 0 : index
    %18 = vector.load %arg5[%c0_23, %c0_24] : memref<1x16xf32, #tpu.memory_space<vmem>>, vector<1x16xf32>
    %c0_i32 = arith.constant 0 : i32
    %c18_i32 = arith.constant 18 : i32
    %19 = arith.addi %c0_i32, %c18_i32 : i32
    %c1_i32 = arith.constant 1 : i32
    scf.for %arg19 = %c0_i32 to %19 step %c1_i32  : i32 {
      %c0_i32_60 = arith.constant 0 : i32
      %35 = arith.addi %arg19, %c0_i32_60 : i32
      %36 = arith.index_cast %35 : i32 to index
      %c0_61 = arith.constant 0 : index
      %c0_62 = arith.constant 0 : index
      %37 = vector.load %arg13[%36, %c0_61, %c0_62] : memref<20x20x4xf32, #tpu.memory_space<vmem>>, vector<1x18x4xf32>
      %38 = vector.shape_cast %37 : vector<1x18x4xf32> to vector<18x4xf32>
      %c0_63 = arith.constant 0 : index
      %c0_64 = arith.constant 0 : index
      %39 = vector.load %arg17[%c0_63, %c0_64] : memref<18x36xf32, #tpu.memory_space<vmem>>, vector<18x4xf32>
      tpu.vector_store %arg17[%c0_63, %c0_64], %38 {strides = array<i32>} : memref<18x36xf32, #tpu.memory_space<vmem>>, vector<18x4xf32>,
      %c0_i32_65 = arith.constant 0 : i32
      %40 = arith.addi %arg19, %c0_i32_65 : i32
      %41 = arith.index_cast %40 : i32 to index
      %c1 = arith.constant 1 : index
      %c0_66 = arith.constant 0 : index
      %42 = vector.load %arg13[%41, %c1, %c0_66] : memref<20x20x4xf32, #tpu.memory_space<vmem>>, vector<1x18x4xf32>
      %43 = vector.shape_cast %42 : vector<1x18x4xf32> to vector<18x4xf32>
      %c0_67 = arith.constant 0 : index
      %c4 = arith.constant 4 : index
      %44 = vector.load %arg17[%c0_67, %c4] : memref<18x36xf32, #tpu.memory_space<vmem>>, vector<18x4xf32>
      tpu.vector_store %arg17[%c0_67, %c4], %43 {strides = array<i32>} : memref<18x36xf32, #tpu.memory_space<vmem>>, vector<18x4xf32>,
      %c0_i32_68 = arith.constant 0 : i32
      %45 = arith.addi %arg19, %c0_i32_68 : i32
      %46 = arith.index_cast %45 : i32 to index
      %c2_69 = arith.constant 2 : index
      %c0_70 = arith.constant 0 : index
      %47 = vector.load %arg13[%46, %c2_69, %c0_70] : memref<20x20x4xf32, #tpu.memory_space<vmem>>, vector<1x18x4xf32>
      %48 = vector.shape_cast %47 : vector<1x18x4xf32> to vector<18x4xf32>
      %c0_71 = arith.constant 0 : index
      %c8 = arith.constant 8 : index
      %49 = vector.load %arg17[%c0_71, %c8] : memref<18x36xf32, #tpu.memory_space<vmem>>, vector<18x4xf32>
      tpu.vector_store %arg17[%c0_71, %c8], %48 {strides = array<i32>} : memref<18x36xf32, #tpu.memory_space<vmem>>, vector<18x4xf32>,
      %c1_i32_72 = arith.constant 1 : i32
      %50 = arith.addi %arg19, %c1_i32_72 : i32
      %51 = arith.index_cast %50 : i32 to index
      %c0_73 = arith.constant 0 : index
      %c0_74 = arith.constant 0 : index
      %52 = vector.load %arg13[%51, %c0_73, %c0_74] : memref<20x20x4xf32, #tpu.memory_space<vmem>>, vector<1x18x4xf32>
      %53 = vector.shape_cast %52 : vector<1x18x4xf32> to vector<18x4xf32>
      %c0_75 = arith.constant 0 : index
      %c12 = arith.constant 12 : index
      %54 = vector.load %arg17[%c0_75, %c12] : memref<18x36xf32, #tpu.memory_space<vmem>>, vector<18x4xf32>
      tpu.vector_store %arg17[%c0_75, %c12], %53 {strides = array<i32>} : memref<18x36xf32, #tpu.memory_space<vmem>>, vector<18x4xf32>,
      %c1_i32_76 = arith.constant 1 : i32
      %55 = arith.addi %arg19, %c1_i32_76 : i32
      %56 = arith.index_cast %55 : i32 to index
      %c1_77 = arith.constant 1 : index
      %c0_78 = arith.constant 0 : index
      %57 = vector.load %arg13[%56, %c1_77, %c0_78] : memref<20x20x4xf32, #tpu.memory_space<vmem>>, vector<1x18x4xf32>
      %58 = vector.shape_cast %57 : vector<1x18x4xf32> to vector<18x4xf32>
      %c0_79 = arith.constant 0 : index
      %c16 = arith.constant 16 : index
      %59 = vector.load %arg17[%c0_79, %c16] : memref<18x36xf32, #tpu.memory_space<vmem>>, vector<18x4xf32>
      tpu.vector_store %arg17[%c0_79, %c16], %58 {strides = array<i32>} : memref<18x36xf32, #tpu.memory_space<vmem>>, vector<18x4xf32>,
      %c1_i32_80 = arith.constant 1 : i32
      %60 = arith.addi %arg19, %c1_i32_80 : i32
      %61 = arith.index_cast %60 : i32 to index
      %c2_81 = arith.constant 2 : index
      %c0_82 = arith.constant 0 : index
      %62 = vector.load %arg13[%61, %c2_81, %c0_82] : memref<20x20x4xf32, #tpu.memory_space<vmem>>, vector<1x18x4xf32>
      %63 = vector.shape_cast %62 : vector<1x18x4xf32> to vector<18x4xf32>
      %c0_83 = arith.constant 0 : index
      %c20 = arith.constant 20 : index
      %64 = vector.load %arg17[%c0_83, %c20] : memref<18x36xf32, #tpu.memory_space<vmem>>, vector<18x4xf32>
      tpu.vector_store %arg17[%c0_83, %c20], %63 {strides = array<i32>} : memref<18x36xf32, #tpu.memory_space<vmem>>, vector<18x4xf32>,
      %c2_i32 = arith.constant 2 : i32
      %65 = arith.addi %arg19, %c2_i32 : i32
      %66 = arith.index_cast %65 : i32 to index
      %c0_84 = arith.constant 0 : index
      %c0_85 = arith.constant 0 : index
      %67 = vector.load %arg13[%66, %c0_84, %c0_85] : memref<20x20x4xf32, #tpu.memory_space<vmem>>, vector<1x18x4xf32>
      %68 = vector.shape_cast %67 : vector<1x18x4xf32> to vector<18x4xf32>
      %c0_86 = arith.constant 0 : index
      %c24 = arith.constant 24 : index
      %69 = vector.load %arg17[%c0_86, %c24] : memref<18x36xf32, #tpu.memory_space<vmem>>, vector<18x4xf32>
      tpu.vector_store %arg17[%c0_86, %c24], %68 {strides = array<i32>} : memref<18x36xf32, #tpu.memory_space<vmem>>, vector<18x4xf32>,
      %c2_i32_87 = arith.constant 2 : i32
      %70 = arith.addi %arg19, %c2_i32_87 : i32
      %71 = arith.index_cast %70 : i32 to index
      %c1_88 = arith.constant 1 : index
      %c0_89 = arith.constant 0 : index
      %72 = vector.load %arg13[%71, %c1_88, %c0_89] : memref<20x20x4xf32, #tpu.memory_space<vmem>>, vector<1x18x4xf32>
      %73 = vector.shape_cast %72 : vector<1x18x4xf32> to vector<18x4xf32>
      %c0_90 = arith.constant 0 : index
      %c28 = arith.constant 28 : index
      %74 = vector.load %arg17[%c0_90, %c28] : memref<18x36xf32, #tpu.memory_space<vmem>>, vector<18x4xf32>
      tpu.vector_store %arg17[%c0_90, %c28], %73 {strides = array<i32>} : memref<18x36xf32, #tpu.memory_space<vmem>>, vector<18x4xf32>,
      %c2_i32_91 = arith.constant 2 : i32
      %75 = arith.addi %arg19, %c2_i32_91 : i32
      %76 = arith.index_cast %75 : i32 to index
      %c2_92 = arith.constant 2 : index
      %c0_93 = arith.constant 0 : index
      %77 = vector.load %arg13[%76, %c2_92, %c0_93] : memref<20x20x4xf32, #tpu.memory_space<vmem>>, vector<1x18x4xf32>
      %78 = vector.shape_cast %77 : vector<1x18x4xf32> to vector<18x4xf32>
      %c0_94 = arith.constant 0 : index
      %c32 = arith.constant 32 : index
      %79 = vector.load %arg17[%c0_94, %c32] : memref<18x36xf32, #tpu.memory_space<vmem>>, vector<18x4xf32>
      tpu.vector_store %arg17[%c0_94, %c32], %78 {strides = array<i32>} : memref<18x36xf32, #tpu.memory_space<vmem>>, vector<18x4xf32>,
      %c0_95 = arith.constant 0 : index
      %c0_96 = arith.constant 0 : index
      %80 = vector.load %arg17[%c0_95, %c0_96] : memref<18x36xf32, #tpu.memory_space<vmem>>, vector<18x36xf32>
      %cst_97 = arith.constant dense<0.000000e+00> : vector<18x16xf32>
      %81 = tpu.matmul %80, %17, %cst_97 {dimension_numbers = #tpu.dot_dimension_numbers<[1], [0], [0], [1], [0, 0, 1, 1], [], []>} : vector<18x36xf32>, vector<36x16xf32>, vector<18x16xf32> -> vector<18x16xf32>
      %82 = vector.broadcast %18 : vector<1x16xf32> to vector<18x16xf32>
      %83 = arith.addf %81, %82 : vector<18x16xf32>
      %cst_98 = arith.constant 0.000000e+00 : f32
      %84 = vector.broadcast %cst_98 : f32 to vector<18x16xf32>
      %85 = arith.maximumf %83, %84 : vector<18x16xf32>
      %86 = arith.index_cast %arg19 : i32 to index
      %c0_99 = arith.constant 0 : index
      %c0_100 = arith.constant 0 : index
      %87 = vector.load %arg14[%86, %c0_99, %c0_100] : memref<18x18x16xf32, #tpu.memory_space<vmem>>, vector<1x18x16xf32>
      %88 = vector.shape_cast %87 : vector<1x18x16xf32> to vector<18x16xf32>
      %89 = vector.shape_cast %85 : vector<18x16xf32> to vector<1x18x16xf32>
      tpu.vector_store %arg14[%86, %c0_99, %c0_100], %89 {strides = array<i32>} : memref<18x18x16xf32, #tpu.memory_space<vmem>>, vector<1x18x16xf32>,
    }
    %c18_i32_25 = arith.constant 18 : i32
    %cst_26 = arith.constant 0.000000e+00 : f32
    %20 = vector.broadcast %cst_26 : f32 to vector<2x13x16xf32>
    %cst_27 = arith.constant 0.000000e+00 : f32
    %21 = vector.broadcast %cst_27 : f32 to vector<9x2x16xf32>
    %c0_28 = arith.constant 0 : index
    %c0_29 = arith.constant 0 : index
    %c0_30 = arith.constant 0 : index
    %22 = vector.load %arg15[%c0_28, %c0_29, %c0_30] : memref<13x13x16xf32, #tpu.memory_space<vmem>>, vector<2x13x16xf32>
    tpu.vector_store %arg15[%c0_28, %c0_29, %c0_30], %20 {strides = array<i32>} : memref<13x13x16xf32, #tpu.memory_space<vmem>>, vector<2x13x16xf32>,
    %c11 = arith.constant 11 : index
    %c0_31 = arith.constant 0 : index
    %c0_32 = arith.constant 0 : index
    %23 = vector.load %arg15[%c11, %c0_31, %c0_32] : memref<13x13x16xf32, #tpu.memory_space<vmem>>, vector<2x13x16xf32>
    tpu.vector_store %arg15[%c11, %c0_31, %c0_32], %20 {strides = array<i32>} : memref<13x13x16xf32, #tpu.memory_space<vmem>>, vector<2x13x16xf32>,
    %c2_33 = arith.constant 2 : index
    %c0_34 = arith.constant 0 : index
    %c0_35 = arith.constant 0 : index
    %24 = vector.load %arg15[%c2_33, %c0_34, %c0_35] : memref<13x13x16xf32, #tpu.memory_space<vmem>>, vector<9x2x16xf32>
    tpu.vector_store %arg15[%c2_33, %c0_34, %c0_35], %21 {strides = array<i32>} : memref<13x13x16xf32, #tpu.memory_space<vmem>>, vector<9x2x16xf32>,
    %c2_36 = arith.constant 2 : index
    %c11_37 = arith.constant 11 : index
    %c0_38 = arith.constant 0 : index
    %25 = vector.load %arg15[%c2_36, %c11_37, %c0_38] : memref<13x13x16xf32, #tpu.memory_space<vmem>>, vector<9x2x16xf32>
    tpu.vector_store %arg15[%c2_36, %c11_37, %c0_38], %21 {strides = array<i32>} : memref<13x13x16xf32, #tpu.memory_space<vmem>>, vector<9x2x16xf32>,
    %c0_39 = arith.constant 0 : index
    %c0_40 = arith.constant 0 : index
    %26 = vector.load %arg8[%c0_39, %c0_40] : memref<9x18xf32, #tpu.memory_space<vmem>>, vector<9x18xf32>
    %c0_41 = arith.constant 0 : index
    %c0_42 = arith.constant 0 : index
    %27 = vector.load %arg9[%c0_41, %c0_42] : memref<9x18xf32, #tpu.memory_space<vmem>>, vector<9x18xf32>
    %c0_i32_43 = arith.constant 0 : i32
    %c9_i32 = arith.constant 9 : i32
    %28 = arith.addi %c0_i32_43, %c9_i32 : i32
    %c1_i32_44 = arith.constant 1 : i32
    scf.for %arg19 = %c0_i32_43 to %28 step %c1_i32_44  : i32 {
      %c2_i32 = arith.constant 2 : i32
      %35 = arith.muli %c2_i32, %arg19 : i32
      %36 = arith.index_cast %35 : i32 to index
      %c0_60 = arith.constant 0 : index
      %c0_61 = arith.constant 0 : index
      %37 = vector.load %arg14[%36, %c0_60, %c0_61] : memref<18x18x16xf32, #tpu.memory_space<vmem>>, vector<1x18x16xf32>
      %38 = vector.shape_cast %37 : vector<1x18x16xf32> to vector<18x16xf32>
      %c2_i32_62 = arith.constant 2 : i32
      %39 = arith.muli %c2_i32_62, %arg19 : i32
      %c1_i32_63 = arith.constant 1 : i32
      %40 = arith.addi %39, %c1_i32_63 : i32
      %41 = arith.index_cast %40 : i32 to index
      %c0_64 = arith.constant 0 : index
      %c0_65 = arith.constant 0 : index
      %42 = vector.load %arg14[%41, %c0_64, %c0_65] : memref<18x18x16xf32, #tpu.memory_space<vmem>>, vector<1x18x16xf32>
      %43 = vector.shape_cast %42 : vector<1x18x16xf32> to vector<18x16xf32>
      %44 = arith.maximumf %38, %43 : vector<18x16xf32>
      %cst_66 = arith.constant dense<0.000000e+00> : vector<9x16xf32>
      %45 = tpu.matmul %26, %44, %cst_66 {dimension_numbers = #tpu.dot_dimension_numbers<[1], [0], [0], [1], [0, 0, 1, 1], [], []>} : vector<9x18xf32>, vector<18x16xf32>, vector<9x16xf32> -> vector<9x16xf32>
      %cst_67 = arith.constant dense<0.000000e+00> : vector<9x16xf32>
      %46 = tpu.matmul %27, %44, %cst_67 {dimension_numbers = #tpu.dot_dimension_numbers<[1], [0], [0], [1], [0, 0, 1, 1], [], []>} : vector<9x18xf32>, vector<18x16xf32>, vector<9x16xf32> -> vector<9x16xf32>
      %47 = arith.maximumf %45, %46 : vector<9x16xf32>
      %c2_i32_68 = arith.constant 2 : i32
      %48 = arith.addi %c2_i32_68, %arg19 : i32
      %49 = arith.index_cast %48 : i32 to index
      %c2_69 = arith.constant 2 : index
      %c0_70 = arith.constant 0 : index
      %50 = vector.load %arg15[%49, %c2_69, %c0_70] : memref<13x13x16xf32, #tpu.memory_space<vmem>>, vector<1x9x16xf32>
      %51 = vector.shape_cast %50 : vector<1x9x16xf32> to vector<9x16xf32>
      %52 = vector.shape_cast %47 : vector<9x16xf32> to vector<1x9x16xf32>
      tpu.vector_store %arg15[%49, %c2_69, %c0_70], %52 {strides = array<i32>} : memref<13x13x16xf32, #tpu.memory_space<vmem>>, vector<1x9x16xf32>,
    }
    %c9_i32_45 = arith.constant 9 : i32
    %c0_46 = arith.constant 0 : index
    %c0_47 = arith.constant 0 : index
    %29 = vector.load %arg6[%c0_46, %c0_47] : memref<144x128xf32, #tpu.memory_space<vmem>>, vector<144x128xf32>
    %c0_48 = arith.constant 0 : index
    %c0_49 = arith.constant 0 : index
    %30 = vector.load %arg7[%c0_48, %c0_49] : memref<1x128xf32, #tpu.memory_space<vmem>>, vector<1x128xf32>
    %c0_i32_50 = arith.constant 0 : i32
    %c11_i32 = arith.constant 11 : i32
    %31 = arith.addi %c0_i32_50, %c11_i32 : i32
    %c1_i32_51 = arith.constant 1 : i32
    scf.for %arg19 = %c0_i32_50 to %31 step %c1_i32_51  : i32 {
      %c0_i32_60 = arith.constant 0 : i32
      %35 = arith.addi %arg19, %c0_i32_60 : i32
      %36 = arith.index_cast %35 : i32 to index
      %c0_61 = arith.constant 0 : index
      %c0_62 = arith.constant 0 : index
      %37 = vector.load %arg15[%36, %c0_61, %c0_62] : memref<13x13x16xf32, #tpu.memory_space<vmem>>, vector<1x11x16xf32>
      %38 = vector.shape_cast %37 : vector<1x11x16xf32> to vector<11x16xf32>
      %c0_63 = arith.constant 0 : index
      %c0_64 = arith.constant 0 : index
      %39 = vector.load %arg18[%c0_63, %c0_64] : memref<11x144xf32, #tpu.memory_space<vmem>>, vector<11x16xf32>
      tpu.vector_store %arg18[%c0_63, %c0_64], %38 {strides = array<i32>} : memref<11x144xf32, #tpu.memory_space<vmem>>, vector<11x16xf32>,
      %c0_i32_65 = arith.constant 0 : i32
      %40 = arith.addi %arg19, %c0_i32_65 : i32
      %41 = arith.index_cast %40 : i32 to index
      %c1 = arith.constant 1 : index
      %c0_66 = arith.constant 0 : index
      %42 = vector.load %arg15[%41, %c1, %c0_66] : memref<13x13x16xf32, #tpu.memory_space<vmem>>, vector<1x11x16xf32>
      %43 = vector.shape_cast %42 : vector<1x11x16xf32> to vector<11x16xf32>
      %c0_67 = arith.constant 0 : index
      %c16 = arith.constant 16 : index
      %44 = vector.load %arg18[%c0_67, %c16] : memref<11x144xf32, #tpu.memory_space<vmem>>, vector<11x16xf32>
      tpu.vector_store %arg18[%c0_67, %c16], %43 {strides = array<i32>} : memref<11x144xf32, #tpu.memory_space<vmem>>, vector<11x16xf32>,
      %c0_i32_68 = arith.constant 0 : i32
      %45 = arith.addi %arg19, %c0_i32_68 : i32
      %46 = arith.index_cast %45 : i32 to index
      %c2_69 = arith.constant 2 : index
      %c0_70 = arith.constant 0 : index
      %47 = vector.load %arg15[%46, %c2_69, %c0_70] : memref<13x13x16xf32, #tpu.memory_space<vmem>>, vector<1x11x16xf32>
      %48 = vector.shape_cast %47 : vector<1x11x16xf32> to vector<11x16xf32>
      %c0_71 = arith.constant 0 : index
      %c32 = arith.constant 32 : index
      %49 = vector.load %arg18[%c0_71, %c32] : memref<11x144xf32, #tpu.memory_space<vmem>>, vector<11x16xf32>
      tpu.vector_store %arg18[%c0_71, %c32], %48 {strides = array<i32>} : memref<11x144xf32, #tpu.memory_space<vmem>>, vector<11x16xf32>,
      %c1_i32_72 = arith.constant 1 : i32
      %50 = arith.addi %arg19, %c1_i32_72 : i32
      %51 = arith.index_cast %50 : i32 to index
      %c0_73 = arith.constant 0 : index
      %c0_74 = arith.constant 0 : index
      %52 = vector.load %arg15[%51, %c0_73, %c0_74] : memref<13x13x16xf32, #tpu.memory_space<vmem>>, vector<1x11x16xf32>
      %53 = vector.shape_cast %52 : vector<1x11x16xf32> to vector<11x16xf32>
      %c0_75 = arith.constant 0 : index
      %c48 = arith.constant 48 : index
      %54 = vector.load %arg18[%c0_75, %c48] : memref<11x144xf32, #tpu.memory_space<vmem>>, vector<11x16xf32>
      tpu.vector_store %arg18[%c0_75, %c48], %53 {strides = array<i32>} : memref<11x144xf32, #tpu.memory_space<vmem>>, vector<11x16xf32>,
      %c1_i32_76 = arith.constant 1 : i32
      %55 = arith.addi %arg19, %c1_i32_76 : i32
      %56 = arith.index_cast %55 : i32 to index
      %c1_77 = arith.constant 1 : index
      %c0_78 = arith.constant 0 : index
      %57 = vector.load %arg15[%56, %c1_77, %c0_78] : memref<13x13x16xf32, #tpu.memory_space<vmem>>, vector<1x11x16xf32>
      %58 = vector.shape_cast %57 : vector<1x11x16xf32> to vector<11x16xf32>
      %c0_79 = arith.constant 0 : index
      %c64 = arith.constant 64 : index
      %59 = vector.load %arg18[%c0_79, %c64] : memref<11x144xf32, #tpu.memory_space<vmem>>, vector<11x16xf32>
      tpu.vector_store %arg18[%c0_79, %c64], %58 {strides = array<i32>} : memref<11x144xf32, #tpu.memory_space<vmem>>, vector<11x16xf32>,
      %c1_i32_80 = arith.constant 1 : i32
      %60 = arith.addi %arg19, %c1_i32_80 : i32
      %61 = arith.index_cast %60 : i32 to index
      %c2_81 = arith.constant 2 : index
      %c0_82 = arith.constant 0 : index
      %62 = vector.load %arg15[%61, %c2_81, %c0_82] : memref<13x13x16xf32, #tpu.memory_space<vmem>>, vector<1x11x16xf32>
      %63 = vector.shape_cast %62 : vector<1x11x16xf32> to vector<11x16xf32>
      %c0_83 = arith.constant 0 : index
      %c80 = arith.constant 80 : index
      %64 = vector.load %arg18[%c0_83, %c80] : memref<11x144xf32, #tpu.memory_space<vmem>>, vector<11x16xf32>
      tpu.vector_store %arg18[%c0_83, %c80], %63 {strides = array<i32>} : memref<11x144xf32, #tpu.memory_space<vmem>>, vector<11x16xf32>,
      %c2_i32 = arith.constant 2 : i32
      %65 = arith.addi %arg19, %c2_i32 : i32
      %66 = arith.index_cast %65 : i32 to index
      %c0_84 = arith.constant 0 : index
      %c0_85 = arith.constant 0 : index
      %67 = vector.load %arg15[%66, %c0_84, %c0_85] : memref<13x13x16xf32, #tpu.memory_space<vmem>>, vector<1x11x16xf32>
      %68 = vector.shape_cast %67 : vector<1x11x16xf32> to vector<11x16xf32>
      %c0_86 = arith.constant 0 : index
      %c96 = arith.constant 96 : index
      %69 = vector.load %arg18[%c0_86, %c96] : memref<11x144xf32, #tpu.memory_space<vmem>>, vector<11x16xf32>
      tpu.vector_store %arg18[%c0_86, %c96], %68 {strides = array<i32>} : memref<11x144xf32, #tpu.memory_space<vmem>>, vector<11x16xf32>,
      %c2_i32_87 = arith.constant 2 : i32
      %70 = arith.addi %arg19, %c2_i32_87 : i32
      %71 = arith.index_cast %70 : i32 to index
      %c1_88 = arith.constant 1 : index
      %c0_89 = arith.constant 0 : index
      %72 = vector.load %arg15[%71, %c1_88, %c0_89] : memref<13x13x16xf32, #tpu.memory_space<vmem>>, vector<1x11x16xf32>
      %73 = vector.shape_cast %72 : vector<1x11x16xf32> to vector<11x16xf32>
      %c0_90 = arith.constant 0 : index
      %c112 = arith.constant 112 : index
      %74 = vector.load %arg18[%c0_90, %c112] : memref<11x144xf32, #tpu.memory_space<vmem>>, vector<11x16xf32>
      tpu.vector_store %arg18[%c0_90, %c112], %73 {strides = array<i32>} : memref<11x144xf32, #tpu.memory_space<vmem>>, vector<11x16xf32>,
      %c2_i32_91 = arith.constant 2 : i32
      %75 = arith.addi %arg19, %c2_i32_91 : i32
      %76 = arith.index_cast %75 : i32 to index
      %c2_92 = arith.constant 2 : index
      %c0_93 = arith.constant 0 : index
      %77 = vector.load %arg15[%76, %c2_92, %c0_93] : memref<13x13x16xf32, #tpu.memory_space<vmem>>, vector<1x11x16xf32>
      %78 = vector.shape_cast %77 : vector<1x11x16xf32> to vector<11x16xf32>
      %c0_94 = arith.constant 0 : index
      %c128 = arith.constant 128 : index
      %79 = vector.load %arg18[%c0_94, %c128] : memref<11x144xf32, #tpu.memory_space<vmem>>, vector<11x16xf32>
      tpu.vector_store %arg18[%c0_94, %c128], %78 {strides = array<i32>} : memref<11x144xf32, #tpu.memory_space<vmem>>, vector<11x16xf32>,
      %c0_95 = arith.constant 0 : index
      %c0_96 = arith.constant 0 : index
      %80 = vector.load %arg18[%c0_95, %c0_96] : memref<11x144xf32, #tpu.memory_space<vmem>>, vector<11x144xf32>
      %cst_97 = arith.constant dense<0.000000e+00> : vector<11x128xf32>
      %81 = tpu.matmul %80, %29, %cst_97 {dimension_numbers = #tpu.dot_dimension_numbers<[1], [0], [0], [1], [0, 0, 1, 1], [], []>} : vector<11x144xf32>, vector<144x128xf32>, vector<11x128xf32> -> vector<11x128xf32>
      %82 = vector.broadcast %30 : vector<1x128xf32> to vector<11x128xf32>
      %83 = arith.addf %81, %82 : vector<11x128xf32>
      %cst_98 = arith.constant 0.000000e+00 : f32
      %84 = vector.broadcast %cst_98 : f32 to vector<11x128xf32>
      %85 = arith.maximumf %83, %84 : vector<11x128xf32>
      %86 = arith.index_cast %arg19 : i32 to index
      %c0_99 = arith.constant 0 : index
      %c0_100 = arith.constant 0 : index
      %87 = vector.load %arg16[%86, %c0_99, %c0_100] : memref<11x11x128xf32, #tpu.memory_space<vmem>>, vector<1x11x128xf32>
      %88 = vector.shape_cast %87 : vector<1x11x128xf32> to vector<11x128xf32>
      %89 = vector.shape_cast %85 : vector<11x128xf32> to vector<1x11x128xf32>
      tpu.vector_store %arg16[%86, %c0_99, %c0_100], %89 {strides = array<i32>} : memref<11x11x128xf32, #tpu.memory_space<vmem>>, vector<1x11x128xf32>,
    }
    %c11_i32_52 = arith.constant 11 : i32
    %c0_53 = arith.constant 0 : index
    %c0_54 = arith.constant 0 : index
    %32 = vector.load %arg10[%c0_53, %c0_54] : memref<5x11xf32, #tpu.memory_space<vmem>>, vector<5x11xf32>
    %c0_55 = arith.constant 0 : index
    %c0_56 = arith.constant 0 : index
    %33 = vector.load %arg11[%c0_55, %c0_56] : memref<5x11xf32, #tpu.memory_space<vmem>>, vector<5x11xf32>
    %c0_i32_57 = arith.constant 0 : i32
    %c5_i32 = arith.constant 5 : i32
    %34 = arith.addi %c0_i32_57, %c5_i32 : i32
    %c1_i32_58 = arith.constant 1 : i32
    scf.for %arg19 = %c0_i32_57 to %34 step %c1_i32_58  : i32 {
      %c2_i32 = arith.constant 2 : i32
      %35 = arith.muli %c2_i32, %arg19 : i32
      %36 = arith.index_cast %35 : i32 to index
      %c0_60 = arith.constant 0 : index
      %c0_61 = arith.constant 0 : index
      %37 = vector.load %arg16[%36, %c0_60, %c0_61] : memref<11x11x128xf32, #tpu.memory_space<vmem>>, vector<1x11x128xf32>
      %38 = vector.shape_cast %37 : vector<1x11x128xf32> to vector<11x128xf32>
      %c2_i32_62 = arith.constant 2 : i32
      %39 = arith.muli %c2_i32_62, %arg19 : i32
      %c1_i32_63 = arith.constant 1 : i32
      %40 = arith.addi %39, %c1_i32_63 : i32
      %41 = arith.index_cast %40 : i32 to index
      %c0_64 = arith.constant 0 : index
      %c0_65 = arith.constant 0 : index
      %42 = vector.load %arg16[%41, %c0_64, %c0_65] : memref<11x11x128xf32, #tpu.memory_space<vmem>>, vector<1x11x128xf32>
      %43 = vector.shape_cast %42 : vector<1x11x128xf32> to vector<11x128xf32>
      %44 = arith.maximumf %38, %43 : vector<11x128xf32>
      %cst_66 = arith.constant dense<0.000000e+00> : vector<5x128xf32>
      %45 = tpu.matmul %32, %44, %cst_66 {dimension_numbers = #tpu.dot_dimension_numbers<[1], [0], [0], [1], [0, 0, 1, 1], [], []>} : vector<5x11xf32>, vector<11x128xf32>, vector<5x128xf32> -> vector<5x128xf32>
      %cst_67 = arith.constant dense<0.000000e+00> : vector<5x128xf32>
      %46 = tpu.matmul %33, %44, %cst_67 {dimension_numbers = #tpu.dot_dimension_numbers<[1], [0], [0], [1], [0, 0, 1, 1], [], []>} : vector<5x11xf32>, vector<11x128xf32>, vector<5x128xf32> -> vector<5x128xf32>
      %47 = arith.maximumf %45, %46 : vector<5x128xf32>
      %c0_68 = arith.constant 0 : index
      %48 = arith.index_cast %arg19 : i32 to index
      %c0_69 = arith.constant 0 : index
      %c0_70 = arith.constant 0 : index
      %49 = vector.load %arg12[%c0_68, %48, %c0_69, %c0_70] : memref<1x5x5x128xf32, #tpu.memory_space<vmem>>, vector<1x1x5x128xf32>
      %50 = vector.shape_cast %49 : vector<1x1x5x128xf32> to vector<5x128xf32>
      %51 = vector.shape_cast %47 : vector<5x128xf32> to vector<1x1x5x128xf32>
      tpu.vector_store %arg12[%c0_68, %48, %c0_69, %c0_70], %51 {strides = array<i32>} : memref<1x5x5x128xf32, #tpu.memory_space<vmem>>, vector<1x1x5x128xf32>,
    }
    %c5_i32_59 = arith.constant 5 : i32
    return
  }
  func.func @transform_0(%arg0: i32) -> (i32, i32, i32, i32) {
    %c0_i32 = arith.constant 0 : i32
    %c0_i32_0 = arith.constant 0 : i32
    %c0_i32_1 = arith.constant 0 : i32
    %c0_i32_2 = arith.constant 0 : i32
    return %arg0, %c0_i32, %c0_i32_0, %c0_i32_1 : i32, i32, i32, i32
  }
  func.func @transform_1(%arg0: i32) -> (i32, i32) {
    %c0_i32 = arith.constant 0 : i32
    %c0_i32_0 = arith.constant 0 : i32
    %c0_i32_1 = arith.constant 0 : i32
    return %c0_i32, %c0_i32_0 : i32, i32
  }
  func.func @transform_2(%arg0: i32) -> (i32, i32) {
    %c0_i32 = arith.constant 0 : i32
    %c0_i32_0 = arith.constant 0 : i32
    %c0_i32_1 = arith.constant 0 : i32
    return %c0_i32, %c0_i32_0 : i32, i32
  }
  func.func @transform_3(%arg0: i32) -> (i32, i32) {
    %c0_i32 = arith.constant 0 : i32
    %c0_i32_0 = arith.constant 0 : i32
    %c0_i32_1 = arith.constant 0 : i32
    return %c0_i32, %c0_i32_0 : i32, i32
  }
  func.func @transform_4(%arg0: i32) -> (i32, i32) {
    %c0_i32 = arith.constant 0 : i32
    %c0_i32_0 = arith.constant 0 : i32
    %c0_i32_1 = arith.constant 0 : i32
    return %c0_i32, %c0_i32_0 : i32, i32
  }
  func.func @transform_5(%arg0: i32) -> (i32, i32) {
    %c0_i32 = arith.constant 0 : i32
    %c0_i32_0 = arith.constant 0 : i32
    %c0_i32_1 = arith.constant 0 : i32
    return %c0_i32, %c0_i32_0 : i32, i32
  }
  func.func @transform_6(%arg0: i32) -> (i32, i32) {
    %c0_i32 = arith.constant 0 : i32
    %c0_i32_0 = arith.constant 0 : i32
    %c0_i32_1 = arith.constant 0 : i32
    return %c0_i32, %c0_i32_0 : i32, i32
  }
  func.func @transform_7(%arg0: i32) -> (i32, i32) {
    %c0_i32 = arith.constant 0 : i32
    %c0_i32_0 = arith.constant 0 : i32
    %c0_i32_1 = arith.constant 0 : i32
    return %c0_i32, %c0_i32_0 : i32, i32
  }
  func.func @transform_8(%arg0: i32) -> (i32, i32) {
    %c0_i32 = arith.constant 0 : i32
    %c0_i32_0 = arith.constant 0 : i32
    %c0_i32_1 = arith.constant 0 : i32
    return %c0_i32, %c0_i32_0 : i32, i32
  }
  func.func @transform_9(%arg0: i32) -> (i32, i32) {
    %c0_i32 = arith.constant 0 : i32
    %c0_i32_0 = arith.constant 0 : i32
    %c0_i32_1 = arith.constant 0 : i32
    return %c0_i32, %c0_i32_0 : i32, i32
  }
  func.func @transform_10(%arg0: i32) -> (i32, i32) {
    %c0_i32 = arith.constant 0 : i32
    %c0_i32_0 = arith.constant 0 : i32
    %c0_i32_1 = arith.constant 0 : i32
    return %c0_i32, %c0_i32_0 : i32, i32
  }
  func.func @transform_11(%arg0: i32) -> (i32, i32, i32, i32) {
    %c0_i32 = arith.constant 0 : i32
    %c0_i32_0 = arith.constant 0 : i32
    %c0_i32_1 = arith.constant 0 : i32
    %c0_i32_2 = arith.constant 0 : i32
    return %arg0, %c0_i32, %c0_i32_0, %c0_i32_1 : i32, i32, i32, i32
  }
}

module attributes {stable_mosaic.version = 11 : i64} {
  func.func @_fc_kernel(%arg0: i32, %arg1: memref<2x3200xf32, #tpu.memory_space<vmem>>, %arg2: memref<10x3200xf32, #tpu.memory_space<vmem>>, %arg3: memref<1x10xf32, #tpu.memory_space<vmem>>, %arg4: memref<2x10xf32, #tpu.memory_space<vmem>>, %arg5: memref<2x10xf32, #tpu.memory_space<vmem>>) attributes {dimension_semantics = [#tpu.dimension_semantics<arbitrary>], iteration_bounds = array<i64: 1>, scalar_prefetch = 0 : i64, scratch_operands = 1 : i64, tpu.core_type = #tpu.core_type<tc>, window_params = [{transform_indices = @transform_0, window_bounds = array<i64: 2, 3200>}, {transform_indices = @transform_1, window_bounds = array<i64: 10, 3200>}, {pipeline_mode = #tpu.pipeline_mode<synchronous>, transform_indices = @transform_2, window_bounds = array<i64: 1, 10>}, {pipeline_mode = #tpu.pipeline_mode<synchronous>, transform_indices = @transform_3, window_bounds = array<i64: 2, 10>}]} {
    %c0_i32 = arith.constant 0 : i32
    %0 = arith.cmpi eq, %arg0, %c0_i32 : i32
    %1 = arith.extui %0 : i1 to i32
    %c0_i32_0 = arith.constant 0 : i32
    %2 = arith.cmpi ne, %1, %c0_i32_0 : i32
    scf.if %2 {
      %cst_10 = arith.constant 0.000000e+00 : f32
      %12 = vector.broadcast %cst_10 : f32 to vector<2x10xf32>
      %c0_11 = arith.constant 0 : index
      %c0_12 = arith.constant 0 : index
      %13 = vector.load %arg5[%c0_11, %c0_12] : memref<2x10xf32, #tpu.memory_space<vmem>>, vector<2x10xf32>
      tpu.vector_store %arg5[%c0_11, %c0_12], %12 {strides = array<i32>} : memref<2x10xf32, #tpu.memory_space<vmem>>, vector<2x10xf32>,
    } else {
    }
    %c0 = arith.constant 0 : index
    %c0_1 = arith.constant 0 : index
    %3 = vector.load %arg5[%c0, %c0_1] : memref<2x10xf32, #tpu.memory_space<vmem>>, vector<2x10xf32>
    %c0_2 = arith.constant 0 : index
    %c0_3 = arith.constant 0 : index
    %4 = vector.load %arg1[%c0_2, %c0_3] : memref<2x3200xf32, #tpu.memory_space<vmem>>, vector<2x3200xf32>
    %c0_4 = arith.constant 0 : index
    %c0_5 = arith.constant 0 : index
    %5 = vector.load %arg2[%c0_4, %c0_5] : memref<10x3200xf32, #tpu.memory_space<vmem>>, vector<10x3200xf32>
    %cst = arith.constant dense<0.000000e+00> : vector<2x10xf32>
    %6 = tpu.matmul %4, %5, %cst {dimension_numbers = #tpu.dot_dimension_numbers<[1], [1], [0], [0], [0, 0, 1, 0], [], []>} : vector<2x3200xf32>, vector<10x3200xf32>, vector<2x10xf32> -> vector<2x10xf32>
    %7 = arith.addf %3, %6 : vector<2x10xf32>
    %c0_6 = arith.constant 0 : index
    %c0_7 = arith.constant 0 : index
    %8 = vector.load %arg5[%c0_6, %c0_7] : memref<2x10xf32, #tpu.memory_space<vmem>>, vector<2x10xf32>
    tpu.vector_store %arg5[%c0_6, %c0_7], %7 {strides = array<i32>} : memref<2x10xf32, #tpu.memory_space<vmem>>, vector<2x10xf32>,
    %c0_i32_8 = arith.constant 0 : i32
    %9 = arith.cmpi eq, %arg0, %c0_i32_8 : i32
    %10 = arith.extui %9 : i1 to i32
    %c0_i32_9 = arith.constant 0 : i32
    %11 = arith.cmpi ne, %10, %c0_i32_9 : i32
    scf.if %11 {
      %c0_10 = arith.constant 0 : index
      %c0_11 = arith.constant 0 : index
      %12 = vector.load %arg5[%c0_10, %c0_11] : memref<2x10xf32, #tpu.memory_space<vmem>>, vector<2x10xf32>
      %c0_12 = arith.constant 0 : index
      %c0_13 = arith.constant 0 : index
      %13 = vector.load %arg3[%c0_12, %c0_13] : memref<1x10xf32, #tpu.memory_space<vmem>>, vector<1x10xf32>
      %14 = vector.broadcast %13 : vector<1x10xf32> to vector<2x10xf32>
      %15 = arith.addf %12, %14 : vector<2x10xf32>
      %c0_14 = arith.constant 0 : index
      %c0_15 = arith.constant 0 : index
      %16 = vector.load %arg4[%c0_14, %c0_15] : memref<2x10xf32, #tpu.memory_space<vmem>>, vector<2x10xf32>
      tpu.vector_store %arg4[%c0_14, %c0_15], %15 {strides = array<i32>} : memref<2x10xf32, #tpu.memory_space<vmem>>, vector<2x10xf32>,
    } else {
    }
    return
  }
  func.func @transform_0(%arg0: i32) -> (i32, i32) {
    %c0_i32 = arith.constant 0 : i32
    %c0_i32_0 = arith.constant 0 : i32
    return %c0_i32, %arg0 : i32, i32
  }
  func.func @transform_1(%arg0: i32) -> (i32, i32) {
    %c0_i32 = arith.constant 0 : i32
    %c0_i32_0 = arith.constant 0 : i32
    return %c0_i32, %arg0 : i32, i32
  }
  func.func @transform_2(%arg0: i32) -> (i32, i32) {
    %c0_i32 = arith.constant 0 : i32
    %c0_i32_0 = arith.constant 0 : i32
    %c0_i32_1 = arith.constant 0 : i32
    return %c0_i32, %c0_i32_0 : i32, i32
  }
  func.func @transform_3(%arg0: i32) -> (i32, i32) {
    %c0_i32 = arith.constant 0 : i32
    %c0_i32_0 = arith.constant 0 : i32
    %c0_i32_1 = arith.constant 0 : i32
    return %c0_i32, %c0_i32_0 : i32, i32
  }
}

</mosaic_0001>

<llo_original>
// kernel: forward.3
$region0: #{forward.3}
  #allocation0 [shape = 'u32[]', space=smem, size = 0x4, offset = 0x4, fixed_abs, tag = 'smem constant byte address 0x4 - core index']
  #allocation1 [shape = 'u32[144,128]{1,0:T(1,128)}', space=vmem, size = 0x12000, scoped, tag = 'internal scratch']
  #allocation2 [shape = 'f32[2,10]{1,0:T(2,128)}', space=vmem, size = 0x400, scoped, tag = 'scratch operand']
  %s0 = inlined_call_operand.vmem [shape: f32[2,3200], index: 0, kind: input, shape index: {}]
  %s1 = inlined_call_operand.vmem [shape: f32[10,3200], index: 1, kind: input, shape index: {}]
  %s2 = inlined_call_operand.vmem [shape: f32[1,10], index: 2, kind: input, shape index: {}]
  %s3 = inlined_call_operand.hbm [shape: f32[2,10], index: 3, kind: output, shape index: {}]
  %s4 = sld [smem:[#allocation0]]
  $region30: #{forward.3} parent=0
    _
  %s6 = ssub.s32 1, %s4
  %s7 = scalar_select 0, %s6, %s4
  $region1: #{forward.3} parent=0
    #allocation3 [shape = 'u8[1024]{0}', space=vmem, size = 0x400, scoped, tag = 'output window, operand 0, single buffered']
    #allocation4 [shape = 's32[1]{0}', space=sflag, size = 0x4, scoped, tag = 'scoped memory for forward.3']
    %8 = vsyncpa [#allocation4], 0
    // Predicated region
    $region2: #{forward.3} parent=1 // pred_check
      _
    $region3: #{forward.3} parent=1 // pred_check_branch
      %10 = sbr.rel (0) target = $region5
    $region4: #{forward.3} parent=1 // pred_region
      _
    $region5: #{forward.3} parent=1 // pred_fallthru
      _
    // Predicated region
    $region6: #{forward.3} parent=1 // pred_check
      _
    $region7: #{forward.3} parent=1 // pred_check_branch
      %12 = sbr.rel (0) target = $region9
    $region8: #{forward.3} parent=1 // pred_region
      _
    $region9: #{forward.3} parent=1 // pred_fallthru
      _
    // Predicated region
    $region10: #{forward.3} parent=1 // pred_check
      _
    $region11: #{forward.3} parent=1 // pred_check_branch
      %14 = sbr.rel (0) target = $region13
    $region12: #{forward.3} parent=1 // pred_region
      _
    $region13: #{forward.3} parent=1 // pred_fallthru
      _
    %p15 = scmp.eq.s32.totalorder 0, 0
    // Predicated region
    $region14: #{forward.3} parent=1 // pred_check
      %p16 = pneg %p15
    $region15: #{forward.3} parent=1 // pred_check_branch
      %18 = sbr.rel (%p16) target = $region17
    $region16: #{forward.3} parent=1 // pred_region
      %vm19 = vcmask 74752
      %20 = vst.msk [vmem:[#allocation2] sm:$0x3] %vm19, 0.0
    $region17: #{forward.3} parent=1 // pred_fallthru
      _
    %v21 = vld [vmem:[#allocation2] sm:$0x3]
    %v22 = vld [vmem:[%s0] sm:$0xff]
    %v23 = vld [vmem:[%s0 + $0x8] sm:$0xff]
    %v24 = vld [vmem:[%s0 + $0x10] sm:$0xff]
    %v25 = vld [vmem:[%s0 + $0x18] sm:$0xff]
    %v26 = vld [vmem:[%s0 + $0x20] sm:$0xff]
    %v27 = vld [vmem:[%s0 + $0x28] sm:$0xff]
    %v28 = vld [vmem:[%s0 + $0x30] sm:$0x3]
    %v29 = vld [vmem:[%s1] sm:$0xff]
    %v30 = vld [vmem:[%s1 + $0x8] sm:$0xff]
    %v31 = vld [vmem:[%s1 + $0x10] sm:$0xff]
    %v32 = vld [vmem:[%s1 + $0x18] sm:$0xff]
    %v33 = vld [vmem:[%s1 + $0x20] sm:$0xff]
    %v34 = vld [vmem:[%s1 + $0x28] sm:$0xff]
    %v35 = vld [vmem:[%s1 + $0x30] sm:$0xff]
    %v36 = vld [vmem:[%s1 + $0x38] sm:$0xff]
    %v37 = vld [vmem:[%s1 + $0x40] sm:$0xff]
    %v38 = vld [vmem:[%s1 + $0x48] sm:$0xff]
    %v39 = vld [vmem:[%s1 + $0x50] sm:$0xff]
    %v40 = vld [vmem:[%s1 + $0x58] sm:$0xff]
    %v41 = vld [vmem:[%s1 + $0x60] sm:$0xff]
    %v42 = vld [vmem:[%s1 + $0x68] sm:$0xff]
    %v43 = vld [vmem:[%s1 + $0x70] sm:$0xff]
    %v44 = vld [vmem:[%s1 + $0x78] sm:$0xff]
    %v45 = vld [vmem:[%s1 + $0x80] sm:$0xff]
    %v46 = vld [vmem:[%s1 + $0x88] sm:$0xff]
    %v47 = vld [vmem:[%s1 + $0x90] sm:$0xff]
    %v48 = vld [vmem:[%s1 + $0x98] sm:$0xff]
    %v49 = vld [vmem:[%s1 + $0xa0] sm:$0xff]
    %v50 = vld [vmem:[%s1 + $0xa8] sm:$0xff]
    %v51 = vld [vmem:[%s1 + $0xb0] sm:$0xff]
    %v52 = vld [vmem:[%s1 + $0xb8] sm:$0xff]
    %v53 = vld [vmem:[%s1 + $0xc0] sm:$0xff]
    %v54 = vld [vmem:[%s1 + $0xc8] sm:$0x3]
    %v55 = vld [vmem:[%s1 + $0xd0] sm:$0x3]
    %v56 = vld [vmem:[%s1 + $0xd8] sm:$0x3]
    %v57 = vld [vmem:[%s1 + $0xe0] sm:$0x3]
    %v58 = vld [vmem:[%s1 + $0xe8] sm:$0x3]
    %v59 = vld [vmem:[%s1 + $0xf0] sm:$0x3]
    %v60 = vld [vmem:[%s1 + $0xf8] sm:$0x3]
    %v61 = vld [vmem:[%s1 + $0x100] sm:$0x3]
    %v62 = vld [vmem:[%s1 + $0x108] sm:$0x3]
    %v63 = vld [vmem:[%s1 + $0x110] sm:$0x3]
    %v64 = vld [vmem:[%s1 + $0x118] sm:$0x3]
    %v65 = vld [vmem:[%s1 + $0x120] sm:$0x3]
    %v66 = vld [vmem:[%s1 + $0x128] sm:$0x3]
    %v67 = vld [vmem:[%s1 + $0x130] sm:$0x3]
    %v68 = vld [vmem:[%s1 + $0x138] sm:$0x3]
    %v69 = vld [vmem:[%s1 + $0x140] sm:$0x3]
    %v70 = vld [vmem:[%s1 + $0x148] sm:$0x3]
    %v71 = vld [vmem:[%s1 + $0x150] sm:$0x3]
    %v72 = vld [vmem:[%s1 + $0x158] sm:$0x3]
    %v73 = vld [vmem:[%s1 + $0x160] sm:$0x3]
    %v74 = vld [vmem:[%s1 + $0x168] sm:$0x3]
    %v75 = vld [vmem:[%s1 + $0x170] sm:$0x3]
    %v76 = vld [vmem:[%s1 + $0x178] sm:$0x3]
    %v77 = vld [vmem:[%s1 + $0x180] sm:$0x3]
    %v78 = vld [vmem:[%s1 + $0x188] sm:$0x3]
    %v86 = vcombine.high %v22, %v22
    %v88 = vunpack.c.l.s4 1983009808
    %v89 = vunpack.c.0.s8 %v88
    %v90 = vlaneseq
    %v91 = vshrl.u32 %v90, 7
    %v92 = vsub.s32 %v89, %v91
    %v93 = vrot.slane %v22, %v92
    %v95 = vunpack.c.l.s4 1983009808
    %v96 = vunpack.c.0.s8 %v95
    %v97 = vlaneseq
    %v98 = vshrl.u32 %v97, 7
    %v99 = vsub.s32 %v96, %v98
    %v100 = vrot.slane %v86, %v99
    %v101 = vcombine.high %v93, %v93
    %v102 = vcombine.high %v100, %v100
    %v103 = vcombine.high %v23, %v23
    %v105 = vunpack.c.l.s4 1983009808
    %v106 = vunpack.c.0.s8 %v105
    %v107 = vlaneseq
    %v108 = vshrl.u32 %v107, 7
    %v109 = vsub.s32 %v106, %v108
    %v110 = vrot.slane %v23, %v109
    %v112 = vunpack.c.l.s4 1983009808
    %v113 = vunpack.c.0.s8 %v112
    %v114 = vlaneseq
    %v115 = vshrl.u32 %v114, 7
    %v116 = vsub.s32 %v113, %v115
    %v117 = vrot.slane %v103, %v116
    %v118 = vcombine.high %v110, %v110
    %v119 = vcombine.high %v117, %v117
    %v120 = vcombine.high %v24, %v24
    %v122 = vunpack.c.l.s4 1983009808
    %v123 = vunpack.c.0.s8 %v122
    %v124 = vlaneseq
    %v125 = vshrl.u32 %v124, 7
    %v126 = vsub.s32 %v123, %v125
    %v127 = vrot.slane %v24, %v126
    %v129 = vunpack.c.l.s4 1983009808
    %v130 = vunpack.c.0.s8 %v129
    %v131 = vlaneseq
    %v132 = vshrl.u32 %v131, 7
    %v133 = vsub.s32 %v130, %v132
    %v134 = vrot.slane %v120, %v133
    %v135 = vcombine.high %v127, %v127
    %v136 = vcombine.high %v134, %v134
    %v137 = vcombine.high %v25, %v25
    %v139 = vunpack.c.l.s4 1983009808
    %v140 = vunpack.c.0.s8 %v139
    %v141 = vlaneseq
    %v142 = vshrl.u32 %v141, 7
    %v143 = vsub.s32 %v140, %v142
    %v144 = vrot.slane %v25, %v143
    %v146 = vunpack.c.l.s4 1983009808
    %v147 = vunpack.c.0.s8 %v146
    %v148 = vlaneseq
    %v149 = vshrl.u32 %v148, 7
    %v150 = vsub.s32 %v147, %v149
    %v151 = vrot.slane %v137, %v150
    %v152 = vcombine.high %v144, %v144
    %v153 = vcombine.high %v151, %v151
    %v154 = vcombine.high %v26, %v26
    %v156 = vunpack.c.l.s4 1983009808
    %v157 = vunpack.c.0.s8 %v156
    %v158 = vlaneseq
    %v159 = vshrl.u32 %v158, 7
    %v160 = vsub.s32 %v157, %v159
    %v161 = vrot.slane %v26, %v160
    %v163 = vunpack.c.l.s4 1983009808
    %v164 = vunpack.c.0.s8 %v163
    %v165 = vlaneseq
    %v166 = vshrl.u32 %v165, 7
    %v167 = vsub.s32 %v164, %v166
    %v168 = vrot.slane %v154, %v167
    %v169 = vcombine.high %v161, %v161
    %v170 = vcombine.high %v168, %v168
    %v171 = vcombine.high %v27, %v27
    %v173 = vunpack.c.l.s4 1983009808
    %v174 = vunpack.c.0.s8 %v173
    %v175 = vlaneseq
    %v176 = vshrl.u32 %v175, 7
    %v177 = vsub.s32 %v174, %v176
    %v178 = vrot.slane %v27, %v177
    %v180 = vunpack.c.l.s4 1983009808
    %v181 = vunpack.c.0.s8 %v180
    %v182 = vlaneseq
    %v183 = vshrl.u32 %v182, 7
    %v184 = vsub.s32 %v181, %v183
    %v185 = vrot.slane %v171, %v184
    %v186 = vcombine.high %v178, %v178
    %v187 = vcombine.high %v185, %v185
    %v189 = vunpack.c.l.s4 1983009808
    %v190 = vunpack.c.0.s8 %v189
    %v191 = vlaneseq
    %v192 = vshrl.u32 %v191, 7
    %v193 = vsub.s32 %v190, %v192
    %v194 = vrot.slane %v28, %v193
    %220 = vmatprep.subr.mxu0 %v30
    %221 = vmatpush1.xpose.msra.mxu0 %v29
    %222 = vmatprep.subr.mxu0 %v55
    %223 = vmatpush1.xpose.msra.mxu0 %v54
    %224 = vmatprep.subr.mxu0 0.0
    %225 = vmatpush1.xpose.msra.mxu0 0.0
    %226 = vmatprep.subr.mxu0 0.0
    %227 = vmatpush1.xpose.msra.mxu0 0.0
    %228 = vmatprep.subr.mxu0 0.0
    %229 = vmatpush1.xpose.msra.mxu0 0.0
    %230 = vmatprep.subr.mxu0 0.0
    %231 = vmatpush1.xpose.msra.mxu0 0.0
    %232 = vmatprep.subr.mxu0 0.0
    %233 = vmatpush1.xpose.msra.mxu0 0.0
    %234 = vmatprep.subr.mxu0 0.0
    %235 = vmatpush1.xpose.msra.mxu0 0.0
    %236 = vmatprep.subr.mxu0 0.0
    %237 = vmatpush1.xpose.msra.mxu0 0.0
    %238 = vmatprep.subr.mxu0 0.0
    %239 = vmatpush1.xpose.msra.mxu0 0.0
    %240 = vmatprep.subr.mxu0 0.0
    %241 = vmatpush1.xpose.msra.mxu0 0.0
    %242 = vmatprep.subr.mxu0 0.0
    %243 = vmatpush1.xpose.msra.mxu0 0.0
    %244 = vmatprep.subr.mxu0 0.0
    %245 = vmatpush1.xpose.msra.mxu0 0.0
    %246 = vmatprep.subr.mxu0 0.0
    %247 = vmatpush1.xpose.msra.mxu0 0.0
    %248 = vmatprep.subr.mxu0 0.0
    %249 = vmatpush1.xpose.msra.mxu0 0.0
    %250 = vmatprep.subr.mxu0 0.0
    %251 = vmatpush1.xpose.msra.mxu0 0.0
    %252 = vmatprep.subr.mxu0 0.0
    %253 = vmatpush1.xpose.msra.mxu0 0.0
    %254 = vmatprep.subr.mxu0 0.0
    %255 = vmatpush1.xpose.msra.mxu0 0.0
    %256 = vmatprep.subr.mxu0 0.0
    %257 = vmatpush1.xpose.msra.mxu0 0.0
    %258 = vmatprep.subr.mxu0 0.0
    %259 = vmatpush1.xpose.msra.mxu0 0.0
    %260 = vmatprep.subr.mxu0 0.0
    %261 = vmatpush1.xpose.msra.mxu0 0.0
    %262 = vmatprep.subr.mxu0 0.0
    %263 = vmatpush1.xpose.msra.mxu0 0.0
    %264 = vmatprep.subr.mxu0 0.0
    %265 = vmatpush1.xpose.msra.mxu0 0.0
    %266 = vmatprep.subr.mxu0 0.0
    %267 = vmatpush1.xpose.msra.mxu0 0.0
    %268 = vmatprep.subr.mxu0 0.0
    %269 = vmatpush1.xpose.msra.mxu0 0.0
    %270 = vmatprep.subr.mxu0 0.0
    %271 = vmatpush1.xpose.msra.mxu0 0.0
    %272 = vmatprep.subr.mxu0 0.0
    %273 = vmatpush1.xpose.msra.mxu0 0.0
    %274 = vmatprep.subr.mxu0 0.0
    %275 = vmatpush1.xpose.msra.mxu0 0.0
    %276 = vmatprep.subr.mxu0 0.0
    %277 = vmatpush1.xpose.msra.mxu0 0.0
    %278 = vmatprep.subr.mxu0 0.0
    %279 = vmatpush1.xpose.msra.mxu0 0.0
    %280 = vmatprep.subr.mxu0 0.0
    %281 = vmatpush1.xpose.msra.mxu0 0.0
    %282 = vmatprep.subr.mxu0 0.0
    %283 = vmatpush1.xpose.msra.mxu0 0.0
    %284 = vmatprep.mubr.f32.mxu0 %v101
    %285 = vmatmul.mubr.f32.gmra.mrb[0].mxu0 %v93
    %v286 = vpop.f32.mrb[0].mxu0
    %v287 = vadd.f32 0.0, %v286
    %v288 = vpop.f32.mrb[0].mxu0
    %289 = vdwg.mxu0
    %290 = vmatprep.subr.mxu0 %v32
    %291 = vmatpush1.xpose.msra.mxu0 %v31
    %292 = vmatprep.subr.mxu0 %v57
    %293 = vmatpush1.xpose.msra.mxu0 %v56
    %294 = vmatprep.subr.mxu0 0.0
    %295 = vmatpush1.xpose.msra.mxu0 0.0
    %296 = vmatprep.subr.mxu0 0.0
    %297 = vmatpush1.xpose.msra.mxu0 0.0
    %298 = vmatprep.subr.mxu0 0.0
    %299 = vmatpush1.xpose.msra.mxu0 0.0
    %300 = vmatprep.subr.mxu0 0.0
    %301 = vmatpush1.xpose.msra.mxu0 0.0
    %302 = vmatprep.subr.mxu0 0.0
    %303 = vmatpush1.xpose.msra.mxu0 0.0
    %304 = vmatprep.subr.mxu0 0.0
    %305 = vmatpush1.xpose.msra.mxu0 0.0
    %306 = vmatprep.subr.mxu0 0.0
    %307 = vmatpush1.xpose.msra.mxu0 0.0
    %308 = vmatprep.subr.mxu0 0.0
    %309 = vmatpush1.xpose.msra.mxu0 0.0
    %310 = vmatprep.subr.mxu0 0.0
    %311 = vmatpush1.xpose.msra.mxu0 0.0
    %312 = vmatprep.subr.mxu0 0.0
    %313 = vmatpush1.xpose.msra.mxu0 0.0
    %314 = vmatprep.subr.mxu0 0.0
    %315 = vmatpush1.xpose.msra.mxu0 0.0
    %316 = vmatprep.subr.mxu0 0.0
    %317 = vmatpush1.xpose.msra.mxu0 0.0
    %318 = vmatprep.subr.mxu0 0.0
    %319 = vmatpush1.xpose.msra.mxu0 0.0
    %320 = vmatprep.subr.mxu0 0.0
    %321 = vmatpush1.xpose.msra.mxu0 0.0
    %322 = vmatprep.subr.mxu0 0.0
    %323 = vmatpush1.xpose.msra.mxu0 0.0
    %324 = vmatprep.subr.mxu0 0.0
    %325 = vmatpush1.xpose.msra.mxu0 0.0
    %326 = vmatprep.subr.mxu0 0.0
    %327 = vmatpush1.xpose.msra.mxu0 0.0
    %328 = vmatprep.subr.mxu0 0.0
    %329 = vmatpush1.xpose.msra.mxu0 0.0
    %330 = vmatprep.subr.mxu0 0.0
    %331 = vmatpush1.xpose.msra.mxu0 0.0
    %332 = vmatprep.subr.mxu0 0.0
    %333 = vmatpush1.xpose.msra.mxu0 0.0
    %334 = vmatprep.subr.mxu0 0.0
    %335 = vmatpush1.xpose.msra.mxu0 0.0
    %336 = vmatprep.subr.mxu0 0.0
    %337 = vmatpush1.xpose.msra.mxu0 0.0
    %338 = vmatprep.subr.mxu0 0.0
    %339 = vmatpush1.xpose.msra.mxu0 0.0
    %340 = vmatprep.subr.mxu0 0.0
    %341 = vmatpush1.xpose.msra.mxu0 0.0
    %342 = vmatprep.subr.mxu0 0.0
    %343 = vmatpush1.xpose.msra.mxu0 0.0
    %344 = vmatprep.subr.mxu0 0.0
    %345 = vmatpush1.xpose.msra.mxu0 0.0
    %346 = vmatprep.subr.mxu0 0.0
    %347 = vmatpush1.xpose.msra.mxu0 0.0
    %348 = vmatprep.subr.mxu0 0.0
    %349 = vmatpush1.xpose.msra.mxu0 0.0
    %350 = vmatprep.subr.mxu0 0.0
    %351 = vmatpush1.xpose.msra.mxu0 0.0
    %352 = vmatprep.subr.mxu0 0.0
    %353 = vmatpush1.xpose.msra.mxu0 0.0
    %354 = vmatprep.mubr.f32.mxu0 %v102
    %355 = vmatmul.mubr.f32.gmra.mrb[0].mxu0 %v100
    %v356 = vpop.f32.mrb[0].mxu0
    %v357 = vadd.f32 %v287, %v356
    %v358 = vpop.f32.mrb[0].mxu0
    %359 = vdwg.mxu0
    %360 = vmatprep.subr.mxu0 %v34
    %361 = vmatpush1.xpose.msra.mxu0 %v33
    %362 = vmatprep.subr.mxu0 %v59
    %363 = vmatpush1.xpose.msra.mxu0 %v58
    %364 = vmatprep.subr.mxu0 0.0
    %365 = vmatpush1.xpose.msra.mxu0 0.0
    %366 = vmatprep.subr.mxu0 0.0
    %367 = vmatpush1.xpose.msra.mxu0 0.0
    %368 = vmatprep.subr.mxu0 0.0
    %369 = vmatpush1.xpose.msra.mxu0 0.0
    %370 = vmatprep.subr.mxu0 0.0
    %371 = vmatpush1.xpose.msra.mxu0 0.0
    %372 = vmatprep.subr.mxu0 0.0
    %373 = vmatpush1.xpose.msra.mxu0 0.0
    %374 = vmatprep.subr.mxu0 0.0
    %375 = vmatpush1.xpose.msra.mxu0 0.0
    %376 = vmatprep.subr.mxu0 0.0
    %377 = vmatpush1.xpose.msra.mxu0 0.0
    %378 = vmatprep.subr.mxu0 0.0
    %379 = vmatpush1.xpose.msra.mxu0 0.0
    %380 = vmatprep.subr.mxu0 0.0
    %381 = vmatpush1.xpose.msra.mxu0 0.0
    %382 = vmatprep.subr.mxu0 0.0
    %383 = vmatpush1.xpose.msra.mxu0 0.0
    %384 = vmatprep.subr.mxu0 0.0
    %385 = vmatpush1.xpose.msra.mxu0 0.0
    %386 = vmatprep.subr.mxu0 0.0
    %387 = vmatpush1.xpose.msra.mxu0 0.0
    %388 = vmatprep.subr.mxu0 0.0
    %389 = vmatpush1.xpose.msra.mxu0 0.0
    %390 = vmatprep.subr.mxu0 0.0
    %391 = vmatpush1.xpose.msra.mxu0 0.0
    %392 = vmatprep.subr.mxu0 0.0
    %393 = vmatpush1.xpose.msra.mxu0 0.0
    %394 = vmatprep.subr.mxu0 0.0
    %395 = vmatpush1.xpose.msra.mxu0 0.0
    %396 = vmatprep.subr.mxu0 0.0
    %397 = vmatpush1.xpose.msra.mxu0 0.0
    %398 = vmatprep.subr.mxu0 0.0
    %399 = vmatpush1.xpose.msra.mxu0 0.0
    %400 = vmatprep.subr.mxu0 0.0
    %401 = vmatpush1.xpose.msra.mxu0 0.0
    %402 = vmatprep.subr.mxu0 0.0
    %403 = vmatpush1.xpose.msra.mxu0 0.0
    %404 = vmatprep.subr.mxu0 0.0
    %405 = vmatpush1.xpose.msra.mxu0 0.0
    %406 = vmatprep.subr.mxu0 0.0
    %407 = vmatpush1.xpose.msra.mxu0 0.0
    %408 = vmatprep.subr.mxu0 0.0
    %409 = vmatpush1.xpose.msra.mxu0 0.0
    %410 = vmatprep.subr.mxu0 0.0
    %411 = vmatpush1.xpose.msra.mxu0 0.0
    %412 = vmatprep.subr.mxu0 0.0
    %413 = vmatpush1.xpose.msra.mxu0 0.0
    %414 = vmatprep.subr.mxu0 0.0
    %415 = vmatpush1.xpose.msra.mxu0 0.0
    %416 = vmatprep.subr.mxu0 0.0
    %417 = vmatpush1.xpose.msra.mxu0 0.0
    %418 = vmatprep.subr.mxu0 0.0
    %419 = vmatpush1.xpose.msra.mxu0 0.0
    %420 = vmatprep.subr.mxu0 0.0
    %421 = vmatpush1.xpose.msra.mxu0 0.0
    %422 = vmatprep.subr.mxu0 0.0
    %423 = vmatpush1.xpose.msra.mxu0 0.0
    %424 = vmatprep.mubr.f32.mxu0 %v118
    %425 = vmatmul.mubr.f32.gmra.mrb[0].mxu0 %v110
    %v426 = vpop.f32.mrb[0].mxu0
    %v427 = vadd.f32 %v357, %v426
    %v428 = vpop.f32.mrb[0].mxu0
    %429 = vdwg.mxu0
    %430 = vmatprep.subr.mxu0 %v36
    %431 = vmatpush1.xpose.msra.mxu0 %v35
    %432 = vmatprep.subr.mxu0 %v61
    %433 = vmatpush1.xpose.msra.mxu0 %v60
    %434 = vmatprep.subr.mxu0 0.0
    %435 = vmatpush1.xpose.msra.mxu0 0.0
    %436 = vmatprep.subr.mxu0 0.0
    %437 = vmatpush1.xpose.msra.mxu0 0.0
    %438 = vmatprep.subr.mxu0 0.0
    %439 = vmatpush1.xpose.msra.mxu0 0.0
    %440 = vmatprep.subr.mxu0 0.0
    %441 = vmatpush1.xpose.msra.mxu0 0.0
    %442 = vmatprep.subr.mxu0 0.0
    %443 = vmatpush1.xpose.msra.mxu0 0.0
    %444 = vmatprep.subr.mxu0 0.0
    %445 = vmatpush1.xpose.msra.mxu0 0.0
    %446 = vmatprep.subr.mxu0 0.0
    %447 = vmatpush1.xpose.msra.mxu0 0.0
    %448 = vmatprep.subr.mxu0 0.0
    %449 = vmatpush1.xpose.msra.mxu0 0.0
    %450 = vmatprep.subr.mxu0 0.0
    %451 = vmatpush1.xpose.msra.mxu0 0.0
    %452 = vmatprep.subr.mxu0 0.0
    %453 = vmatpush1.xpose.msra.mxu0 0.0
    %454 = vmatprep.subr.mxu0 0.0
    %455 = vmatpush1.xpose.msra.mxu0 0.0
    %456 = vmatprep.subr.mxu0 0.0
    %457 = vmatpush1.xpose.msra.mxu0 0.0
    %458 = vmatprep.subr.mxu0 0.0
    %459 = vmatpush1.xpose.msra.mxu0 0.0
    %460 = vmatprep.subr.mxu0 0.0
    %461 = vmatpush1.xpose.msra.mxu0 0.0
    %462 = vmatprep.subr.mxu0 0.0
    %463 = vmatpush1.xpose.msra.mxu0 0.0
    %464 = vmatprep.subr.mxu0 0.0
    %465 = vmatpush1.xpose.msra.mxu0 0.0
    %466 = vmatprep.subr.mxu0 0.0
    %467 = vmatpush1.xpose.msra.mxu0 0.0
    %468 = vmatprep.subr.mxu0 0.0
    %469 = vmatpush1.xpose.msra.mxu0 0.0
    %470 = vmatprep.subr.mxu0 0.0
    %471 = vmatpush1.xpose.msra.mxu0 0.0
    %472 = vmatprep.subr.mxu0 0.0
    %473 = vmatpush1.xpose.msra.mxu0 0.0
    %474 = vmatprep.subr.mxu0 0.0
    %475 = vmatpush1.xpose.msra.mxu0 0.0
    %476 = vmatprep.subr.mxu0 0.0
    %477 = vmatpush1.xpose.msra.mxu0 0.0
    %478 = vmatprep.subr.mxu0 0.0
    %479 = vmatpush1.xpose.msra.mxu0 0.0
    %480 = vmatprep.subr.mxu0 0.0
    %481 = vmatpush1.xpose.msra.mxu0 0.0
    %482 = vmatprep.subr.mxu0 0.0
    %483 = vmatpush1.xpose.msra.mxu0 0.0
    %484 = vmatprep.subr.mxu0 0.0
    %485 = vmatpush1.xpose.msra.mxu0 0.0
    %486 = vmatprep.subr.mxu0 0.0
    %487 = vmatpush1.xpose.msra.mxu0 0.0
    %488 = vmatprep.subr.mxu0 0.0
    %489 = vmatpush1.xpose.msra.mxu0 0.0
    %490 = vmatprep.subr.mxu0 0.0
    %491 = vmatpush1.xpose.msra.mxu0 0.0
    %492 = vmatprep.subr.mxu0 0.0
    %493 = vmatpush1.xpose.msra.mxu0 0.0
    %494 = vmatprep.mubr.f32.mxu0 %v119
    %495 = vmatmul.mubr.f32.gmra.mrb[0].mxu0 %v117
    %v496 = vpop.f32.mrb[0].mxu0
    %v497 = vadd.f32 %v427, %v496
    %v498 = vpop.f32.mrb[0].mxu0
    %499 = vdwg.mxu0
    %500 = vmatprep.subr.mxu0 %v38
    %501 = vmatpush1.xpose.msra.mxu0 %v37
    %502 = vmatprep.subr.mxu0 %v63
    %503 = vmatpush1.xpose.msra.mxu0 %v62
    %504 = vmatprep.subr.mxu0 0.0
    %505 = vmatpush1.xpose.msra.mxu0 0.0
    %506 = vmatprep.subr.mxu0 0.0
    %507 = vmatpush1.xpose.msra.mxu0 0.0
    %508 = vmatprep.subr.mxu0 0.0
    %509 = vmatpush1.xpose.msra.mxu0 0.0
    %510 = vmatprep.subr.mxu0 0.0
    %511 = vmatpush1.xpose.msra.mxu0 0.0
    %512 = vmatprep.subr.mxu0 0.0
    %513 = vmatpush1.xpose.msra.mxu0 0.0
    %514 = vmatprep.subr.mxu0 0.0
    %515 = vmatpush1.xpose.msra.mxu0 0.0
    %516 = vmatprep.subr.mxu0 0.0
    %517 = vmatpush1.xpose.msra.mxu0 0.0
    %518 = vmatprep.subr.mxu0 0.0
    %519 = vmatpush1.xpose.msra.mxu0 0.0
    %520 = vmatprep.subr.mxu0 0.0
    %521 = vmatpush1.xpose.msra.mxu0 0.0
    %522 = vmatprep.subr.mxu0 0.0
    %523 = vmatpush1.xpose.msra.mxu0 0.0
    %524 = vmatprep.subr.mxu0 0.0
    %525 = vmatpush1.xpose.msra.mxu0 0.0
    %526 = vmatprep.subr.mxu0 0.0
    %527 = vmatpush1.xpose.msra.mxu0 0.0
    %528 = vmatprep.subr.mxu0 0.0
    %529 = vmatpush1.xpose.msra.mxu0 0.0
    %530 = vmatprep.subr.mxu0 0.0
    %531 = vmatpush1.xpose.msra.mxu0 0.0
    %532 = vmatprep.subr.mxu0 0.0
    %533 = vmatpush1.xpose.msra.mxu0 0.0
    %534 = vmatprep.subr.mxu0 0.0
    %535 = vmatpush1.xpose.msra.mxu0 0.0
    %536 = vmatprep.subr.mxu0 0.0
    %537 = vmatpush1.xpose.msra.mxu0 0.0
    %538 = vmatprep.subr.mxu0 0.0
    %539 = vmatpush1.xpose.msra.mxu0 0.0
    %540 = vmatprep.subr.mxu0 0.0
    %541 = vmatpush1.xpose.msra.mxu0 0.0
    %542 = vmatprep.subr.mxu0 0.0
    %543 = vmatpush1.xpose.msra.mxu0 0.0
    %544 = vmatprep.subr.mxu0 0.0
    %545 = vmatpush1.xpose.msra.mxu0 0.0
    %546 = vmatprep.subr.mxu0 0.0
    %547 = vmatpush1.xpose.msra.mxu0 0.0
    %548 = vmatprep.subr.mxu0 0.0
    %549 = vmatpush1.xpose.msra.mxu0 0.0
    %550 = vmatprep.subr.mxu0 0.0
    %551 = vmatpush1.xpose.msra.mxu0 0.0
    %552 = vmatprep.subr.mxu0 0.0
    %553 = vmatpush1.xpose.msra.mxu0 0.0
    %554 = vmatprep.subr.mxu0 0.0
    %555 = vmatpush1.xpose.msra.mxu0 0.0
    %556 = vmatprep.subr.mxu0 0.0
    %557 = vmatpush1.xpose.msra.mxu0 0.0
    %558 = vmatprep.subr.mxu0 0.0
    %559 = vmatpush1.xpose.msra.mxu0 0.0
    %560 = vmatprep.subr.mxu0 0.0
    %561 = vmatpush1.xpose.msra.mxu0 0.0
    %562 = vmatprep.subr.mxu0 0.0
    %563 = vmatpush1.xpose.msra.mxu0 0.0
    %564 = vmatprep.mubr.f32.mxu0 %v135
    %565 = vmatmul.mubr.f32.gmra.mrb[0].mxu0 %v127
    %v566 = vpop.f32.mrb[0].mxu0
    %v567 = vadd.f32 %v497, %v566
    %v568 = vpop.f32.mrb[0].mxu0
    %569 = vdwg.mxu0
    %570 = vmatprep.subr.mxu0 %v40
    %571 = vmatpush1.xpose.msra.mxu0 %v39
    %572 = vmatprep.subr.mxu0 %v65
    %573 = vmatpush1.xpose.msra.mxu0 %v64
    %574 = vmatprep.subr.mxu0 0.0
    %575 = vmatpush1.xpose.msra.mxu0 0.0
    %576 = vmatprep.subr.mxu0 0.0
    %577 = vmatpush1.xpose.msra.mxu0 0.0
    %578 = vmatprep.subr.mxu0 0.0
    %579 = vmatpush1.xpose.msra.mxu0 0.0
    %580 = vmatprep.subr.mxu0 0.0
    %581 = vmatpush1.xpose.msra.mxu0 0.0
    %582 = vmatprep.subr.mxu0 0.0
    %583 = vmatpush1.xpose.msra.mxu0 0.0
    %584 = vmatprep.subr.mxu0 0.0
    %585 = vmatpush1.xpose.msra.mxu0 0.0
    %586 = vmatprep.subr.mxu0 0.0
    %587 = vmatpush1.xpose.msra.mxu0 0.0
    %588 = vmatprep.subr.mxu0 0.0
    %589 = vmatpush1.xpose.msra.mxu0 0.0
    %590 = vmatprep.subr.mxu0 0.0
    %591 = vmatpush1.xpose.msra.mxu0 0.0
    %592 = vmatprep.subr.mxu0 0.0
    %593 = vmatpush1.xpose.msra.mxu0 0.0
    %594 = vmatprep.subr.mxu0 0.0
    %595 = vmatpush1.xpose.msra.mxu0 0.0
    %596 = vmatprep.subr.mxu0 0.0
    %597 = vmatpush1.xpose.msra.mxu0 0.0
    %598 = vmatprep.subr.mxu0 0.0
    %599 = vmatpush1.xpose.msra.mxu0 0.0
    %600 = vmatprep.subr.mxu0 0.0
    %601 = vmatpush1.xpose.msra.mxu0 0.0
    %602 = vmatprep.subr.mxu0 0.0
    %603 = vmatpush1.xpose.msra.mxu0 0.0
    %604 = vmatprep.subr.mxu0 0.0
    %605 = vmatpush1.xpose.msra.mxu0 0.0
    %606 = vmatprep.subr.mxu0 0.0
    %607 = vmatpush1.xpose.msra.mxu0 0.0
    %608 = vmatprep.subr.mxu0 0.0
    %609 = vmatpush1.xpose.msra.mxu0 0.0
    %610 = vmatprep.subr.mxu0 0.0
    %611 = vmatpush1.xpose.msra.mxu0 0.0
    %612 = vmatprep.subr.mxu0 0.0
    %613 = vmatpush1.xpose.msra.mxu0 0.0
    %614 = vmatprep.subr.mxu0 0.0
    %615 = vmatpush1.xpose.msra.mxu0 0.0
    %616 = vmatprep.subr.mxu0 0.0
    %617 = vmatpush1.xpose.msra.mxu0 0.0
    %618 = vmatprep.subr.mxu0 0.0
    %619 = vmatpush1.xpose.msra.mxu0 0.0
    %620 = vmatprep.subr.mxu0 0.0
    %621 = vmatpush1.xpose.msra.mxu0 0.0
    %622 = vmatprep.subr.mxu0 0.0
    %623 = vmatpush1.xpose.msra.mxu0 0.0
    %624 = vmatprep.subr.mxu0 0.0
    %625 = vmatpush1.xpose.msra.mxu0 0.0
    %626 = vmatprep.subr.mxu0 0.0
    %627 = vmatpush1.xpose.msra.mxu0 0.0
    %628 = vmatprep.subr.mxu0 0.0
    %629 = vmatpush1.xpose.msra.mxu0 0.0
    %630 = vmatprep.subr.mxu0 0.0
    %631 = vmatpush1.xpose.msra.mxu0 0.0
    %632 = vmatprep.subr.mxu0 0.0
    %633 = vmatpush1.xpose.msra.mxu0 0.0
    %634 = vmatprep.mubr.f32.mxu0 %v136
    %635 = vmatmul.mubr.f32.gmra.mrb[0].mxu0 %v134
    %v636 = vpop.f32.mrb[0].mxu0
    %v637 = vadd.f32 %v567, %v636
    %v638 = vpop.f32.mrb[0].mxu0
    %639 = vdwg.mxu0
    %640 = vmatprep.subr.mxu0 %v42
    %641 = vmatpush1.xpose.msra.mxu0 %v41
    %642 = vmatprep.subr.mxu0 %v67
    %643 = vmatpush1.xpose.msra.mxu0 %v66
    %644 = vmatprep.subr.mxu0 0.0
    %645 = vmatpush1.xpose.msra.mxu0 0.0
    %646 = vmatprep.subr.mxu0 0.0
    %647 = vmatpush1.xpose.msra.mxu0 0.0
    %648 = vmatprep.subr.mxu0 0.0
    %649 = vmatpush1.xpose.msra.mxu0 0.0
    %650 = vmatprep.subr.mxu0 0.0
    %651 = vmatpush1.xpose.msra.mxu0 0.0
    %652 = vmatprep.subr.mxu0 0.0
    %653 = vmatpush1.xpose.msra.mxu0 0.0
    %654 = vmatprep.subr.mxu0 0.0
    %655 = vmatpush1.xpose.msra.mxu0 0.0
    %656 = vmatprep.subr.mxu0 0.0
    %657 = vmatpush1.xpose.msra.mxu0 0.0
    %658 = vmatprep.subr.mxu0 0.0
    %659 = vmatpush1.xpose.msra.mxu0 0.0
    %660 = vmatprep.subr.mxu0 0.0
    %661 = vmatpush1.xpose.msra.mxu0 0.0
    %662 = vmatprep.subr.mxu0 0.0
    %663 = vmatpush1.xpose.msra.mxu0 0.0
    %664 = vmatprep.subr.mxu0 0.0
    %665 = vmatpush1.xpose.msra.mxu0 0.0
    %666 = vmatprep.subr.mxu0 0.0
    %667 = vmatpush1.xpose.msra.mxu0 0.0
    %668 = vmatprep.subr.mxu0 0.0
    %669 = vmatpush1.xpose.msra.mxu0 0.0
    %670 = vmatprep.subr.mxu0 0.0
    %671 = vmatpush1.xpose.msra.mxu0 0.0
    %672 = vmatprep.subr.mxu0 0.0
    %673 = vmatpush1.xpose.msra.mxu0 0.0
    %674 = vmatprep.subr.mxu0 0.0
    %675 = vmatpush1.xpose.msra.mxu0 0.0
    %676 = vmatprep.subr.mxu0 0.0
    %677 = vmatpush1.xpose.msra.mxu0 0.0
    %678 = vmatprep.subr.mxu0 0.0
    %679 = vmatpush1.xpose.msra.mxu0 0.0
    %680 = vmatprep.subr.mxu0 0.0
    %681 = vmatpush1.xpose.msra.mxu0 0.0
    %682 = vmatprep.subr.mxu0 0.0
    %683 = vmatpush1.xpose.msra.mxu0 0.0
    %684 = vmatprep.subr.mxu0 0.0
    %685 = vmatpush1.xpose.msra.mxu0 0.0
    %686 = vmatprep.subr.mxu0 0.0
    %687 = vmatpush1.xpose.msra.mxu0 0.0
    %688 = vmatprep.subr.mxu0 0.0
    %689 = vmatpush1.xpose.msra.mxu0 0.0
    %690 = vmatprep.subr.mxu0 0.0
    %691 = vmatpush1.xpose.msra.mxu0 0.0
    %692 = vmatprep.subr.mxu0 0.0
    %693 = vmatpush1.xpose.msra.mxu0 0.0
    %694 = vmatprep.subr.mxu0 0.0
    %695 = vmatpush1.xpose.msra.mxu0 0.0
    %696 = vmatprep.subr.mxu0 0.0
    %697 = vmatpush1.xpose.msra.mxu0 0.0
    %698 = vmatprep.subr.mxu0 0.0
    %699 = vmatpush1.xpose.msra.mxu0 0.0
    %700 = vmatprep.subr.mxu0 0.0
    %701 = vmatpush1.xpose.msra.mxu0 0.0
    %702 = vmatprep.subr.mxu0 0.0
    %703 = vmatpush1.xpose.msra.mxu0 0.0
    %704 = vmatprep.mubr.f32.mxu0 %v152
    %705 = vmatmul.mubr.f32.gmra.mrb[0].mxu0 %v144
    %v706 = vpop.f32.mrb[0].mxu0
    %v707 = vadd.f32 %v637, %v706
    %v708 = vpop.f32.mrb[0].mxu0
    %709 = vdwg.mxu0
    %710 = vmatprep.subr.mxu0 %v44
    %711 = vmatpush1.xpose.msra.mxu0 %v43
    %712 = vmatprep.subr.mxu0 %v69
    %713 = vmatpush1.xpose.msra.mxu0 %v68
    %714 = vmatprep.subr.mxu0 0.0
    %715 = vmatpush1.xpose.msra.mxu0 0.0
    %716 = vmatprep.subr.mxu0 0.0
    %717 = vmatpush1.xpose.msra.mxu0 0.0
    %718 = vmatprep.subr.mxu0 0.0
    %719 = vmatpush1.xpose.msra.mxu0 0.0
    %720 = vmatprep.subr.mxu0 0.0
    %721 = vmatpush1.xpose.msra.mxu0 0.0
    %722 = vmatprep.subr.mxu0 0.0
    %723 = vmatpush1.xpose.msra.mxu0 0.0
    %724 = vmatprep.subr.mxu0 0.0
    %725 = vmatpush1.xpose.msra.mxu0 0.0
    %726 = vmatprep.subr.mxu0 0.0
    %727 = vmatpush1.xpose.msra.mxu0 0.0
    %728 = vmatprep.subr.mxu0 0.0
    %729 = vmatpush1.xpose.msra.mxu0 0.0
    %730 = vmatprep.subr.mxu0 0.0
    %731 = vmatpush1.xpose.msra.mxu0 0.0
    %732 = vmatprep.subr.mxu0 0.0
    %733 = vmatpush1.xpose.msra.mxu0 0.0
    %734 = vmatprep.subr.mxu0 0.0
    %735 = vmatpush1.xpose.msra.mxu0 0.0
    %736 = vmatprep.subr.mxu0 0.0
    %737 = vmatpush1.xpose.msra.mxu0 0.0
    %738 = vmatprep.subr.mxu0 0.0
    %739 = vmatpush1.xpose.msra.mxu0 0.0
    %740 = vmatprep.subr.mxu0 0.0
    %741 = vmatpush1.xpose.msra.mxu0 0.0
    %742 = vmatprep.subr.mxu0 0.0
    %743 = vmatpush1.xpose.msra.mxu0 0.0
    %744 = vmatprep.subr.mxu0 0.0
    %745 = vmatpush1.xpose.msra.mxu0 0.0
    %746 = vmatprep.subr.mxu0 0.0
    %747 = vmatpush1.xpose.msra.mxu0 0.0
    %748 = vmatprep.subr.mxu0 0.0
    %749 = vmatpush1.xpose.msra.mxu0 0.0
    %750 = vmatprep.subr.mxu0 0.0
    %751 = vmatpush1.xpose.msra.mxu0 0.0
    %752 = vmatprep.subr.mxu0 0.0
    %753 = vmatpush1.xpose.msra.mxu0 0.0
    %754 = vmatprep.subr.mxu0 0.0
    %755 = vmatpush1.xpose.msra.mxu0 0.0
    %756 = vmatprep.subr.mxu0 0.0
    %757 = vmatpush1.xpose.msra.mxu0 0.0
    %758 = vmatprep.subr.mxu0 0.0
    %759 = vmatpush1.xpose.msra.mxu0 0.0
    %760 = vmatprep.subr.mxu0 0.0
    %761 = vmatpush1.xpose.msra.mxu0 0.0
    %762 = vmatprep.subr.mxu0 0.0
    %763 = vmatpush1.xpose.msra.mxu0 0.0
    %764 = vmatprep.subr.mxu0 0.0
    %765 = vmatpush1.xpose.msra.mxu0 0.0
    %766 = vmatprep.subr.mxu0 0.0
    %767 = vmatpush1.xpose.msra.mxu0 0.0
    %768 = vmatprep.subr.mxu0 0.0
    %769 = vmatpush1.xpose.msra.mxu0 0.0
    %770 = vmatprep.subr.mxu0 0.0
    %771 = vmatpush1.xpose.msra.mxu0 0.0
    %772 = vmatprep.subr.mxu0 0.0
    %773 = vmatpush1.xpose.msra.mxu0 0.0
    %774 = vmatprep.mubr.f32.mxu0 %v153
    %775 = vmatmul.mubr.f32.gmra.mrb[0].mxu0 %v151
    %v776 = vpop.f32.mrb[0].mxu0
    %v777 = vadd.f32 %v707, %v776
    %v778 = vpop.f32.mrb[0].mxu0
    %779 = vdwg.mxu0
    %780 = vmatprep.subr.mxu0 %v46
    %781 = vmatpush1.xpose.msra.mxu0 %v45
    %782 = vmatprep.subr.mxu0 %v71
    %783 = vmatpush1.xpose.msra.mxu0 %v70
    %784 = vmatprep.subr.mxu0 0.0
    %785 = vmatpush1.xpose.msra.mxu0 0.0
    %786 = vmatprep.subr.mxu0 0.0
    %787 = vmatpush1.xpose.msra.mxu0 0.0
    %788 = vmatprep.subr.mxu0 0.0
    %789 = vmatpush1.xpose.msra.mxu0 0.0
    %790 = vmatprep.subr.mxu0 0.0
    %791 = vmatpush1.xpose.msra.mxu0 0.0
    %792 = vmatprep.subr.mxu0 0.0
    %793 = vmatpush1.xpose.msra.mxu0 0.0
    %794 = vmatprep.subr.mxu0 0.0
    %795 = vmatpush1.xpose.msra.mxu0 0.0
    %796 = vmatprep.subr.mxu0 0.0
    %797 = vmatpush1.xpose.msra.mxu0 0.0
    %798 = vmatprep.subr.mxu0 0.0
    %799 = vmatpush1.xpose.msra.mxu0 0.0
    %800 = vmatprep.subr.mxu0 0.0
    %801 = vmatpush1.xpose.msra.mxu0 0.0
    %802 = vmatprep.subr.mxu0 0.0
    %803 = vmatpush1.xpose.msra.mxu0 0.0
    %804 = vmatprep.subr.mxu0 0.0
    %805 = vmatpush1.xpose.msra.mxu0 0.0
    %806 = vmatprep.subr.mxu0 0.0
    %807 = vmatpush1.xpose.msra.mxu0 0.0
    %808 = vmatprep.subr.mxu0 0.0
    %809 = vmatpush1.xpose.msra.mxu0 0.0
    %810 = vmatprep.subr.mxu0 0.0
    %811 = vmatpush1.xpose.msra.mxu0 0.0
    %812 = vmatprep.subr.mxu0 0.0
    %813 = vmatpush1.xpose.msra.mxu0 0.0
    %814 = vmatprep.subr.mxu0 0.0
    %815 = vmatpush1.xpose.msra.mxu0 0.0
    %816 = vmatprep.subr.mxu0 0.0
    %817 = vmatpush1.xpose.msra.mxu0 0.0
    %818 = vmatprep.subr.mxu0 0.0
    %819 = vmatpush1.xpose.msra.mxu0 0.0
    %820 = vmatprep.subr.mxu0 0.0
    %821 = vmatpush1.xpose.msra.mxu0 0.0
    %822 = vmatprep.subr.mxu0 0.0
    %823 = vmatpush1.xpose.msra.mxu0 0.0
    %824 = vmatprep.subr.mxu0 0.0
    %825 = vmatpush1.xpose.msra.mxu0 0.0
    %826 = vmatprep.subr.mxu0 0.0
    %827 = vmatpush1.xpose.msra.mxu0 0.0
    %828 = vmatprep.subr.mxu0 0.0
    %829 = vmatpush1.xpose.msra.mxu0 0.0
    %830 = vmatprep.subr.mxu0 0.0
    %831 = vmatpush1.xpose.msra.mxu0 0.0
    %832 = vmatprep.subr.mxu0 0.0
    %833 = vmatpush1.xpose.msra.mxu0 0.0
    %834 = vmatprep.subr.mxu0 0.0
    %835 = vmatpush1.xpose.msra.mxu0 0.0
    %836 = vmatprep.subr.mxu0 0.0
    %837 = vmatpush1.xpose.msra.mxu0 0.0
    %838 = vmatprep.subr.mxu0 0.0
    %839 = vmatpush1.xpose.msra.mxu0 0.0
    %840 = vmatprep.subr.mxu0 0.0
    %841 = vmatpush1.xpose.msra.mxu0 0.0
    %842 = vmatprep.subr.mxu0 0.0
    %843 = vmatpush1.xpose.msra.mxu0 0.0
    %844 = vmatprep.mubr.f32.mxu0 %v169
    %845 = vmatmul.mubr.f32.gmra.mrb[0].mxu0 %v161
    %v846 = vpop.f32.mrb[0].mxu0
    %v847 = vadd.f32 %v777, %v846
    %v848 = vpop.f32.mrb[0].mxu0
    %849 = vdwg.mxu0
    %850 = vmatprep.subr.mxu0 %v48
    %851 = vmatpush1.xpose.msra.mxu0 %v47
    %852 = vmatprep.subr.mxu0 %v73
    %853 = vmatpush1.xpose.msra.mxu0 %v72
    %854 = vmatprep.subr.mxu0 0.0
    %855 = vmatpush1.xpose.msra.mxu0 0.0
    %856 = vmatprep.subr.mxu0 0.0
    %857 = vmatpush1.xpose.msra.mxu0 0.0
    %858 = vmatprep.subr.mxu0 0.0
    %859 = vmatpush1.xpose.msra.mxu0 0.0
    %860 = vmatprep.subr.mxu0 0.0
    %861 = vmatpush1.xpose.msra.mxu0 0.0
    %862 = vmatprep.subr.mxu0 0.0
    %863 = vmatpush1.xpose.msra.mxu0 0.0
    %864 = vmatprep.subr.mxu0 0.0
    %865 = vmatpush1.xpose.msra.mxu0 0.0
    %866 = vmatprep.subr.mxu0 0.0
    %867 = vmatpush1.xpose.msra.mxu0 0.0
    %868 = vmatprep.subr.mxu0 0.0
    %869 = vmatpush1.xpose.msra.mxu0 0.0
    %870 = vmatprep.subr.mxu0 0.0
    %871 = vmatpush1.xpose.msra.mxu0 0.0
    %872 = vmatprep.subr.mxu0 0.0
    %873 = vmatpush1.xpose.msra.mxu0 0.0
    %874 = vmatprep.subr.mxu0 0.0
    %875 = vmatpush1.xpose.msra.mxu0 0.0
    %876 = vmatprep.subr.mxu0 0.0
    %877 = vmatpush1.xpose.msra.mxu0 0.0
    %878 = vmatprep.subr.mxu0 0.0
    %879 = vmatpush1.xpose.msra.mxu0 0.0
    %880 = vmatprep.subr.mxu0 0.0
    %881 = vmatpush1.xpose.msra.mxu0 0.0
    %882 = vmatprep.subr.mxu0 0.0
    %883 = vmatpush1.xpose.msra.mxu0 0.0
    %884 = vmatprep.subr.mxu0 0.0
    %885 = vmatpush1.xpose.msra.mxu0 0.0
    %886 = vmatprep.subr.mxu0 0.0
    %887 = vmatpush1.xpose.msra.mxu0 0.0
    %888 = vmatprep.subr.mxu0 0.0
    %889 = vmatpush1.xpose.msra.mxu0 0.0
    %890 = vmatprep.subr.mxu0 0.0
    %891 = vmatpush1.xpose.msra.mxu0 0.0
    %892 = vmatprep.subr.mxu0 0.0
    %893 = vmatpush1.xpose.msra.mxu0 0.0
    %894 = vmatprep.subr.mxu0 0.0
    %895 = vmatpush1.xpose.msra.mxu0 0.0
    %896 = vmatprep.subr.mxu0 0.0
    %897 = vmatpush1.xpose.msra.mxu0 0.0
    %898 = vmatprep.subr.mxu0 0.0
    %899 = vmatpush1.xpose.msra.mxu0 0.0
    %900 = vmatprep.subr.mxu0 0.0
    %901 = vmatpush1.xpose.msra.mxu0 0.0
    %902 = vmatprep.subr.mxu0 0.0
    %903 = vmatpush1.xpose.msra.mxu0 0.0
    %904 = vmatprep.subr.mxu0 0.0
    %905 = vmatpush1.xpose.msra.mxu0 0.0
    %906 = vmatprep.subr.mxu0 0.0
    %907 = vmatpush1.xpose.msra.mxu0 0.0
    %908 = vmatprep.subr.mxu0 0.0
    %909 = vmatpush1.xpose.msra.mxu0 0.0
    %910 = vmatprep.subr.mxu0 0.0
    %911 = vmatpush1.xpose.msra.mxu0 0.0
    %912 = vmatprep.subr.mxu0 0.0
    %913 = vmatpush1.xpose.msra.mxu0 0.0
    %914 = vmatprep.mubr.f32.mxu0 %v170
    %915 = vmatmul.mubr.f32.gmra.mrb[0].mxu0 %v168
    %v916 = vpop.f32.mrb[0].mxu0
    %v917 = vadd.f32 %v847, %v916
    %v918 = vpop.f32.mrb[0].mxu0
    %919 = vdwg.mxu0
    %920 = vmatprep.subr.mxu0 %v50
    %921 = vmatpush1.xpose.msra.mxu0 %v49
    %922 = vmatprep.subr.mxu0 %v75
    %923 = vmatpush1.xpose.msra.mxu0 %v74
    %924 = vmatprep.subr.mxu0 0.0
    %925 = vmatpush1.xpose.msra.mxu0 0.0
    %926 = vmatprep.subr.mxu0 0.0
    %927 = vmatpush1.xpose.msra.mxu0 0.0
    %928 = vmatprep.subr.mxu0 0.0
    %929 = vmatpush1.xpose.msra.mxu0 0.0
    %930 = vmatprep.subr.mxu0 0.0
    %931 = vmatpush1.xpose.msra.mxu0 0.0
    %932 = vmatprep.subr.mxu0 0.0
    %933 = vmatpush1.xpose.msra.mxu0 0.0
    %934 = vmatprep.subr.mxu0 0.0
    %935 = vmatpush1.xpose.msra.mxu0 0.0
    %936 = vmatprep.subr.mxu0 0.0
    %937 = vmatpush1.xpose.msra.mxu0 0.0
    %938 = vmatprep.subr.mxu0 0.0
    %939 = vmatpush1.xpose.msra.mxu0 0.0
    %940 = vmatprep.subr.mxu0 0.0
    %941 = vmatpush1.xpose.msra.mxu0 0.0
    %942 = vmatprep.subr.mxu0 0.0
    %943 = vmatpush1.xpose.msra.mxu0 0.0
    %944 = vmatprep.subr.mxu0 0.0
    %945 = vmatpush1.xpose.msra.mxu0 0.0
    %946 = vmatprep.subr.mxu0 0.0
    %947 = vmatpush1.xpose.msra.mxu0 0.0
    %948 = vmatprep.subr.mxu0 0.0
    %949 = vmatpush1.xpose.msra.mxu0 0.0
    %950 = vmatprep.subr.mxu0 0.0
    %951 = vmatpush1.xpose.msra.mxu0 0.0
    %952 = vmatprep.subr.mxu0 0.0
    %953 = vmatpush1.xpose.msra.mxu0 0.0
    %954 = vmatprep.subr.mxu0 0.0
    %955 = vmatpush1.xpose.msra.mxu0 0.0
    %956 = vmatprep.subr.mxu0 0.0
    %957 = vmatpush1.xpose.msra.mxu0 0.0
    %958 = vmatprep.subr.mxu0 0.0
    %959 = vmatpush1.xpose.msra.mxu0 0.0
    %960 = vmatprep.subr.mxu0 0.0
    %961 = vmatpush1.xpose.msra.mxu0 0.0
    %962 = vmatprep.subr.mxu0 0.0
    %963 = vmatpush1.xpose.msra.mxu0 0.0
    %964 = vmatprep.subr.mxu0 0.0
    %965 = vmatpush1.xpose.msra.mxu0 0.0
    %966 = vmatprep.subr.mxu0 0.0
    %967 = vmatpush1.xpose.msra.mxu0 0.0
    %968 = vmatprep.subr.mxu0 0.0
    %969 = vmatpush1.xpose.msra.mxu0 0.0
    %970 = vmatprep.subr.mxu0 0.0
    %971 = vmatpush1.xpose.msra.mxu0 0.0
    %972 = vmatprep.subr.mxu0 0.0
    %973 = vmatpush1.xpose.msra.mxu0 0.0
    %974 = vmatprep.subr.mxu0 0.0
    %975 = vmatpush1.xpose.msra.mxu0 0.0
    %976 = vmatprep.subr.mxu0 0.0
    %977 = vmatpush1.xpose.msra.mxu0 0.0
    %978 = vmatprep.subr.mxu0 0.0
    %979 = vmatpush1.xpose.msra.mxu0 0.0
    %980 = vmatprep.subr.mxu0 0.0
    %981 = vmatpush1.xpose.msra.mxu0 0.0
    %982 = vmatprep.subr.mxu0 0.0
    %983 = vmatpush1.xpose.msra.mxu0 0.0
    %984 = vmatprep.mubr.f32.mxu0 %v186
    %985 = vmatmul.mubr.f32.gmra.mrb[0].mxu0 %v178
    %v986 = vpop.f32.mrb[0].mxu0
    %v987 = vadd.f32 %v917, %v986
    %v988 = vpop.f32.mrb[0].mxu0
    %989 = vdwg.mxu0
    %990 = vmatprep.subr.mxu0 %v52
    %991 = vmatpush1.xpose.msra.mxu0 %v51
    %992 = vmatprep.subr.mxu0 %v77
    %993 = vmatpush1.xpose.msra.mxu0 %v76
    %994 = vmatprep.subr.mxu0 0.0
    %995 = vmatpush1.xpose.msra.mxu0 0.0
    %996 = vmatprep.subr.mxu0 0.0
    %997 = vmatpush1.xpose.msra.mxu0 0.0
    %998 = vmatprep.subr.mxu0 0.0
    %999 = vmatpush1.xpose.msra.mxu0 0.0
    %1000 = vmatprep.subr.mxu0 0.0
    %1001 = vmatpush1.xpose.msra.mxu0 0.0
    %1002 = vmatprep.subr.mxu0 0.0
    %1003 = vmatpush1.xpose.msra.mxu0 0.0
    %1004 = vmatprep.subr.mxu0 0.0
    %1005 = vmatpush1.xpose.msra.mxu0 0.0
    %1006 = vmatprep.subr.mxu0 0.0
    %1007 = vmatpush1.xpose.msra.mxu0 0.0
    %1008 = vmatprep.subr.mxu0 0.0
    %1009 = vmatpush1.xpose.msra.mxu0 0.0
    %1010 = vmatprep.subr.mxu0 0.0
    %1011 = vmatpush1.xpose.msra.mxu0 0.0
    %1012 = vmatprep.subr.mxu0 0.0
    %1013 = vmatpush1.xpose.msra.mxu0 0.0
    %1014 = vmatprep.subr.mxu0 0.0
    %1015 = vmatpush1.xpose.msra.mxu0 0.0
    %1016 = vmatprep.subr.mxu0 0.0
    %1017 = vmatpush1.xpose.msra.mxu0 0.0
    %1018 = vmatprep.subr.mxu0 0.0
    %1019 = vmatpush1.xpose.msra.mxu0 0.0
    %1020 = vmatprep.subr.mxu0 0.0
    %1021 = vmatpush1.xpose.msra.mxu0 0.0
    %1022 = vmatprep.subr.mxu0 0.0
    %1023 = vmatpush1.xpose.msra.mxu0 0.0
    %1024 = vmatprep.subr.mxu0 0.0
    %1025 = vmatpush1.xpose.msra.mxu0 0.0
    %1026 = vmatprep.subr.mxu0 0.0
    %1027 = vmatpush1.xpose.msra.mxu0 0.0
    %1028 = vmatprep.subr.mxu0 0.0
    %1029 = vmatpush1.xpose.msra.mxu0 0.0
    %1030 = vmatprep.subr.mxu0 0.0
    %1031 = vmatpush1.xpose.msra.mxu0 0.0
    %1032 = vmatprep.subr.mxu0 0.0
    %1033 = vmatpush1.xpose.msra.mxu0 0.0
    %1034 = vmatprep.subr.mxu0 0.0
    %1035 = vmatpush1.xpose.msra.mxu0 0.0
    %1036 = vmatprep.subr.mxu0 0.0
    %1037 = vmatpush1.xpose.msra.mxu0 0.0
    %1038 = vmatprep.subr.mxu0 0.0
    %1039 = vmatpush1.xpose.msra.mxu0 0.0
    %1040 = vmatprep.subr.mxu0 0.0
    %1041 = vmatpush1.xpose.msra.mxu0 0.0
    %1042 = vmatprep.subr.mxu0 0.0
    %1043 = vmatpush1.xpose.msra.mxu0 0.0
    %1044 = vmatprep.subr.mxu0 0.0
    %1045 = vmatpush1.xpose.msra.mxu0 0.0
    %1046 = vmatprep.subr.mxu0 0.0
    %1047 = vmatpush1.xpose.msra.mxu0 0.0
    %1048 = vmatprep.subr.mxu0 0.0
    %1049 = vmatpush1.xpose.msra.mxu0 0.0
    %1050 = vmatprep.subr.mxu0 0.0
    %1051 = vmatpush1.xpose.msra.mxu0 0.0
    %1052 = vmatprep.subr.mxu0 0.0
    %1053 = vmatpush1.xpose.msra.mxu0 0.0
    %1054 = vmatprep.mubr.f32.mxu0 %v187
    %1055 = vmatmul.mubr.f32.gmra.mrb[0].mxu0 %v185
    %v1056 = vpop.f32.mrb[0].mxu0
    %v1057 = vadd.f32 %v987, %v1056
    %v1058 = vpop.f32.mrb[0].mxu0
    %1059 = vdwg.mxu0
    %1060 = vmatprep.subr.mxu0 0.0
    %1061 = vmatpush1.xpose.msra.mxu0 %v53
    %1062 = vmatprep.subr.mxu0 0.0
    %1063 = vmatpush1.xpose.msra.mxu0 %v78
    %1064 = vmatprep.subr.mxu0 0.0
    %1065 = vmatpush1.xpose.msra.mxu0 0.0
    %1066 = vmatprep.subr.mxu0 0.0
    %1067 = vmatpush1.xpose.msra.mxu0 0.0
    %1068 = vmatprep.subr.mxu0 0.0
    %1069 = vmatpush1.xpose.msra.mxu0 0.0
    %1070 = vmatprep.subr.mxu0 0.0
    %1071 = vmatpush1.xpose.msra.mxu0 0.0
    %1072 = vmatprep.subr.mxu0 0.0
    %1073 = vmatpush1.xpose.msra.mxu0 0.0
    %1074 = vmatprep.subr.mxu0 0.0
    %1075 = vmatpush1.xpose.msra.mxu0 0.0
    %1076 = vmatprep.subr.mxu0 0.0
    %1077 = vmatpush1.xpose.msra.mxu0 0.0
    %1078 = vmatprep.subr.mxu0 0.0
    %1079 = vmatpush1.xpose.msra.mxu0 0.0
    %1080 = vmatprep.subr.mxu0 0.0
    %1081 = vmatpush1.xpose.msra.mxu0 0.0
    %1082 = vmatprep.subr.mxu0 0.0
    %1083 = vmatpush1.xpose.msra.mxu0 0.0
    %1084 = vmatprep.subr.mxu0 0.0
    %1085 = vmatpush1.xpose.msra.mxu0 0.0
    %1086 = vmatprep.subr.mxu0 0.0
    %1087 = vmatpush1.xpose.msra.mxu0 0.0
    %1088 = vmatprep.subr.mxu0 0.0
    %1089 = vmatpush1.xpose.msra.mxu0 0.0
    %1090 = vmatprep.subr.mxu0 0.0
    %1091 = vmatpush1.xpose.msra.mxu0 0.0
    %1092 = vmatprep.subr.mxu0 0.0
    %1093 = vmatpush1.xpose.msra.mxu0 0.0
    %1094 = vmatprep.subr.mxu0 0.0
    %1095 = vmatpush1.xpose.msra.mxu0 0.0
    %1096 = vmatprep.subr.mxu0 0.0
    %1097 = vmatpush1.xpose.msra.mxu0 0.0
    %1098 = vmatprep.subr.mxu0 0.0
    %1099 = vmatpush1.xpose.msra.mxu0 0.0
    %1100 = vmatprep.subr.mxu0 0.0
    %1101 = vmatpush1.xpose.msra.mxu0 0.0
    %1102 = vmatprep.subr.mxu0 0.0
    %1103 = vmatpush1.xpose.msra.mxu0 0.0
    %1104 = vmatprep.subr.mxu0 0.0
    %1105 = vmatpush1.xpose.msra.mxu0 0.0
    %1106 = vmatprep.subr.mxu0 0.0
    %1107 = vmatpush1.xpose.msra.mxu0 0.0
    %1108 = vmatprep.subr.mxu0 0.0
    %1109 = vmatpush1.xpose.msra.mxu0 0.0
    %1110 = vmatprep.subr.mxu0 0.0
    %1111 = vmatpush1.xpose.msra.mxu0 0.0
    %1112 = vmatprep.subr.mxu0 0.0
    %1113 = vmatpush1.xpose.msra.mxu0 0.0
    %1114 = vmatprep.subr.mxu0 0.0
    %1115 = vmatpush1.xpose.msra.mxu0 0.0
    %1116 = vmatprep.subr.mxu0 0.0
    %1117 = vmatpush1.xpose.msra.mxu0 0.0
    %1118 = vmatprep.subr.mxu0 0.0
    %1119 = vmatpush1.xpose.msra.mxu0 0.0
    %1120 = vmatprep.subr.mxu0 0.0
    %1121 = vmatpush1.xpose.msra.mxu0 0.0
    %1122 = vmatprep.subr.mxu0 0.0
    %1123 = vmatpush1.xpose.msra.mxu0 0.0
    %1124 = vmatprep.mubr.f32.mxu0 0.0
    %1125 = vmatmul.mubr.f32.gmra.mrb[0].mxu0 %v194
    %v1126 = vpop.f32.mrb[0].mxu0
    %v1127 = vadd.f32 %v1057, %v1126
    %v1128 = vpop.f32.mrb[0].mxu0
    %1129 = vdwg.mxu0
    %v1130 = vadd.f32 %v21, %v1127
    %vm1131 = vcmask 74752
    %1132 = vst.msk [vmem:[#allocation2] sm:$0x3] %vm1131, %v1130
    // Predicated region
    $region18: #{forward.3} parent=1 // pred_check
      %p1133 = pneg %p15
    $region19: #{forward.3} parent=1 // pred_check_branch
      %1135 = sbr.rel (%p1133) target = $region21
    $region20: #{forward.3} parent=1 // pred_region
      %v1136 = vld [vmem:[#allocation2] sm:$0x3]
      %v1137 = vld [vmem:[%s2] sm:$0x1]
      %v1139 = vlaneseq
      %v1140 = vshrl.u32 %v1139, 7
      %v1141 = vsub.s32 0, %v1140
      %v1142 = vrot.slane %v1137, %v1141
      %v1144 = vadd.f32 %v1136, %v1142
      %1145 = vst.msk [vmem:[#allocation3] sm:$0x3] %vm1131, %v1144
    $region21: #{forward.3} parent=1 // pred_fallthru
      _
    // Predicated region
    $region22: #{forward.3} parent=1 // pred_check
      _
    $region23: #{forward.3} parent=1 // pred_check_branch
      %1147 = sbr.rel (0) target = $region25
    $region24: #{forward.3} parent=1 // pred_region
      %s1149 = ssub.s32 32, 32
      %1150 = vsyncadd [#allocation4], %s1149
      %s1152 = sshll.u32 [#allocation3], 4
      %s1153 = int_to_ptr.vmem [resolvable:$true] %s1152
      %1155 = dma.vmem_to_hbm [thread:$0]  %s1153, 32, %s3, [#allocation4]
    $region25: #{forward.3} parent=1 // pred_fallthru
      _
    // Predicated region
    $region26: #{forward.3} parent=1 // pred_check
      _
    $region27: #{forward.3} parent=1 // pred_check_branch
      %1157 = sbr.rel (0) target = $region29
    $region28: #{forward.3} parent=1 // pred_region
      %1158 = dma.done [#allocation4], 32
    $region29: #{forward.3} parent=1 // pred_fallthru
      _
    %1159 = vsyncpa [#allocation4], 1

// kernel: forward.2
$region0: #{forward.2}
  #allocation0 [shape = 'u32[]', space=smem, size = 0x4, offset = 0x4, fixed_abs, tag = 'smem constant byte address 0x4 - core index']
  #allocation1 [shape = 'u32[144,128]{1,0:T(1,128)}', space=vmem, size = 0x12000, scoped, tag = 'internal scratch']
  #allocation2 [shape = 'f32[20,20,4]{2,1,0:T(8,128)}', space=vmem, size = 0x3c000, scoped, tag = 'scratch operand']
  #allocation3 [shape = 'f32[18,18,16]{2,1,0:T(8,128)}', space=vmem, size = 0x36000, scoped, tag = 'scratch operand']
  #allocation4 [shape = 'f32[13,13,16]{2,1,0:T(8,128)}', space=vmem, size = 0x1a000, scoped, tag = 'scratch operand']
  #allocation5 [shape = 'f32[11,11,128]{2,1,0:T(8,128)}', space=vmem, size = 0x16000, scoped, tag = 'scratch operand']
  #allocation6 [shape = 'f32[18,36]{1,0:T(8,128)}', space=vmem, size = 0x3000, scoped, tag = 'scratch operand']
  #allocation7 [shape = 'f32[11,144]{1,0:T(8,128)}', space=vmem, size = 0x4000, scoped, tag = 'scratch operand']
  %s0 = inlined_call_operand.vmem [shape: f32[2,16,16,4], index: 0, kind: input, shape index: {}]
  %s1 = inlined_call_operand.vmem [shape: f32[1,4], index: 1, kind: input, shape index: {}]
  %s2 = inlined_call_operand.vmem [shape: f32[1,4], index: 2, kind: input, shape index: {}]
  %s3 = inlined_call_operand.vmem [shape: f32[36,16], index: 3, kind: input, shape index: {}]
  %s4 = inlined_call_operand.vmem [shape: f32[1,16], index: 4, kind: input, shape index: {}]
  %s5 = inlined_call_operand.vmem [shape: f32[144,128], index: 5, kind: input, shape index: {}]
  %s6 = inlined_call_operand.vmem [shape: f32[1,128], index: 6, kind: input, shape index: {}]
  %s7 = inlined_call_operand.vmem [shape: f32[9,18], index: 7, kind: input, shape index: {}]
  %s8 = inlined_call_operand.vmem [shape: f32[9,18], index: 8, kind: input, shape index: {}]
  %s9 = inlined_call_operand.vmem [shape: f32[5,11], index: 9, kind: input, shape index: {}]
  %s10 = inlined_call_operand.vmem [shape: f32[5,11], index: 10, kind: input, shape index: {}]
  %s11 = inlined_call_operand.vmem [shape: f32[2,5,5,128], index: 11, kind: output, shape index: {}]
  %s12 = sld [smem:[#allocation0]]
  $region105: #{forward.2} parent=0
    _
  %s14 = ssub.s32 1, %s12
  %s15 = scalar_select 0, %s14, %s12
  loop: start=0, step=1, limit=4
  $region2: #{forward.2} parent=0 // loop_pre_header
    _
  $region3: #{forward.2} parent=0 // loop_header
    %s17 = sphi 0, %s21
    %p18 = scmp.ge.s32.totalorder %s17, 4
    %s27 = sphi 0, %s29
    %s30 = sphi 0, %s27
    %s31 = sphi 0, %s30
    %s47 = sphi 0, %s31
    %s51 = sphi 0, %s51
    %s53 = sphi 0, %s51
    %s54 = sphi 0, %s53
    %s68 = sphi 0, %s54
    %s72 = sphi 0, %s72
    %s74 = sphi 0, %s72
    %s75 = sphi 0, %s74
    %s89 = sphi 0, %s75
    %s93 = sphi 0, %s93
    %s95 = sphi 0, %s93
    %s96 = sphi 0, %s95
    %s110 = sphi 0, %s96
    %s114 = sphi 0, %s114
    %s116 = sphi 0, %s114
    %s117 = sphi 0, %s116
    %s131 = sphi 0, %s117
    %s135 = sphi 0, %s135
    %s137 = sphi 0, %s135
    %s138 = sphi 0, %s137
    %s152 = sphi 0, %s138
    %s156 = sphi 0, %s156
    %s158 = sphi 0, %s156
    %s159 = sphi 0, %s158
    %s173 = sphi 0, %s159
    %s177 = sphi 0, %s177
    %s179 = sphi 0, %s177
    %s180 = sphi 0, %s179
    %s194 = sphi 0, %s180
    %s198 = sphi 0, %s198
    %s200 = sphi 0, %s198
    %s201 = sphi 0, %s200
    %s215 = sphi 0, %s201
    %s219 = sphi 0, %s219
    %s221 = sphi 0, %s219
    %s222 = sphi 0, %s221
    %s236 = sphi 0, %s222
    %s240 = sphi 0, %s240
    %s242 = sphi 0, %s240
    %s243 = sphi 0, %s242
    %s257 = sphi 0, %s243
    %s263 = sphi 0, %s265
    %s266 = sphi 0, %s263
    %s267 = sphi 0, %s266
    %s283 = sphi 0, %s267
  $region4: #{forward.2} parent=0 // loop_header_branch
    %20 = sbr.rel (%p18) target = $region8
  $region5: #{forward.2} parent=0 // loop_body
    %s22 = ssub.s32 %s17, 1
    %s23 = ssub.s32 %s17, 2
    %s24 = sadd.s32 %s17, 1
    %s25 = ssub.s32 %s17, %s24
    %p26 = scmp.eq.s32.totalorder %s25, 0
    %s28 = sadd.s32 %s27, 1
    %s29 = scalar_select %p26, %s27, %s28
    %p32 = pneg %p26
    %p33 = scmp.eq.s32.totalorder %s17, 1
    %p34 = por %p32, %p33
    %p35 = scmp.ne.s32.totalorder %s27, %s30
    %p36 = scmp.eq.s32.totalorder %s17, 0
    %p37 = por %p35, %p36
    %p38 = scmp.ne.s32.totalorder %s27, %s30
    %p39 = scmp.eq.s32.totalorder %s22, 1
    %p40 = por %p38, %p39
    %p41 = scmp.ne.s32.totalorder %s30, %s31
    %p42 = scmp.eq.s32.totalorder %s22, 0
    %p43 = por %p41, %p42
    %p44 = scmp.ne.s32.totalorder %s30, %s31
    %p45 = scmp.eq.s32.totalorder %s23, 1
    %p46 = por %p44, %p45
    %p48 = scmp.ne.s32.totalorder %s31, %s47
    %p49 = scmp.eq.s32.totalorder %s23, 0
    %p50 = por %p48, %p49
    %s52 = sadd.s32 %s51, 1
    %p55 = scmp.eq.s32.totalorder %s17, 1
    %p56 = scmp.ne.s32.totalorder %s51, %s53
    %p57 = scmp.eq.s32.totalorder %s17, 0
    %p58 = por %p56, %p57
    %p59 = scmp.ne.s32.totalorder %s51, %s53
    %p60 = scmp.eq.s32.totalorder %s22, 1
    %p61 = por %p59, %p60
    %p62 = scmp.ne.s32.totalorder %s53, %s54
    %p63 = scmp.eq.s32.totalorder %s22, 0
    %p64 = por %p62, %p63
    %p65 = scmp.ne.s32.totalorder %s53, %s54
    %p66 = scmp.eq.s32.totalorder %s23, 1
    %p67 = por %p65, %p66
    %p69 = scmp.ne.s32.totalorder %s54, %s68
    %p70 = scmp.eq.s32.totalorder %s23, 0
    %p71 = por %p69, %p70
    %s73 = sadd.s32 %s72, 1
    %p76 = scmp.eq.s32.totalorder %s17, 1
    %p77 = scmp.ne.s32.totalorder %s72, %s74
    %p78 = scmp.eq.s32.totalorder %s17, 0
    %p79 = por %p77, %p78
    %p80 = scmp.ne.s32.totalorder %s72, %s74
    %p81 = scmp.eq.s32.totalorder %s22, 1
    %p82 = por %p80, %p81
    %p83 = scmp.ne.s32.totalorder %s74, %s75
    %p84 = scmp.eq.s32.totalorder %s22, 0
    %p85 = por %p83, %p84
    %p86 = scmp.ne.s32.totalorder %s74, %s75
    %p87 = scmp.eq.s32.totalorder %s23, 1
    %p88 = por %p86, %p87
    %p90 = scmp.ne.s32.totalorder %s75, %s89
    %p91 = scmp.eq.s32.totalorder %s23, 0
    %p92 = por %p90, %p91
    %s94 = sadd.s32 %s93, 1
    %p97 = scmp.eq.s32.totalorder %s17, 1
    %p98 = scmp.ne.s32.totalorder %s93, %s95
    %p99 = scmp.eq.s32.totalorder %s17, 0
    %p100 = por %p98, %p99
    %p101 = scmp.ne.s32.totalorder %s93, %s95
    %p102 = scmp.eq.s32.totalorder %s22, 1
    %p103 = por %p101, %p102
    %p104 = scmp.ne.s32.totalorder %s95, %s96
    %p105 = scmp.eq.s32.totalorder %s22, 0
    %p106 = por %p104, %p105
    %p107 = scmp.ne.s32.totalorder %s95, %s96
    %p108 = scmp.eq.s32.totalorder %s23, 1
    %p109 = por %p107, %p108
    %p111 = scmp.ne.s32.totalorder %s96, %s110
    %p112 = scmp.eq.s32.totalorder %s23, 0
    %p113 = por %p111, %p112
    %s115 = sadd.s32 %s114, 1
    %p118 = scmp.eq.s32.totalorder %s17, 1
    %p119 = scmp.ne.s32.totalorder %s114, %s116
    %p120 = scmp.eq.s32.totalorder %s17, 0
    %p121 = por %p119, %p120
    %p122 = scmp.ne.s32.totalorder %s114, %s116
    %p123 = scmp.eq.s32.totalorder %s22, 1
    %p124 = por %p122, %p123
    %p125 = scmp.ne.s32.totalorder %s116, %s117
    %p126 = scmp.eq.s32.totalorder %s22, 0
    %p127 = por %p125, %p126
    %p128 = scmp.ne.s32.totalorder %s116, %s117
    %p129 = scmp.eq.s32.totalorder %s23, 1
    %p130 = por %p128, %p129
    %p132 = scmp.ne.s32.totalorder %s117, %s131
    %p133 = scmp.eq.s32.totalorder %s23, 0
    %p134 = por %p132, %p133
    %s136 = sadd.s32 %s135, 1
    %p139 = scmp.eq.s32.totalorder %s17, 1
    %p140 = scmp.ne.s32.totalorder %s135, %s137
    %p141 = scmp.eq.s32.totalorder %s17, 0
    %p142 = por %p140, %p141
    %p143 = scmp.ne.s32.totalorder %s135, %s137
    %p144 = scmp.eq.s32.totalorder %s22, 1
    %p145 = por %p143, %p144
    %p146 = scmp.ne.s32.totalorder %s137, %s138
    %p147 = scmp.eq.s32.totalorder %s22, 0
    %p148 = por %p146, %p147
    %p149 = scmp.ne.s32.totalorder %s137, %s138
    %p150 = scmp.eq.s32.totalorder %s23, 1
    %p151 = por %p149, %p150
    %p153 = scmp.ne.s32.totalorder %s138, %s152
    %p154 = scmp.eq.s32.totalorder %s23, 0
    %p155 = por %p153, %p154
    %s157 = sadd.s32 %s156, 1
    %p160 = scmp.eq.s32.totalorder %s17, 1
    %p161 = scmp.ne.s32.totalorder %s156, %s158
    %p162 = scmp.eq.s32.totalorder %s17, 0
    %p163 = por %p161, %p162
    %p164 = scmp.ne.s32.totalorder %s156, %s158
    %p165 = scmp.eq.s32.totalorder %s22, 1
    %p166 = por %p164, %p165
    %p167 = scmp.ne.s32.totalorder %s158, %s159
    %p168 = scmp.eq.s32.totalorder %s22, 0
    %p169 = por %p167, %p168
    %p170 = scmp.ne.s32.totalorder %s158, %s159
    %p171 = scmp.eq.s32.totalorder %s23, 1
    %p172 = por %p170, %p171
    %p174 = scmp.ne.s32.totalorder %s159, %s173
    %p175 = scmp.eq.s32.totalorder %s23, 0
    %p176 = por %p174, %p175
    %s178 = sadd.s32 %s177, 1
    %p181 = scmp.eq.s32.totalorder %s17, 1
    %p182 = scmp.ne.s32.totalorder %s177, %s179
    %p183 = scmp.eq.s32.totalorder %s17, 0
    %p184 = por %p182, %p183
    %p185 = scmp.ne.s32.totalorder %s177, %s179
    %p186 = scmp.eq.s32.totalorder %s22, 1
    %p187 = por %p185, %p186
    %p188 = scmp.ne.s32.totalorder %s179, %s180
    %p189 = scmp.eq.s32.totalorder %s22, 0
    %p190 = por %p188, %p189
    %p191 = scmp.ne.s32.totalorder %s179, %s180
    %p192 = scmp.eq.s32.totalorder %s23, 1
    %p193 = por %p191, %p192
    %p195 = scmp.ne.s32.totalorder %s180, %s194
    %p196 = scmp.eq.s32.totalorder %s23, 0
    %p197 = por %p195, %p196
    %s199 = sadd.s32 %s198, 1
    %p202 = scmp.eq.s32.totalorder %s17, 1
    %p203 = scmp.ne.s32.totalorder %s198, %s200
    %p204 = scmp.eq.s32.totalorder %s17, 0
    %p205 = por %p203, %p204
    %p206 = scmp.ne.s32.totalorder %s198, %s200
    %p207 = scmp.eq.s32.totalorder %s22, 1
    %p208 = por %p206, %p207
    %p209 = scmp.ne.s32.totalorder %s200, %s201
    %p210 = scmp.eq.s32.totalorder %s22, 0
    %p211 = por %p209, %p210
    %p212 = scmp.ne.s32.totalorder %s200, %s201
    %p213 = scmp.eq.s32.totalorder %s23, 1
    %p214 = por %p212, %p213
    %p216 = scmp.ne.s32.totalorder %s201, %s215
    %p217 = scmp.eq.s32.totalorder %s23, 0
    %p218 = por %p216, %p217
    %s220 = sadd.s32 %s219, 1
    %p223 = scmp.eq.s32.totalorder %s17, 1
    %p224 = scmp.ne.s32.totalorder %s219, %s221
    %p225 = scmp.eq.s32.totalorder %s17, 0
    %p226 = por %p224, %p225
    %p227 = scmp.ne.s32.totalorder %s219, %s221
    %p228 = scmp.eq.s32.totalorder %s22, 1
    %p229 = por %p227, %p228
    %p230 = scmp.ne.s32.totalorder %s221, %s222
    %p231 = scmp.eq.s32.totalorder %s22, 0
    %p232 = por %p230, %p231
    %p233 = scmp.ne.s32.totalorder %s221, %s222
    %p234 = scmp.eq.s32.totalorder %s23, 1
    %p235 = por %p233, %p234
    %p237 = scmp.ne.s32.totalorder %s222, %s236
    %p238 = scmp.eq.s32.totalorder %s23, 0
    %p239 = por %p237, %p238
    %s241 = sadd.s32 %s240, 1
    %p244 = scmp.eq.s32.totalorder %s17, 1
    %p245 = scmp.ne.s32.totalorder %s240, %s242
    %p246 = scmp.eq.s32.totalorder %s17, 0
    %p247 = por %p245, %p246
    %p248 = scmp.ne.s32.totalorder %s240, %s242
    %p249 = scmp.eq.s32.totalorder %s22, 1
    %p250 = por %p248, %p249
    %p251 = scmp.ne.s32.totalorder %s242, %s243
    %p252 = scmp.eq.s32.totalorder %s22, 0
    %p253 = por %p251, %p252
    %p254 = scmp.ne.s32.totalorder %s242, %s243
    %p255 = scmp.eq.s32.totalorder %s23, 1
    %p256 = por %p254, %p255
    %p258 = scmp.ne.s32.totalorder %s243, %s257
    %p259 = scmp.eq.s32.totalorder %s23, 0
    %p260 = por %p258, %p259
    %s261 = ssub.s32 %s17, %s24
    %p262 = scmp.eq.s32.totalorder %s261, 0
    %s264 = sadd.s32 %s263, 1
    %s265 = scalar_select %p262, %s263, %s264
    %p268 = pneg %p262
    %p269 = scmp.eq.s32.totalorder %s17, 1
    %p270 = por %p268, %p269
    %p271 = scmp.ne.s32.totalorder %s263, %s266
    %p272 = scmp.eq.s32.totalorder %s17, 0
    %p273 = por %p271, %p272
    %p274 = scmp.ne.s32.totalorder %s263, %s266
    %p275 = scmp.eq.s32.totalorder %s22, 1
    %p276 = por %p274, %p275
    %p277 = scmp.ne.s32.totalorder %s266, %s267
    %p278 = scmp.eq.s32.totalorder %s22, 0
    %p279 = por %p277, %p278
    %p280 = scmp.ne.s32.totalorder %s266, %s267
    %p281 = scmp.eq.s32.totalorder %s23, 1
    %p282 = por %p280, %p281
    %p284 = scmp.ne.s32.totalorder %s267, %s283
    %p285 = scmp.eq.s32.totalorder %s23, 0
    %p286 = por %p284, %p285
    %p287 = scmp.le.s32.totalorder 1, %s17
    %p288 = scmp.lt.s32.totalorder %s17, 3
    %p289 = pnand %p287, %p288
    %p290 = pneg %p289
    // Predicated region
    $region9: #{forward.2} parent=5 // pred_check
      _
    $region10: #{forward.2} parent=5 // pred_check_branch
      %292 = sbr.rel (%p289) target = $region12
    $region11: #{forward.2} parent=5 // pred_region
      %s293 = ssub.s32 %s17, 1
      // Predicated region
      $region13: #{forward.2} parent=11 // pred_check
        %p294 = pneg %p64
      $region14: #{forward.2} parent=11 // pred_check_branch
        %296 = sbr.rel (%p294) target = $region16
      $region15: #{forward.2} parent=11 // pred_region
        _
      $region16: #{forward.2} parent=11 // pred_fallthru
        _
      // Predicated region
      $region17: #{forward.2} parent=11 // pred_check
        %p297 = pneg %p85
      $region18: #{forward.2} parent=11 // pred_check_branch
        %299 = sbr.rel (%p297) target = $region20
      $region19: #{forward.2} parent=11 // pred_region
        _
      $region20: #{forward.2} parent=11 // pred_fallthru
        _
      // Predicated region
      $region21: #{forward.2} parent=11 // pred_check
        %p300 = pneg %p106
      $region22: #{forward.2} parent=11 // pred_check_branch
        %302 = sbr.rel (%p300) target = $region24
      $region23: #{forward.2} parent=11 // pred_region
        _
      $region24: #{forward.2} parent=11 // pred_fallthru
        _
      // Predicated region
      $region25: #{forward.2} parent=11 // pred_check
        %p303 = pneg %p127
      $region26: #{forward.2} parent=11 // pred_check_branch
        %305 = sbr.rel (%p303) target = $region28
      $region27: #{forward.2} parent=11 // pred_region
        _
      $region28: #{forward.2} parent=11 // pred_fallthru
        _
      // Predicated region
      $region29: #{forward.2} parent=11 // pred_check
        %p306 = pneg %p148
      $region30: #{forward.2} parent=11 // pred_check_branch
        %308 = sbr.rel (%p306) target = $region32
      $region31: #{forward.2} parent=11 // pred_region
        _
      $region32: #{forward.2} parent=11 // pred_fallthru
        _
      // Predicated region
      $region33: #{forward.2} parent=11 // pred_check
        %p309 = pneg %p169
      $region34: #{forward.2} parent=11 // pred_check_branch
        %311 = sbr.rel (%p309) target = $region36
      $region35: #{forward.2} parent=11 // pred_region
        _
      $region36: #{forward.2} parent=11 // pred_fallthru
        _
      // Predicated region
      $region37: #{forward.2} parent=11 // pred_check
        %p312 = pneg %p190
      $region38: #{forward.2} parent=11 // pred_check_branch
        %314 = sbr.rel (%p312) target = $region40
      $region39: #{forward.2} parent=11 // pred_region
        _
      $region40: #{forward.2} parent=11 // pred_fallthru
        _
      // Predicated region
      $region41: #{forward.2} parent=11 // pred_check
        %p315 = pneg %p211
      $region42: #{forward.2} parent=11 // pred_check_branch
        %317 = sbr.rel (%p315) target = $region44
      $region43: #{forward.2} parent=11 // pred_region
        _
      $region44: #{forward.2} parent=11 // pred_fallthru
        _
      // Predicated region
      $region45: #{forward.2} parent=11 // pred_check
        %p318 = pneg %p232
      $region46: #{forward.2} parent=11 // pred_check_branch
        %320 = sbr.rel (%p318) target = $region48
      $region47: #{forward.2} parent=11 // pred_region
        _
      $region48: #{forward.2} parent=11 // pred_fallthru
        _
      // Predicated region
      $region49: #{forward.2} parent=11 // pred_check
        %p321 = pneg %p253
      $region50: #{forward.2} parent=11 // pred_check_branch
        %323 = sbr.rel (%p321) target = $region52
      $region51: #{forward.2} parent=11 // pred_region
        _
      $region52: #{forward.2} parent=11 // pred_fallthru
        _
    $region12: #{forward.2} parent=5 // pred_fallthru
      _
    %p324 = scmp.lt.s32.totalorder %s17, 2
    // Predicated region
    $region53: #{forward.2} parent=5 // pred_check
      %p325 = pneg %p324
    $region54: #{forward.2} parent=5 // pred_check_branch
      %327 = sbr.rel (%p325) target = $region56
    $region55: #{forward.2} parent=5 // pred_region
      // Predicated region
      $region57: #{forward.2} parent=55 // pred_check
        %p328 = pneg %p37
      $region58: #{forward.2} parent=55 // pred_check_branch
        %330 = sbr.rel (%p328) target = $region60
      $region59: #{forward.2} parent=55 // pred_region
        %p331 = scmp.lt.s32.totalorder %s17, 1
        %s332 = scalar_select %p331, %s17, 1
        %s333 = smul.addr %s332, 32
        %s334 = smul.addr %s333, 8
        %s335 = scalar_lea.vmem %s0, %s334
      $region60: #{forward.2} parent=55 // pred_fallthru
        _
    $region56: #{forward.2} parent=5 // pred_fallthru
      _
    %p336 = scmp.le.s32.totalorder 1, %s17
    %p337 = scmp.lt.s32.totalorder %s17, 3
    %p338 = pnand %p336, %p337
    %p339 = pneg %p338
    // Predicated region
    $region61: #{forward.2} parent=5 // pred_check
      _
    $region62: #{forward.2} parent=5 // pred_check_branch
      %341 = sbr.rel (%p338) target = $region64
    $region63: #{forward.2} parent=5 // pred_region
      %s342 = ssub.s32 %s17, 1
      %p343 = scmp.lt.s32.totalorder %s22, 1
      %s344 = scalar_select %p343, %s22, 1
      %s345 = smul.addr %s344, 32
      %s346 = smul.addr %s345, 8
      %s347 = scalar_lea.vmem %s0, %s346
      %p348 = pneg %p43
      %p349 = pneg %p40
      %p350 = pneg %p64
      %p351 = pneg %p61
      %p352 = pneg %p85
      %p353 = pneg %p82
      %p354 = pneg %p106
      %p355 = pneg %p103
      %p356 = pneg %p127
      %p357 = pneg %p124
      %p358 = pneg %p148
      %p359 = pneg %p145
      %p360 = pneg %p169
      %p361 = pneg %p166
      %p362 = pneg %p190
      %p363 = pneg %p187
      %p364 = pneg %p211
      %p365 = pneg %p208
      %p366 = pneg %p232
      %p367 = pneg %p229
      %p368 = pneg %p253
      %p369 = pneg %p250
      %p370 = pneg %p279
      %p371 = pneg %p276
      %p372 = scmp.lt.s32.totalorder %s22, 1
      %s373 = scalar_select %p372, %s22, 1
      %s374 = smul.addr %s373, 5
      %s375 = smul.addr %s374, 8
      %s376 = scalar_lea.vmem %s11, %s375
      %p377 = scmp.lt.s32.totalorder %s22, 1
      %s378 = scalar_select %p377, %s22, 1
      %s379 = smul.addr %s378, 32
      %s380 = smul.addr %s379, 8
      %s381 = scalar_lea.vmem %s0, %s380
      %p382 = scmp.lt.s32.totalorder %s22, 1
      %s383 = scalar_select %p382, %s22, 1
      %s384 = smul.addr %s383, 5
      %s385 = smul.addr %s384, 8
      %s386 = scalar_lea.vmem %s11, %s385
      %v387 = vld [vmem:[%s381] sm:$0xff]
      %v388 = vld [vmem:[%s381 + $0x8] sm:$0xff]
      %v389 = vld [vmem:[%s381 + $0x10] sm:$0xff]
      %v390 = vld [vmem:[%s381 + $0x18] sm:$0xff]
      %v391 = vld [vmem:[%s381 + $0x20] sm:$0xff]
      %v392 = vld [vmem:[%s381 + $0x28] sm:$0xff]
      %v393 = vld [vmem:[%s381 + $0x30] sm:$0xff]
      %v394 = vld [vmem:[%s381 + $0x38] sm:$0xff]
      %v395 = vld [vmem:[%s381 + $0x40] sm:$0xff]
      %v396 = vld [vmem:[%s381 + $0x48] sm:$0xff]
      %v397 = vld [vmem:[%s381 + $0x50] sm:$0xff]
      %v398 = vld [vmem:[%s381 + $0x58] sm:$0xff]
      %v399 = vld [vmem:[%s381 + $0x60] sm:$0xff]
      %v400 = vld [vmem:[%s381 + $0x68] sm:$0xff]
      %v401 = vld [vmem:[%s381 + $0x70] sm:$0xff]
      %v402 = vld [vmem:[%s381 + $0x78] sm:$0xff]
      %v403 = vld [vmem:[%s381 + $0x80] sm:$0xff]
      %v404 = vld [vmem:[%s381 + $0x88] sm:$0xff]
      %v405 = vld [vmem:[%s381 + $0x90] sm:$0xff]
      %v406 = vld [vmem:[%s381 + $0x98] sm:$0xff]
      %v407 = vld [vmem:[%s381 + $0xa0] sm:$0xff]
      %v408 = vld [vmem:[%s381 + $0xa8] sm:$0xff]
      %v409 = vld [vmem:[%s381 + $0xb0] sm:$0xff]
      %v410 = vld [vmem:[%s381 + $0xb8] sm:$0xff]
      %v411 = vld [vmem:[%s381 + $0xc0] sm:$0xff]
      %v412 = vld [vmem:[%s381 + $0xc8] sm:$0xff]
      %v413 = vld [vmem:[%s381 + $0xd0] sm:$0xff]
      %v414 = vld [vmem:[%s381 + $0xd8] sm:$0xff]
      %v415 = vld [vmem:[%s381 + $0xe0] sm:$0xff]
      %v416 = vld [vmem:[%s381 + $0xe8] sm:$0xff]
      %v417 = vld [vmem:[%s381 + $0xf0] sm:$0xff]
      %v418 = vld [vmem:[%s381 + $0xf8] sm:$0xff]
      %v419 = vld [vmem:[%s1] sm:$0x1]
      %v421 = vlaneseq
      %v422 = vshrl.u32 %v421, 7
      %v423 = vsub.s32 0, %v422
      %v424 = vrot.slane %v419, %v423
      %v426 = vmul.f32 %v387, %v424
      %v427 = vmul.f32 %v388, %v424
      %v428 = vmul.f32 %v389, %v424
      %v429 = vmul.f32 %v390, %v424
      %v430 = vmul.f32 %v391, %v424
      %v431 = vmul.f32 %v392, %v424
      %v432 = vmul.f32 %v393, %v424
      %v433 = vmul.f32 %v394, %v424
      %v434 = vmul.f32 %v395, %v424
      %v435 = vmul.f32 %v396, %v424
      %v436 = vmul.f32 %v397, %v424
      %v437 = vmul.f32 %v398, %v424
      %v438 = vmul.f32 %v399, %v424
      %v439 = vmul.f32 %v400, %v424
      %v440 = vmul.f32 %v401, %v424
      %v441 = vmul.f32 %v402, %v424
      %v442 = vmul.f32 %v403, %v424
      %v443 = vmul.f32 %v404, %v424
      %v444 = vmul.f32 %v405, %v424
      %v445 = vmul.f32 %v406, %v424
      %v446 = vmul.f32 %v407, %v424
      %v447 = vmul.f32 %v408, %v424
      %v448 = vmul.f32 %v409, %v424
      %v449 = vmul.f32 %v410, %v424
      %v450 = vmul.f32 %v411, %v424
      %v451 = vmul.f32 %v412, %v424
      %v452 = vmul.f32 %v413, %v424
      %v453 = vmul.f32 %v414, %v424
      %v454 = vmul.f32 %v415, %v424
      %v455 = vmul.f32 %v416, %v424
      %v456 = vmul.f32 %v417, %v424
      %v457 = vmul.f32 %v418, %v424
      %v458 = vld [vmem:[%s2] sm:$0x1]
      %v460 = vlaneseq
      %v461 = vshrl.u32 %v460, 7
      %v462 = vsub.s32 0, %v461
      %v463 = vrot.slane %v458, %v462
      %v465 = vadd.f32 %v426, %v463
      %v466 = vadd.f32 %v427, %v463
      %v467 = vadd.f32 %v428, %v463
      %v468 = vadd.f32 %v429, %v463
      %v469 = vadd.f32 %v430, %v463
      %v470 = vadd.f32 %v431, %v463
      %v471 = vadd.f32 %v432, %v463
      %v472 = vadd.f32 %v433, %v463
      %v473 = vadd.f32 %v434, %v463
      %v474 = vadd.f32 %v435, %v463
      %v475 = vadd.f32 %v436, %v463
      %v476 = vadd.f32 %v437, %v463
      %v477 = vadd.f32 %v438, %v463
      %v478 = vadd.f32 %v439, %v463
      %v479 = vadd.f32 %v440, %v463
      %v480 = vadd.f32 %v441, %v463
      %v481 = vadd.f32 %v442, %v463
      %v482 = vadd.f32 %v443, %v463
      %v483 = vadd.f32 %v444, %v463
      %v484 = vadd.f32 %v445, %v463
      %v485 = vadd.f32 %v446, %v463
      %v486 = vadd.f32 %v447, %v463
      %v487 = vadd.f32 %v448, %v463
      %v488 = vadd.f32 %v449, %v463
      %v489 = vadd.f32 %v450, %v463
      %v490 = vadd.f32 %v451, %v463
      %v491 = vadd.f32 %v452, %v463
      %v492 = vadd.f32 %v453, %v463
      %v493 = vadd.f32 %v454, %v463
      %v494 = vadd.f32 %v455, %v463
      %v495 = vadd.f32 %v456, %v463
      %v496 = vadd.f32 %v457, %v463
      %vm497 = vcmask 31744
      %498 = vst.msk [vmem:[#allocation2] sm:$0xff] %vm497, 0.0
      %499 = vst.msk [vmem:[#allocation2 + $0x8] sm:$0xff] %vm497, 0.0
      %vm500 = vcmask 27648
      %501 = vst.msk [vmem:[#allocation2 + $0x10] sm:$0xf] %vm500, 0.0
      %502 = vst.msk [vmem:[#allocation2 + $0x18] sm:$0xff] %vm497, 0.0
      %503 = vst.msk [vmem:[#allocation2 + $0x20] sm:$0xff] %vm497, 0.0
      %504 = vst.msk [vmem:[#allocation2 + $0x28] sm:$0xf] %vm500, 0.0
      %s505 = scalar_lea.vmem [#allocation2], 432
      %506 = vst.msk [vmem:[%s505] sm:$0xff] %vm497, 0.0
      %507 = vst.msk [vmem:[%s505 + $0x8] sm:$0xff] %vm497, 0.0
      %508 = vst.msk [vmem:[%s505 + $0x10] sm:$0xf] %vm500, 0.0
      %509 = vst.msk [vmem:[%s505 + $0x18] sm:$0xff] %vm497, 0.0
      %510 = vst.msk [vmem:[%s505 + $0x20] sm:$0xff] %vm497, 0.0
      %511 = vst.msk [vmem:[%s505 + $0x28] sm:$0xf] %vm500, 0.0
      %s512 = scalar_lea.vmem [#allocation2], 48
      %vm513 = vcmask 25600
      %514 = vst.msk [vmem:[%s512] sm:$0x3] %vm513, 0.0
      %515 = vst.msk [vmem:[%s512 + $0x18] sm:$0x3] %vm513, 0.0
      %516 = vst.msk [vmem:[%s512 + $0x30] sm:$0x3] %vm513, 0.0
      %517 = vst.msk [vmem:[%s512 + $0x48] sm:$0x3] %vm513, 0.0
      %518 = vst.msk [vmem:[%s512 + $0x60] sm:$0x3] %vm513, 0.0
      %519 = vst.msk [vmem:[%s512 + $0x78] sm:$0x3] %vm513, 0.0
      %520 = vst.msk [vmem:[%s512 + $0x90] sm:$0x3] %vm513, 0.0
      %521 = vst.msk [vmem:[%s512 + $0xa8] sm:$0x3] %vm513, 0.0
      %522 = vst.msk [vmem:[%s512 + $0xc0] sm:$0x3] %vm513, 0.0
      %523 = vst.msk [vmem:[%s512 + $0xd8] sm:$0x3] %vm513, 0.0
      %524 = vst.msk [vmem:[%s512 + $0xf0] sm:$0x3] %vm513, 0.0
      %525 = vst.msk [vmem:[%s512 + $0x108] sm:$0x3] %vm513, 0.0
      %526 = vst.msk [vmem:[%s512 + $0x120] sm:$0x3] %vm513, 0.0
      %527 = vst.msk [vmem:[%s512 + $0x138] sm:$0x3] %vm513, 0.0
      %528 = vst.msk [vmem:[%s512 + $0x150] sm:$0x3] %vm513, 0.0
      %529 = vst.msk [vmem:[%s512 + $0x168] sm:$0x3] %vm513, 0.0
      %530 = vst.msk [vmem:[%s512 + $0x12] sm:$0x3] %vm513, 0.0
      %531 = vst.msk [vmem:[%s512 + $0x2a] sm:$0x3] %vm513, 0.0
      %532 = vst.msk [vmem:[%s512 + $0x42] sm:$0x3] %vm513, 0.0
      %533 = vst.msk [vmem:[%s512 + $0x5a] sm:$0x3] %vm513, 0.0
      %534 = vst.msk [vmem:[%s512 + $0x72] sm:$0x3] %vm513, 0.0
      %535 = vst.msk [vmem:[%s512 + $0x8a] sm:$0x3] %vm513, 0.0
      %536 = vst.msk [vmem:[%s512 + $0xa2] sm:$0x3] %vm513, 0.0
      %537 = vst.msk [vmem:[%s512 + $0xba] sm:$0x3] %vm513, 0.0
      %538 = vst.msk [vmem:[%s512 + $0xd2] sm:$0x3] %vm513, 0.0
      %539 = vst.msk [vmem:[%s512 + $0xea] sm:$0x3] %vm513, 0.0
      %540 = vst.msk [vmem:[%s512 + $0x102] sm:$0x3] %vm513, 0.0
      %541 = vst.msk [vmem:[%s512 + $0x11a] sm:$0x3] %vm513, 0.0
      %542 = vst.msk [vmem:[%s512 + $0x132] sm:$0x3] %vm513, 0.0
      %543 = vst.msk [vmem:[%s512 + $0x14a] sm:$0x3] %vm513, 0.0
      %544 = vst.msk [vmem:[%s512 + $0x162] sm:$0x3] %vm513, 0.0
      %545 = vst.msk [vmem:[%s512 + $0x17a] sm:$0x3] %vm513, 0.0
      %546 = vst.msk [vmem:[%s512 + $0x2] sm:$0xff] %vm497, %v465
      %547 = vst.msk [vmem:[%s512 + $0xa] sm:$0xff] %vm497, %v466
      %548 = vst.msk [vmem:[%s512 + $0x1a] sm:$0xff] %vm497, %v467
      %549 = vst.msk [vmem:[%s512 + $0x22] sm:$0xff] %vm497, %v468
      %550 = vst.msk [vmem:[%s512 + $0x32] sm:$0xff] %vm497, %v469
      %551 = vst.msk [vmem:[%s512 + $0x3a] sm:$0xff] %vm497, %v470
      %552 = vst.msk [vmem:[%s512 + $0x4a] sm:$0xff] %vm497, %v471
      %553 = vst.msk [vmem:[%s512 + $0x52] sm:$0xff] %vm497, %v472
      %554 = vst.msk [vmem:[%s512 + $0x62] sm:$0xff] %vm497, %v473
      %555 = vst.msk [vmem:[%s512 + $0x6a] sm:$0xff] %vm497, %v474
      %556 = vst.msk [vmem:[%s512 + $0x7a] sm:$0xff] %vm497, %v475
      %557 = vst.msk [vmem:[%s512 + $0x82] sm:$0xff] %vm497, %v476
      %558 = vst.msk [vmem:[%s512 + $0x92] sm:$0xff] %vm497, %v477
      %559 = vst.msk [vmem:[%s512 + $0x9a] sm:$0xff] %vm497, %v478
      %560 = vst.msk [vmem:[%s512 + $0xaa] sm:$0xff] %vm497, %v479
      %561 = vst.msk [vmem:[%s512 + $0xb2] sm:$0xff] %vm497, %v480
      %562 = vst.msk [vmem:[%s512 + $0xc2] sm:$0xff] %vm497, %v481
      %563 = vst.msk [vmem:[%s512 + $0xca] sm:$0xff] %vm497, %v482
      %564 = vst.msk [vmem:[%s512 + $0xda] sm:$0xff] %vm497, %v483
      %565 = vst.msk [vmem:[%s512 + $0xe2] sm:$0xff] %vm497, %v484
      %566 = vst.msk [vmem:[%s512 + $0xf2] sm:$0xff] %vm497, %v485
      %567 = vst.msk [vmem:[%s512 + $0xfa] sm:$0xff] %vm497, %v486
      %568 = vst.msk [vmem:[%s512 + $0x10a] sm:$0xff] %vm497, %v487
      %569 = vst.msk [vmem:[%s512 + $0x112] sm:$0xff] %vm497, %v488
      %570 = vst.msk [vmem:[%s512 + $0x122] sm:$0xff] %vm497, %v489
      %571 = vst.msk [vmem:[%s512 + $0x12a] sm:$0xff] %vm497, %v490
      %572 = vst.msk [vmem:[%s512 + $0x13a] sm:$0xff] %vm497, %v491
      %573 = vst.msk [vmem:[%s512 + $0x142] sm:$0xff] %vm497, %v492
      %574 = vst.msk [vmem:[%s512 + $0x152] sm:$0xff] %vm497, %v493
      %575 = vst.msk [vmem:[%s512 + $0x15a] sm:$0xff] %vm497, %v494
      %576 = vst.msk [vmem:[%s512 + $0x16a] sm:$0xff] %vm497, %v495
      %577 = vst.msk [vmem:[%s512 + $0x172] sm:$0xff] %vm497, %v496
      %v578 = vld [vmem:[%s3] sm:$0xff]
      %v579 = vld [vmem:[%s3 + $0x8] sm:$0xff]
      %v580 = vld [vmem:[%s3 + $0x10] sm:$0xff]
      %v581 = vld [vmem:[%s3 + $0x18] sm:$0xff]
      %v582 = vld [vmem:[%s3 + $0x20] sm:$0xf]
      %v583 = vld [vmem:[%s4] sm:$0x1]
      loop: start=0, step=1, limit=18
      $region65: #{forward.2} parent=63 // loop_pre_header
        _
      $region66: #{forward.2} parent=63 // loop_header
        %s585 = sphi 0, %s589
        %p586 = scmp.ge.s32.totalorder %s585, 18
      $region67: #{forward.2} parent=63 // loop_header_branch
        %588 = sbr.rel (%p586) target = $region71
      $region68: #{forward.2} parent=63 // loop_body
        %s590 = smul.u32 %s585, 24
        %s591 = scalar_lea.vmem [#allocation2], %s590
        %v592 = vld [vmem:[%s591] sm:$0xff]
        %v593 = vld [vmem:[%s591 + $0x8] sm:$0xff]
        %v594 = vld [vmem:[%s591 + $0x10] sm:$0x3]
        %595 = vst.msk [vmem:[#allocation6] sm:$0xff] %vm497, %v592
        %596 = vst.msk [vmem:[#allocation6 + $0x8] sm:$0xff] %vm497, %v593
        %597 = vst.msk [vmem:[#allocation6 + $0x10] sm:$0x3] %vm513, %v594
        %v598 = vld [vmem:[%s591 + $0x1] sm:$0xff]
        %v599 = vld [vmem:[%s591 + $0x9] sm:$0xff]
        %v600 = vld [vmem:[%s591 + $0x11] sm:$0x3]
        %604 = vrot.lane.b32.xlu0 %v598, 4
        %v605 = vpop.permute.xlu0 %604
        %606 = vrot.lane.b32.xlu0 %v599, 4
        %v607 = vpop.permute.xlu0 %606
        %608 = vrot.lane.b32.xlu0 %v600, 4
        %v609 = vpop.permute.xlu0 %608
        %vm613 = vcmask 64544
        %614 = vst.msk [vmem:[#allocation6] sm:$0xff] %vm613, %v605
        %615 = vst.msk [vmem:[#allocation6 + $0x8] sm:$0xff] %vm613, %v607
        %vm616 = vcmask 58400
        %617 = vst.msk [vmem:[#allocation6 + $0x10] sm:$0x3] %vm616, %v609
        %v618 = vld [vmem:[%s591 + $0x2] sm:$0xff]
        %v619 = vld [vmem:[%s591 + $0xa] sm:$0xff]
        %v620 = vld [vmem:[%s591 + $0x12] sm:$0x3]
        %624 = vrot.lane.b32.xlu0 %v618, 8
        %v625 = vpop.permute.xlu0 %624
        %626 = vrot.lane.b32.xlu0 %v619, 8
        %v627 = vpop.permute.xlu0 %626
        %628 = vrot.lane.b32.xlu0 %v620, 8
        %v629 = vpop.permute.xlu0 %628
        %vm633 = vcmask 97344
        %634 = vst.msk [vmem:[#allocation6] sm:$0xff] %vm633, %v625
        %635 = vst.msk [vmem:[#allocation6 + $0x8] sm:$0xff] %vm633, %v627
        %vm636 = vcmask 91200
        %637 = vst.msk [vmem:[#allocation6 + $0x10] sm:$0x3] %vm636, %v629
        %s638 = sadd.s32 %s585, 1
        %s639 = smul.u32 %s638, 24
        %s640 = scalar_lea.vmem [#allocation2], %s639
        %v641 = vld [vmem:[%s640] sm:$0xff]
        %v642 = vld [vmem:[%s640 + $0x8] sm:$0xff]
        %v643 = vld [vmem:[%s640 + $0x10] sm:$0x3]
        %647 = vrot.lane.b32.xlu0 %v641, 12
        %v648 = vpop.permute.xlu0 %647
        %649 = vrot.lane.b32.xlu0 %v642, 12
        %v650 = vpop.permute.xlu0 %649
        %651 = vrot.lane.b32.xlu0 %v643, 12
        %v652 = vpop.permute.xlu0 %651
        %vm656 = vcmask 130144
        %657 = vst.msk [vmem:[#allocation6] sm:$0xff] %vm656, %v648
        %658 = vst.msk [vmem:[#allocation6 + $0x8] sm:$0xff] %vm656, %v650
        %vm659 = vcmask 124000
        %660 = vst.msk [vmem:[#allocation6 + $0x10] sm:$0x3] %vm659, %v652
        %v661 = vld [vmem:[%s640 + $0x1] sm:$0xff]
        %v662 = vld [vmem:[%s640 + $0x9] sm:$0xff]
        %v663 = vld [vmem:[%s640 + $0x11] sm:$0x3]
        %667 = vrot.lane.b32.xlu0 %v661, 16
        %v668 = vpop.permute.xlu0 %667
        %669 = vrot.lane.b32.xlu0 %v662, 16
        %v670 = vpop.permute.xlu0 %669
        %671 = vrot.lane.b32.xlu0 %v663, 16
        %v672 = vpop.permute.xlu0 %671
        %vm676 = vcmask 162944
        %677 = vst.msk [vmem:[#allocation6] sm:$0xff] %vm676, %v668
        %678 = vst.msk [vmem:[#allocation6 + $0x8] sm:$0xff] %vm676, %v670
        %vm679 = vcmask 156800
        %680 = vst.msk [vmem:[#allocation6 + $0x10] sm:$0x3] %vm679, %v672
        %v681 = vld [vmem:[%s640 + $0x2] sm:$0xff]
        %v682 = vld [vmem:[%s640 + $0xa] sm:$0xff]
        %v683 = vld [vmem:[%s640 + $0x12] sm:$0x3]
        %687 = vrot.lane.b32.xlu0 %v681, 20
        %v688 = vpop.permute.xlu0 %687
        %689 = vrot.lane.b32.xlu0 %v682, 20
        %v690 = vpop.permute.xlu0 %689
        %691 = vrot.lane.b32.xlu0 %v683, 20
        %v692 = vpop.permute.xlu0 %691
        %vm696 = vcmask 195744
        %697 = vst.msk [vmem:[#allocation6] sm:$0xff] %vm696, %v688
        %698 = vst.msk [vmem:[#allocation6 + $0x8] sm:$0xff] %vm696, %v690
        %vm699 = vcmask 189600
        %700 = vst.msk [vmem:[#allocation6 + $0x10] sm:$0x3] %vm699, %v692
        %s701 = sadd.s32 %s585, 2
        %s702 = smul.u32 %s701, 24
        %s703 = scalar_lea.vmem [#allocation2], %s702
        %v704 = vld [vmem:[%s703] sm:$0xff]
        %v705 = vld [vmem:[%s703 + $0x8] sm:$0xff]
        %v706 = vld [vmem:[%s703 + $0x10] sm:$0x3]
        %710 = vrot.lane.b32.xlu0 %v704, 24
        %v711 = vpop.permute.xlu0 %710
        %712 = vrot.lane.b32.xlu0 %v705, 24
        %v713 = vpop.permute.xlu0 %712
        %714 = vrot.lane.b32.xlu0 %v706, 24
        %v715 = vpop.permute.xlu0 %714
        %vm719 = vcmask 228544
        %720 = vst.msk [vmem:[#allocation6] sm:$0xff] %vm719, %v711
        %721 = vst.msk [vmem:[#allocation6 + $0x8] sm:$0xff] %vm719, %v713
        %vm722 = vcmask 222400
        %723 = vst.msk [vmem:[#allocation6 + $0x10] sm:$0x3] %vm722, %v715
        %v724 = vld [vmem:[%s703 + $0x1] sm:$0xff]
        %v725 = vld [vmem:[%s703 + $0x9] sm:$0xff]
        %v726 = vld [vmem:[%s703 + $0x11] sm:$0x3]
        %730 = vrot.lane.b32.xlu0 %v724, 28
        %v731 = vpop.permute.xlu0 %730
        %732 = vrot.lane.b32.xlu0 %v725, 28
        %v733 = vpop.permute.xlu0 %732
        %734 = vrot.lane.b32.xlu0 %v726, 28
        %v735 = vpop.permute.xlu0 %734
        %vm739 = vcmask 261344
        %740 = vst.msk [vmem:[#allocation6] sm:$0xff] %vm739, %v731
        %741 = vst.msk [vmem:[#allocation6 + $0x8] sm:$0xff] %vm739, %v733
        %vm742 = vcmask 255200
        %743 = vst.msk [vmem:[#allocation6 + $0x10] sm:$0x3] %vm742, %v735
        %v744 = vld [vmem:[%s703 + $0x2] sm:$0xff]
        %v745 = vld [vmem:[%s703 + $0xa] sm:$0xff]
        %v746 = vld [vmem:[%s703 + $0x12] sm:$0x3]
        %750 = vrot.lane.b32.xlu0 %v744, 32
        %v751 = vpop.permute.xlu0 %750
        %752 = vrot.lane.b32.xlu0 %v745, 32
        %v753 = vpop.permute.xlu0 %752
        %754 = vrot.lane.b32.xlu0 %v746, 32
        %v755 = vpop.permute.xlu0 %754
        %vm759 = vcmask 294144
        %760 = vst.msk [vmem:[#allocation6] sm:$0xff] %vm759, %v751
        %761 = vst.msk [vmem:[#allocation6 + $0x8] sm:$0xff] %vm759, %v753
        %vm762 = vcmask 288000
        %763 = vst.msk [vmem:[#allocation6 + $0x10] sm:$0x3] %vm762, %v755
        %v764 = vld [vmem:[#allocation6] sm:$0xff]
        %v765 = vld [vmem:[#allocation6 + $0x8] sm:$0xff]
        %v766 = vld [vmem:[#allocation6 + $0x10] sm:$0x3]
        %v768 = vlaneseq
        %v769 = vshrl.u32 %v768, 7
        %v770 = vsub.s32 0, %v769
        %v771 = vrot.slane %v583, %v770
        %vm773 = vcmask 293888
        %v775 = vsel %vm773, %v764, 0
        %v778 = vsel %vm773, %v765, 0
        %v781 = vsel %vm773, %v766, 0
        %vm783 = vcmask 1043456
        %v785 = vsel %vm783, %v582, 0
        %787 = vmatprep.subr.mxu0 0.0
        %788 = vmatpush1.msra.mxu0 %v578
        %789 = vmatprep.subr.mxu0 0.0
        %790 = vmatpush1.msra.mxu0 %v579
        %791 = vmatprep.subr.mxu0 0.0
        %792 = vmatpush1.msra.mxu0 %v580
        %793 = vmatprep.subr.mxu0 0.0
        %794 = vmatpush1.msra.mxu0 %v581
        %795 = vmatprep.subr.mxu0 0.0
        %796 = vmatpush1.msra.mxu0 %v785
        %797 = vmatprep.subr.mxu0 0.0
        %798 = vmatpush1.msra.mxu0 0.0
        %799 = vmatprep.subr.mxu0 0.0
        %800 = vmatpush1.msra.mxu0 0.0
        %801 = vmatprep.subr.mxu0 0.0
        %802 = vmatpush1.msra.mxu0 0.0
        %803 = vmatprep.subr.mxu0 0.0
        %804 = vmatpush1.msra.mxu0 0.0
        %805 = vmatprep.subr.mxu0 0.0
        %806 = vmatpush1.msra.mxu0 0.0
        %807 = vmatprep.subr.mxu0 0.0
        %808 = vmatpush1.msra.mxu0 0.0
        %809 = vmatprep.subr.mxu0 0.0
        %810 = vmatpush1.msra.mxu0 0.0
        %811 = vmatprep.subr.mxu0 0.0
        %812 = vmatpush1.msra.mxu0 0.0
        %813 = vmatprep.subr.mxu0 0.0
        %814 = vmatpush1.msra.mxu0 0.0
        %815 = vmatprep.subr.mxu0 0.0
        %816 = vmatpush1.msra.mxu0 0.0
        %817 = vmatprep.subr.mxu0 0.0
        %818 = vmatpush1.msra.mxu0 0.0
        %819 = vmatprep.subr.mxu0 0.0
        %820 = vmatpush1.msra.mxu0 0.0
        %821 = vmatprep.subr.mxu0 0.0
        %822 = vmatpush1.msra.mxu0 0.0
        %823 = vmatprep.subr.mxu0 0.0
        %824 = vmatpush1.msra.mxu0 0.0
        %825 = vmatprep.subr.mxu0 0.0
        %826 = vmatpush1.msra.mxu0 0.0
        %827 = vmatprep.subr.mxu0 0.0
        %828 = vmatpush1.msra.mxu0 0.0
        %829 = vmatprep.subr.mxu0 0.0
        %830 = vmatpush1.msra.mxu0 0.0
        %831 = vmatprep.subr.mxu0 0.0
        %832 = vmatpush1.msra.mxu0 0.0
        %833 = vmatprep.subr.mxu0 0.0
        %834 = vmatpush1.msra.mxu0 0.0
        %835 = vmatprep.subr.mxu0 0.0
        %836 = vmatpush1.msra.mxu0 0.0
        %837 = vmatprep.subr.mxu0 0.0
        %838 = vmatpush1.msra.mxu0 0.0
        %839 = vmatprep.subr.mxu0 0.0
        %840 = vmatpush1.msra.mxu0 0.0
        %841 = vmatprep.subr.mxu0 0.0
        %842 = vmatpush1.msra.mxu0 0.0
        %843 = vmatprep.subr.mxu0 0.0
        %844 = vmatpush1.msra.mxu0 0.0
        %845 = vmatprep.subr.mxu0 0.0
        %846 = vmatpush1.msra.mxu0 0.0
        %847 = vmatprep.subr.mxu0 0.0
        %848 = vmatpush1.msra.mxu0 0.0
        %849 = vmatprep.subr.mxu0 0.0
        %850 = vmatpush1.msra.mxu0 0.0
        %851 = vmatprep.mubr.f32.mxu0 0.0
        %852 = vmatmul.mubr.f32.gmra.mrb[0].mxu0 %v775
        %v853 = vpop.f32.mrb[0].mxu0
        %v854 = vadd.f32 %v771, %v853
        %v855 = vpop.f32.mrb[0].mxu0
        %856 = vmatprep.mubr.f32.mxu0 0.0
        %857 = vmatmul.mubr.f32.gmra.mrb[0].mxu0 %v778
        %v858 = vpop.f32.mrb[0].mxu0
        %v859 = vadd.f32 %v771, %v858
        %v860 = vpop.f32.mrb[0].mxu0
        %861 = vmatprep.mubr.f32.mxu0 0.0
        %862 = vmatmul.mubr.f32.gmra.mrb[0].mxu0 %v781
        %v863 = vpop.f32.mrb[0].mxu0
        %v864 = vadd.f32 %v771, %v863
        %v865 = vpop.f32.mrb[0].mxu0
        %866 = vdwg.mxu0
        %v867 = vmax.f32 %v854, 0.0
        %v868 = vmax.f32 %v859, 0.0
        %v869 = vmax.f32 %v864, 0.0
        %s870 = scalar_lea.vmem [#allocation3], %s590
        %vm871 = vcmask 130048
        %872 = vst.msk [vmem:[%s870] sm:$0xff] %vm871, %v867
        %873 = vst.msk [vmem:[%s870 + $0x8] sm:$0xff] %vm871, %v868
        %vm874 = vcmask 123904
        %875 = vst.msk [vmem:[%s870 + $0x10] sm:$0x3] %vm874, %v869
      $region69: #{forward.2} parent=63 // loop_footer
        %s589 = sadd.s32 1, %s585
      $region70: #{forward.2} parent=63 // loop_footer_branch
        %584 = sbr.rel target = $region66
      $region71: #{forward.2} parent=63 // loop_exit
        _
      %vm876 = vcmask 130048
      %877 = vst.msk [vmem:[#allocation4] sm:$0xff] %vm876, 0.0
      %vm878 = vcmask 126976
      %879 = vst.msk [vmem:[#allocation4 + $0x8] sm:$0x1f] %vm878, 0.0
      %880 = vst.msk [vmem:[#allocation4 + $0x10] sm:$0xff] %vm876, 0.0
      %881 = vst.msk [vmem:[#allocation4 + $0x18] sm:$0x1f] %vm878, 0.0
      %s882 = scalar_lea.vmem [#allocation4], 176
      %883 = vst.msk [vmem:[%s882] sm:$0xff] %vm876, 0.0
      %884 = vst.msk [vmem:[%s882 + $0x8] sm:$0x1f] %vm878, 0.0
      %885 = vst.msk [vmem:[%s882 + $0x10] sm:$0xff] %vm876, 0.0
      %886 = vst.msk [vmem:[%s882 + $0x18] sm:$0x1f] %vm878, 0.0
      %s887 = scalar_lea.vmem [#allocation4], 32
      %vm888 = vcmask 123904
      %889 = vst.msk [vmem:[%s887] sm:$0x3] %vm888, 0.0
      %890 = vst.msk [vmem:[%s887 + $0x10] sm:$0x3] %vm888, 0.0
      %891 = vst.msk [vmem:[%s887 + $0x20] sm:$0x3] %vm888, 0.0
      %892 = vst.msk [vmem:[%s887 + $0x30] sm:$0x3] %vm888, 0.0
      %893 = vst.msk [vmem:[%s887 + $0x40] sm:$0x3] %vm888, 0.0
      %894 = vst.msk [vmem:[%s887 + $0x50] sm:$0x3] %vm888, 0.0
      %895 = vst.msk [vmem:[%s887 + $0x60] sm:$0x3] %vm888, 0.0
      %896 = vst.msk [vmem:[%s887 + $0x70] sm:$0x3] %vm888, 0.0
      %897 = vst.msk [vmem:[%s887 + $0x80] sm:$0x3] %vm888, 0.0
      %898 = vst.msk [vmem:[%s887 + $0xb] sm:$0x3] %vm888, 0.0
      %899 = vst.msk [vmem:[%s887 + $0x1b] sm:$0x3] %vm888, 0.0
      %900 = vst.msk [vmem:[%s887 + $0x2b] sm:$0x3] %vm888, 0.0
      %901 = vst.msk [vmem:[%s887 + $0x3b] sm:$0x3] %vm888, 0.0
      %902 = vst.msk [vmem:[%s887 + $0x4b] sm:$0x3] %vm888, 0.0
      %903 = vst.msk [vmem:[%s887 + $0x5b] sm:$0x3] %vm888, 0.0
      %904 = vst.msk [vmem:[%s887 + $0x6b] sm:$0x3] %vm888, 0.0
      %905 = vst.msk [vmem:[%s887 + $0x7b] sm:$0x3] %vm888, 0.0
      %906 = vst.msk [vmem:[%s887 + $0x8b] sm:$0x3] %vm888, 0.0
      %v907 = vld [vmem:[%s7] sm:$0xff]
      %v908 = vld [vmem:[%s7 + $0x8] sm:$0x1]
      %v909 = vld [vmem:[%s8] sm:$0xff]
      %v910 = vld [vmem:[%s8 + $0x8] sm:$0x1]
      loop: start=0, step=1, limit=9
      $region72: #{forward.2} parent=63 // loop_pre_header
        _
      $region73: #{forward.2} parent=63 // loop_header
        %s912 = sphi 0, %s916
        %p913 = scmp.ge.s32.totalorder %s912, 9
      $region74: #{forward.2} parent=63 // loop_header_branch
        %915 = sbr.rel (%p913) target = $region78
      $region75: #{forward.2} parent=63 // loop_body
        %s917 = smul.u32 %s912, 2
        %s918 = smul.u32 %s917, 24
        %s919 = scalar_lea.vmem [#allocation3], %s918
        %v920 = vld [vmem:[%s919] sm:$0xff]
        %v921 = vld [vmem:[%s919 + $0x8] sm:$0xff]
        %v922 = vld [vmem:[%s919 + $0x10] sm:$0x3]
        %s923 = sadd.s32 %s917, 1
        %s924 = smul.u32 %s923, 24
        %s925 = scalar_lea.vmem [#allocation3], %s924
        %v926 = vld [vmem:[%s925] sm:$0xff]
        %v927 = vld [vmem:[%s925 + $0x8] sm:$0xff]
        %v928 = vld [vmem:[%s925 + $0x10] sm:$0x3]
        %v929 = vmax.f32 %v920, %v926
        %v930 = vmax.f32 %v921, %v927
        %v931 = vmax.f32 %v922, %v928
        %vm932 = vcmask 146432
        %v934 = vsel %vm932, %v907, 0
        %v937 = vsel %vm932, %v908, 0
        %vm939 = vcmask 1041408
        %v941 = vsel %vm939, %v931, 0
        %943 = vmatprep.subr.mxu0 0.0
        %944 = vmatpush1.msra.mxu0 %v929
        %945 = vmatprep.subr.mxu0 0.0
        %946 = vmatpush1.msra.mxu0 %v930
        %947 = vmatprep.subr.mxu0 0.0
        %948 = vmatpush1.msra.mxu0 %v941
        %949 = vmatprep.subr.mxu0 0.0
        %950 = vmatpush1.msra.mxu0 0.0
        %951 = vmatprep.subr.mxu0 0.0
        %952 = vmatpush1.msra.mxu0 0.0
        %953 = vmatprep.subr.mxu0 0.0
        %954 = vmatpush1.msra.mxu0 0.0
        %955 = vmatprep.subr.mxu0 0.0
        %956 = vmatpush1.msra.mxu0 0.0
        %957 = vmatprep.subr.mxu0 0.0
        %958 = vmatpush1.msra.mxu0 0.0
        %959 = vmatprep.subr.mxu0 0.0
        %960 = vmatpush1.msra.mxu0 0.0
        %961 = vmatprep.subr.mxu0 0.0
        %962 = vmatpush1.msra.mxu0 0.0
        %963 = vmatprep.subr.mxu0 0.0
        %964 = vmatpush1.msra.mxu0 0.0
        %965 = vmatprep.subr.mxu0 0.0
        %966 = vmatpush1.msra.mxu0 0.0
        %967 = vmatprep.subr.mxu0 0.0
        %968 = vmatpush1.msra.mxu0 0.0
        %969 = vmatprep.subr.mxu0 0.0
        %970 = vmatpush1.msra.mxu0 0.0
        %971 = vmatprep.subr.mxu0 0.0
        %972 = vmatpush1.msra.mxu0 0.0
        %973 = vmatprep.subr.mxu0 0.0
        %974 = vmatpush1.msra.mxu0 0.0
        %975 = vmatprep.subr.mxu0 0.0
        %976 = vmatpush1.msra.mxu0 0.0
        %977 = vmatprep.subr.mxu0 0.0
        %978 = vmatpush1.msra.mxu0 0.0
        %979 = vmatprep.subr.mxu0 0.0
        %980 = vmatpush1.msra.mxu0 0.0
        %981 = vmatprep.subr.mxu0 0.0
        %982 = vmatpush1.msra.mxu0 0.0
        %983 = vmatprep.subr.mxu0 0.0
        %984 = vmatpush1.msra.mxu0 0.0
        %985 = vmatprep.subr.mxu0 0.0
        %986 = vmatpush1.msra.mxu0 0.0
        %987 = vmatprep.subr.mxu0 0.0
        %988 = vmatpush1.msra.mxu0 0.0
        %989 = vmatprep.subr.mxu0 0.0
        %990 = vmatpush1.msra.mxu0 0.0
        %991 = vmatprep.subr.mxu0 0.0
        %992 = vmatpush1.msra.mxu0 0.0
        %993 = vmatprep.subr.mxu0 0.0
        %994 = vmatpush1.msra.mxu0 0.0
        %995 = vmatprep.subr.mxu0 0.0
        %996 = vmatpush1.msra.mxu0 0.0
        %997 = vmatprep.subr.mxu0 0.0
        %998 = vmatpush1.msra.mxu0 0.0
        %999 = vmatprep.subr.mxu0 0.0
        %1000 = vmatpush1.msra.mxu0 0.0
        %1001 = vmatprep.subr.mxu0 0.0
        %1002 = vmatpush1.msra.mxu0 0.0
        %1003 = vmatprep.subr.mxu0 0.0
        %1004 = vmatpush1.msra.mxu0 0.0
        %1005 = vmatprep.subr.mxu0 0.0
        %1006 = vmatpush1.msra.mxu0 0.0
        %1007 = vmatprep.mubr.f32.mxu0 0.0
        %1008 = vmatmul.mubr.f32.gmra.mrb[0].mxu0 %v934
        %v1009 = vpop.f32.mrb[0].mxu0
        %v1010 = vadd.f32 0.0, %v1009
        %v1011 = vpop.f32.mrb[0].mxu0
        %1012 = vmatprep.mubr.f32.mxu0 0.0
        %1013 = vmatmul.mubr.f32.gmra.mrb[0].mxu0 %v937
        %v1014 = vpop.f32.mrb[0].mxu0
        %v1015 = vadd.f32 0.0, %v1014
        %v1016 = vpop.f32.mrb[0].mxu0
        %1017 = vdwg.mxu0
        %v1019 = vsel %vm932, %v909, 0
        %v1022 = vsel %vm932, %v910, 0
        %1024 = vmatprep.subr.mxu0 0.0
        %1025 = vmatpush1.msra.mxu0 %v929
        %1026 = vmatprep.subr.mxu0 0.0
        %1027 = vmatpush1.msra.mxu0 %v930
        %1028 = vmatprep.subr.mxu0 0.0
        %1029 = vmatpush1.msra.mxu0 %v941
        %1030 = vmatprep.subr.mxu0 0.0
        %1031 = vmatpush1.msra.mxu0 0.0
        %1032 = vmatprep.subr.mxu0 0.0
        %1033 = vmatpush1.msra.mxu0 0.0
        %1034 = vmatprep.subr.mxu0 0.0
        %1035 = vmatpush1.msra.mxu0 0.0
        %1036 = vmatprep.subr.mxu0 0.0
        %1037 = vmatpush1.msra.mxu0 0.0
        %1038 = vmatprep.subr.mxu0 0.0
        %1039 = vmatpush1.msra.mxu0 0.0
        %1040 = vmatprep.subr.mxu0 0.0
        %1041 = vmatpush1.msra.mxu0 0.0
        %1042 = vmatprep.subr.mxu0 0.0
        %1043 = vmatpush1.msra.mxu0 0.0
        %1044 = vmatprep.subr.mxu0 0.0
        %1045 = vmatpush1.msra.mxu0 0.0
        %1046 = vmatprep.subr.mxu0 0.0
        %1047 = vmatpush1.msra.mxu0 0.0
        %1048 = vmatprep.subr.mxu0 0.0
        %1049 = vmatpush1.msra.mxu0 0.0
        %1050 = vmatprep.subr.mxu0 0.0
        %1051 = vmatpush1.msra.mxu0 0.0
        %1052 = vmatprep.subr.mxu0 0.0
        %1053 = vmatpush1.msra.mxu0 0.0
        %1054 = vmatprep.subr.mxu0 0.0
        %1055 = vmatpush1.msra.mxu0 0.0
        %1056 = vmatprep.subr.mxu0 0.0
        %1057 = vmatpush1.msra.mxu0 0.0
        %1058 = vmatprep.subr.mxu0 0.0
        %1059 = vmatpush1.msra.mxu0 0.0
        %1060 = vmatprep.subr.mxu0 0.0
        %1061 = vmatpush1.msra.mxu0 0.0
        %1062 = vmatprep.subr.mxu0 0.0
        %1063 = vmatpush1.msra.mxu0 0.0
        %1064 = vmatprep.subr.mxu0 0.0
        %1065 = vmatpush1.msra.mxu0 0.0
        %1066 = vmatprep.subr.mxu0 0.0
        %1067 = vmatpush1.msra.mxu0 0.0
        %1068 = vmatprep.subr.mxu0 0.0
        %1069 = vmatpush1.msra.mxu0 0.0
        %1070 = vmatprep.subr.mxu0 0.0
        %1071 = vmatpush1.msra.mxu0 0.0
        %1072 = vmatprep.subr.mxu0 0.0
        %1073 = vmatpush1.msra.mxu0 0.0
        %1074 = vmatprep.subr.mxu0 0.0
        %1075 = vmatpush1.msra.mxu0 0.0
        %1076 = vmatprep.subr.mxu0 0.0
        %1077 = vmatpush1.msra.mxu0 0.0
        %1078 = vmatprep.subr.mxu0 0.0
        %1079 = vmatpush1.msra.mxu0 0.0
        %1080 = vmatprep.subr.mxu0 0.0
        %1081 = vmatpush1.msra.mxu0 0.0
        %1082 = vmatprep.subr.mxu0 0.0
        %1083 = vmatpush1.msra.mxu0 0.0
        %1084 = vmatprep.subr.mxu0 0.0
        %1085 = vmatpush1.msra.mxu0 0.0
        %1086 = vmatprep.subr.mxu0 0.0
        %1087 = vmatpush1.msra.mxu0 0.0
        %1088 = vmatprep.mubr.f32.mxu0 0.0
        %1089 = vmatmul.mubr.f32.gmra.mrb[0].mxu0 %v1019
        %v1090 = vpop.f32.mrb[0].mxu0
        %v1091 = vadd.f32 0.0, %v1090
        %v1092 = vpop.f32.mrb[0].mxu0
        %1093 = vmatprep.mubr.f32.mxu0 0.0
        %1094 = vmatmul.mubr.f32.gmra.mrb[0].mxu0 %v1022
        %v1095 = vpop.f32.mrb[0].mxu0
        %v1096 = vadd.f32 0.0, %v1095
        %v1097 = vpop.f32.mrb[0].mxu0
        %1098 = vdwg.mxu0
        %v1099 = vmax.f32 %v1010, %v1091
        %v1100 = vmax.f32 %v1015, %v1096
        %s1101 = sadd.s32 %s912, 2
        %s1102 = smul.u32 %s1101, 16
        %s1103 = scalar_lea.vmem [#allocation4], %s1102
        %1104 = vst.msk [vmem:[%s1103 + $0x2] sm:$0xff] %vm876, %v1099
        %vm1105 = vcmask 122880
        %1106 = vst.msk [vmem:[%s1103 + $0xa] sm:$0x1] %vm1105, %v1100
      $region76: #{forward.2} parent=63 // loop_footer
        %s916 = sadd.s32 1, %s912
      $region77: #{forward.2} parent=63 // loop_footer_branch
        %911 = sbr.rel target = $region73
      $region78: #{forward.2} parent=63 // loop_exit
        _
      %v1107 = vld [vmem:[%s5] sm:$0xff]
      %v1108 = vld [vmem:[%s5 + $0x8] sm:$0xff]
      %v1109 = vld [vmem:[%s5 + $0x10] sm:$0xff]
      %v1110 = vld [vmem:[%s5 + $0x18] sm:$0xff]
      %v1111 = vld [vmem:[%s5 + $0x20] sm:$0xff]
      %v1112 = vld [vmem:[%s5 + $0x28] sm:$0xff]
      %v1113 = vld [vmem:[%s5 + $0x30] sm:$0xff]
      %v1114 = vld [vmem:[%s5 + $0x38] sm:$0xff]
      %v1115 = vld [vmem:[%s5 + $0x40] sm:$0xff]
      %v1116 = vld [vmem:[%s5 + $0x48] sm:$0xff]
      %v1117 = vld [vmem:[%s5 + $0x50] sm:$0xff]
      %v1118 = vld [vmem:[%s5 + $0x58] sm:$0xff]
      %v1119 = vld [vmem:[%s5 + $0x60] sm:$0xff]
      %v1120 = vld [vmem:[%s5 + $0x68] sm:$0xff]
      %v1121 = vld [vmem:[%s5 + $0x70] sm:$0xff]
      %v1122 = vld [vmem:[%s5 + $0x78] sm:$0xff]
      %v1123 = vld [vmem:[%s5 + $0x80] sm:$0xff]
      %v1124 = vld [vmem:[%s5 + $0x88] sm:$0xff]
      %v1125 = vld [vmem:[%s6] sm:$0x1]
      loop: start=0, step=1, limit=11
      $region79: #{forward.2} parent=63 // loop_pre_header
        _
      $region80: #{forward.2} parent=63 // loop_header
        %s1127 = sphi 0, %s1131
        %p1128 = scmp.ge.s32.totalorder %s1127, 11
      $region81: #{forward.2} parent=63 // loop_header_branch
        %1130 = sbr.rel (%p1128) target = $region85
      $region82: #{forward.2} parent=63 // loop_body
        %s1132 = smul.u32 %s1127, 16
        %s1133 = scalar_lea.vmem [#allocation4], %s1132
        %v1134 = vld [vmem:[%s1133] sm:$0xff]
        %v1135 = vld [vmem:[%s1133 + $0x8] sm:$0x7]
        %1136 = vst.msk [vmem:[#allocation7] sm:$0xff] %vm876, %v1134
        %vm1137 = vcmask 124928
        %1138 = vst.msk [vmem:[#allocation7 + $0x10] sm:$0x7] %vm1137, %v1135
        %v1139 = vld [vmem:[%s1133 + $0x1] sm:$0xff]
        %v1140 = vld [vmem:[%s1133 + $0x9] sm:$0x7]
        %1143 = vrot.lane.b32.xlu0 %v1139, 16
        %v1144 = vpop.permute.xlu0 %1143
        %1145 = vrot.lane.b32.xlu0 %v1140, 16
        %v1146 = vpop.permute.xlu0 %1145
        %vm1149 = vcmask 261248
        %1150 = vst.msk [vmem:[#allocation7] sm:$0xff] %vm1149, %v1144
        %vm1151 = vcmask 256128
        %1152 = vst.msk [vmem:[#allocation7 + $0x10] sm:$0x7] %vm1151, %v1146
        %v1153 = vld [vmem:[%s1133 + $0x2] sm:$0xff]
        %v1154 = vld [vmem:[%s1133 + $0xa] sm:$0x7]
        %1157 = vrot.lane.b32.xlu0 %v1153, 32
        %v1158 = vpop.permute.xlu0 %1157
        %1159 = vrot.lane.b32.xlu0 %v1154, 32
        %v1160 = vpop.permute.xlu0 %1159
        %vm1163 = vcmask 392448
        %1164 = vst.msk [vmem:[#allocation7] sm:$0xff] %vm1163, %v1158
        %vm1165 = vcmask 387328
        %1166 = vst.msk [vmem:[#allocation7 + $0x10] sm:$0x7] %vm1165, %v1160
        %s1167 = sadd.s32 %s1127, 1
        %s1168 = smul.u32 %s1167, 16
        %s1169 = scalar_lea.vmem [#allocation4], %s1168
        %v1170 = vld [vmem:[%s1169] sm:$0xff]
        %v1171 = vld [vmem:[%s1169 + $0x8] sm:$0x7]
        %1174 = vrot.lane.b32.xlu0 %v1170, 48
        %v1175 = vpop.permute.xlu0 %1174
        %1176 = vrot.lane.b32.xlu0 %v1171, 48
        %v1177 = vpop.permute.xlu0 %1176
        %vm1180 = vcmask 523648
        %1181 = vst.msk [vmem:[#allocation7] sm:$0xff] %vm1180, %v1175
        %vm1182 = vcmask 518528
        %1183 = vst.msk [vmem:[#allocation7 + $0x10] sm:$0x7] %vm1182, %v1177
        %v1184 = vld [vmem:[%s1169 + $0x1] sm:$0xff]
        %v1185 = vld [vmem:[%s1169 + $0x9] sm:$0x7]
        %1188 = vrot.lane.b32.xlu0 %v1184, 64
        %v1189 = vpop.permute.xlu0 %1188
        %1190 = vrot.lane.b32.xlu0 %v1185, 64
        %v1191 = vpop.permute.xlu0 %1190
        %vm1194 = vcmask 654848
        %1195 = vst.msk [vmem:[#allocation7] sm:$0xff] %vm1194, %v1189
        %vm1196 = vcmask 649728
        %1197 = vst.msk [vmem:[#allocation7 + $0x10] sm:$0x7] %vm1196, %v1191
        %v1198 = vld [vmem:[%s1169 + $0x2] sm:$0xff]
        %v1199 = vld [vmem:[%s1169 + $0xa] sm:$0x7]
        %1202 = vrot.lane.b32.xlu0 %v1198, 80
        %v1203 = vpop.permute.xlu0 %1202
        %1204 = vrot.lane.b32.xlu0 %v1199, 80
        %v1205 = vpop.permute.xlu0 %1204
        %vm1208 = vcmask 786048
        %1209 = vst.msk [vmem:[#allocation7] sm:$0xff] %vm1208, %v1203
        %vm1210 = vcmask 780928
        %1211 = vst.msk [vmem:[#allocation7 + $0x10] sm:$0x7] %vm1210, %v1205
        %s1212 = sadd.s32 %s1127, 2
        %s1213 = smul.u32 %s1212, 16
        %s1214 = scalar_lea.vmem [#allocation4], %s1213
        %v1215 = vld [vmem:[%s1214] sm:$0xff]
        %v1216 = vld [vmem:[%s1214 + $0x8] sm:$0x7]
        %1219 = vrot.lane.b32.xlu0 %v1215, 96
        %v1220 = vpop.permute.xlu0 %1219
        %1221 = vrot.lane.b32.xlu0 %v1216, 96
        %v1222 = vpop.permute.xlu0 %1221
        %vm1225 = vcmask 917248
        %1226 = vst.msk [vmem:[#allocation7] sm:$0xff] %vm1225, %v1220
        %vm1227 = vcmask 912128
        %1228 = vst.msk [vmem:[#allocation7 + $0x10] sm:$0x7] %vm1227, %v1222
        %v1229 = vld [vmem:[%s1214 + $0x1] sm:$0xff]
        %v1230 = vld [vmem:[%s1214 + $0x9] sm:$0x7]
        %1233 = vrot.lane.b32.xlu0 %v1229, 112
        %v1234 = vpop.permute.xlu0 %1233
        %1235 = vrot.lane.b32.xlu0 %v1230, 112
        %v1236 = vpop.permute.xlu0 %1235
        %vm1239 = vcmask 1048448
        %1240 = vst.msk [vmem:[#allocation7] sm:$0xff] %vm1239, %v1234
        %vm1241 = vcmask 1043328
        %1242 = vst.msk [vmem:[#allocation7 + $0x10] sm:$0x7] %vm1241, %v1236
        %v1243 = vld [vmem:[%s1214 + $0x2] sm:$0xff]
        %v1244 = vld [vmem:[%s1214 + $0xa] sm:$0x7]
        %1245 = vst.msk [vmem:[#allocation7 + $0x8] sm:$0xff] %vm876, %v1243
        %1246 = vst.msk [vmem:[#allocation7 + $0x18] sm:$0x7] %vm1137, %v1244
        %v1247 = vld [vmem:[#allocation7] sm:$0xff]
        %v1248 = vld [vmem:[#allocation7 + $0x8] sm:$0xff]
        %v1249 = vld [vmem:[#allocation7 + $0x10] sm:$0x7]
        %v1250 = vld [vmem:[#allocation7 + $0x18] sm:$0x7]
        %v1252 = vlaneseq
        %v1253 = vshrl.u32 %v1252, 7
        %v1254 = vsub.s32 0, %v1253
        %v1255 = vrot.slane %v1125, %v1254
        %v1258 = vsel %vm876, %v1248, 0
        %v1261 = vsel %vm876, %v1250, 0
        %1263 = vmatprep.subr.mxu0 0.0
        %1264 = vmatpush1.msra.mxu0 %v1107
        %1265 = vmatprep.subr.mxu0 0.0
        %1266 = vmatpush1.msra.mxu0 %v1108
        %1267 = vmatprep.subr.mxu0 0.0
        %1268 = vmatpush1.msra.mxu0 %v1109
        %1269 = vmatprep.subr.mxu0 0.0
        %1270 = vmatpush1.msra.mxu0 %v1110
        %1271 = vmatprep.subr.mxu0 0.0
        %1272 = vmatpush1.msra.mxu0 %v1111
        %1273 = vmatprep.subr.mxu0 0.0
        %1274 = vmatpush1.msra.mxu0 %v1112
        %1275 = vmatprep.subr.mxu0 0.0
        %1276 = vmatpush1.msra.mxu0 %v1113
        %1277 = vmatprep.subr.mxu0 0.0
        %1278 = vmatpush1.msra.mxu0 %v1114
        %1279 = vmatprep.subr.mxu0 0.0
        %1280 = vmatpush1.msra.mxu0 %v1115
        %1281 = vmatprep.subr.mxu0 0.0
        %1282 = vmatpush1.msra.mxu0 %v1116
        %1283 = vmatprep.subr.mxu0 0.0
        %1284 = vmatpush1.msra.mxu0 %v1117
        %1285 = vmatprep.subr.mxu0 0.0
        %1286 = vmatpush1.msra.mxu0 %v1118
        %1287 = vmatprep.subr.mxu0 0.0
        %1288 = vmatpush1.msra.mxu0 %v1119
        %1289 = vmatprep.subr.mxu0 0.0
        %1290 = vmatpush1.msra.mxu0 %v1120
        %1291 = vmatprep.subr.mxu0 0.0
        %1292 = vmatpush1.msra.mxu0 %v1121
        %1293 = vmatprep.subr.mxu0 0.0
        %1294 = vmatpush1.msra.mxu0 %v1122
        %1295 = vmatprep.subr.mxu0 0.0
        %1296 = vmatpush1.msra.mxu0 %v1123
        %1297 = vmatprep.subr.mxu0 0.0
        %1298 = vmatpush1.msra.mxu0 %v1124
        %1299 = vmatprep.subr.mxu0 0.0
        %1300 = vmatpush1.msra.mxu0 0.0
        %1301 = vmatprep.subr.mxu0 0.0
        %1302 = vmatpush1.msra.mxu0 0.0
        %1303 = vmatprep.subr.mxu0 0.0
        %1304 = vmatpush1.msra.mxu0 0.0
        %1305 = vmatprep.subr.mxu0 0.0
        %1306 = vmatpush1.msra.mxu0 0.0
        %1307 = vmatprep.subr.mxu0 0.0
        %1308 = vmatpush1.msra.mxu0 0.0
        %1309 = vmatprep.subr.mxu0 0.0
        %1310 = vmatpush1.msra.mxu0 0.0
        %1311 = vmatprep.subr.mxu0 0.0
        %1312 = vmatpush1.msra.mxu0 0.0
        %1313 = vmatprep.subr.mxu0 0.0
        %1314 = vmatpush1.msra.mxu0 0.0
        %1315 = vmatprep.subr.mxu0 0.0
        %1316 = vmatpush1.msra.mxu0 0.0
        %1317 = vmatprep.subr.mxu0 0.0
        %1318 = vmatpush1.msra.mxu0 0.0
        %1319 = vmatprep.subr.mxu0 0.0
        %1320 = vmatpush1.msra.mxu0 0.0
        %1321 = vmatprep.subr.mxu0 0.0
        %1322 = vmatpush1.msra.mxu0 0.0
        %1323 = vmatprep.subr.mxu0 0.0
        %1324 = vmatpush1.msra.mxu0 0.0
        %1325 = vmatprep.subr.mxu0 0.0
        %1326 = vmatpush1.msra.mxu0 0.0
        %1327 = vmatprep.mubr.f32.mxu0 %v1258
        %1328 = vmatmul.mubr.f32.gmra.mrb[0].mxu0 %v1247
        %v1329 = vpop.f32.mrb[0].mxu0
        %v1330 = vadd.f32 %v1255, %v1329
        %v1331 = vpop.f32.mrb[0].mxu0
        %1332 = vmatprep.mubr.f32.mxu0 %v1261
        %1333 = vmatmul.mubr.f32.gmra.mrb[0].mxu0 %v1249
        %v1334 = vpop.f32.mrb[0].mxu0
        %v1335 = vadd.f32 %v1255, %v1334
        %v1336 = vpop.f32.mrb[0].mxu0
        %1337 = vdwg.mxu0
        %v1338 = vmax.f32 %v1330, 0.0
        %v1339 = vmax.f32 %v1335, 0.0
        %s1340 = scalar_lea.vmem [#allocation5], %s1132
        %1341 = vst [vmem:[%s1340] sm:$0xff] %v1338
        %1342 = vst [vmem:[%s1340 + $0x8] sm:$0x7] %v1339
      $region83: #{forward.2} parent=63 // loop_footer
        %s1131 = sadd.s32 1, %s1127
      $region84: #{forward.2} parent=63 // loop_footer_branch
        %1126 = sbr.rel target = $region80
      $region85: #{forward.2} parent=63 // loop_exit
        _
      %v1343 = vld [vmem:[%s9] sm:$0x1f]
      %v1344 = vld [vmem:[%s10] sm:$0x1f]
      loop: start=0, step=1, limit=5
      $region86: #{forward.2} parent=63 // loop_pre_header
        _
      $region87: #{forward.2} parent=63 // loop_header
        %s1346 = sphi 0, %s1350
        %p1347 = scmp.ge.s32.totalorder %s1346, 5
      $region88: #{forward.2} parent=63 // loop_header_branch
        %1349 = sbr.rel (%p1347) target = $region92
      $region89: #{forward.2} parent=63 // loop_body
        %s1351 = smul.u32 %s1346, 2
        %s1352 = smul.u32 %s1351, 16
        %s1353 = scalar_lea.vmem [#allocation5], %s1352
        %v1354 = vld [vmem:[%s1353] sm:$0xff]
        %v1355 = vld [vmem:[%s1353 + $0x8] sm:$0x7]
        %s1356 = sadd.s32 %s1351, 1
        %s1357 = smul.u32 %s1356, 16
        %s1358 = scalar_lea.vmem [#allocation5], %s1357
        %v1359 = vld [vmem:[%s1358] sm:$0xff]
        %v1360 = vld [vmem:[%s1358 + $0x8] sm:$0x7]
        %v1361 = vmax.f32 %v1354, %v1359
        %v1362 = vmax.f32 %v1355, %v1360
        %vm1363 = vcmask 89088
        %v1365 = vsel %vm1363, %v1343, 0
        %vm1367 = vcmask 1042432
        %v1369 = vsel %vm1367, %v1362, 0
        %1371 = vmatprep.subr.mxu0 0.0
        %1372 = vmatpush1.msra.mxu0 %v1361
        %1373 = vmatprep.subr.mxu0 0.0
        %1374 = vmatpush1.msra.mxu0 %v1369
        %1375 = vmatprep.subr.mxu0 0.0
        %1376 = vmatpush1.msra.mxu0 0.0
        %1377 = vmatprep.subr.mxu0 0.0
        %1378 = vmatpush1.msra.mxu0 0.0
        %1379 = vmatprep.subr.mxu0 0.0
        %1380 = vmatpush1.msra.mxu0 0.0
        %1381 = vmatprep.subr.mxu0 0.0
        %1382 = vmatpush1.msra.mxu0 0.0
        %1383 = vmatprep.subr.mxu0 0.0
        %1384 = vmatpush1.msra.mxu0 0.0
        %1385 = vmatprep.subr.mxu0 0.0
        %1386 = vmatpush1.msra.mxu0 0.0
        %1387 = vmatprep.subr.mxu0 0.0
        %1388 = vmatpush1.msra.mxu0 0.0
        %1389 = vmatprep.subr.mxu0 0.0
        %1390 = vmatpush1.msra.mxu0 0.0
        %1391 = vmatprep.subr.mxu0 0.0
        %1392 = vmatpush1.msra.mxu0 0.0
        %1393 = vmatprep.subr.mxu0 0.0
        %1394 = vmatpush1.msra.mxu0 0.0
        %1395 = vmatprep.subr.mxu0 0.0
        %1396 = vmatpush1.msra.mxu0 0.0
        %1397 = vmatprep.subr.mxu0 0.0
        %1398 = vmatpush1.msra.mxu0 0.0
        %1399 = vmatprep.subr.mxu0 0.0
        %1400 = vmatpush1.msra.mxu0 0.0
        %1401 = vmatprep.subr.mxu0 0.0
        %1402 = vmatpush1.msra.mxu0 0.0
        %1403 = vmatprep.subr.mxu0 0.0
        %1404 = vmatpush1.msra.mxu0 0.0
        %1405 = vmatprep.subr.mxu0 0.0
        %1406 = vmatpush1.msra.mxu0 0.0
        %1407 = vmatprep.subr.mxu0 0.0
        %1408 = vmatpush1.msra.mxu0 0.0
        %1409 = vmatprep.subr.mxu0 0.0
        %1410 = vmatpush1.msra.mxu0 0.0
        %1411 = vmatprep.subr.mxu0 0.0
        %1412 = vmatpush1.msra.mxu0 0.0
        %1413 = vmatprep.subr.mxu0 0.0
        %1414 = vmatpush1.msra.mxu0 0.0
        %1415 = vmatprep.subr.mxu0 0.0
        %1416 = vmatpush1.msra.mxu0 0.0
        %1417 = vmatprep.subr.mxu0 0.0
        %1418 = vmatpush1.msra.mxu0 0.0
        %1419 = vmatprep.subr.mxu0 0.0
        %1420 = vmatpush1.msra.mxu0 0.0
        %1421 = vmatprep.subr.mxu0 0.0
        %1422 = vmatpush1.msra.mxu0 0.0
        %1423 = vmatprep.subr.mxu0 0.0
        %1424 = vmatpush1.msra.mxu0 0.0
        %1425 = vmatprep.subr.mxu0 0.0
        %1426 = vmatpush1.msra.mxu0 0.0
        %1427 = vmatprep.subr.mxu0 0.0
        %1428 = vmatpush1.msra.mxu0 0.0
        %1429 = vmatprep.subr.mxu0 0.0
        %1430 = vmatpush1.msra.mxu0 0.0
        %1431 = vmatprep.subr.mxu0 0.0
        %1432 = vmatpush1.msra.mxu0 0.0
        %1433 = vmatprep.subr.mxu0 0.0
        %1434 = vmatpush1.msra.mxu0 0.0
        %1435 = vmatprep.mubr.f32.mxu0 0.0
        %1436 = vmatmul.mubr.f32.gmra.mrb[0].mxu0 %v1365
        %v1437 = vpop.f32.mrb[0].mxu0
        %v1438 = vadd.f32 0.0, %v1437
        %v1439 = vpop.f32.mrb[0].mxu0
        %1440 = vdwg.mxu0
        %v1442 = vsel %vm1363, %v1344, 0
        %1444 = vmatprep.subr.mxu0 0.0
        %1445 = vmatpush1.msra.mxu0 %v1361
        %1446 = vmatprep.subr.mxu0 0.0
        %1447 = vmatpush1.msra.mxu0 %v1369
        %1448 = vmatprep.subr.mxu0 0.0
        %1449 = vmatpush1.msra.mxu0 0.0
        %1450 = vmatprep.subr.mxu0 0.0
        %1451 = vmatpush1.msra.mxu0 0.0
        %1452 = vmatprep.subr.mxu0 0.0
        %1453 = vmatpush1.msra.mxu0 0.0
        %1454 = vmatprep.subr.mxu0 0.0
        %1455 = vmatpush1.msra.mxu0 0.0
        %1456 = vmatprep.subr.mxu0 0.0
        %1457 = vmatpush1.msra.mxu0 0.0
        %1458 = vmatprep.subr.mxu0 0.0
        %1459 = vmatpush1.msra.mxu0 0.0
        %1460 = vmatprep.subr.mxu0 0.0
        %1461 = vmatpush1.msra.mxu0 0.0
        %1462 = vmatprep.subr.mxu0 0.0
        %1463 = vmatpush1.msra.mxu0 0.0
        %1464 = vmatprep.subr.mxu0 0.0
        %1465 = vmatpush1.msra.mxu0 0.0
        %1466 = vmatprep.subr.mxu0 0.0
        %1467 = vmatpush1.msra.mxu0 0.0
        %1468 = vmatprep.subr.mxu0 0.0
        %1469 = vmatpush1.msra.mxu0 0.0
        %1470 = vmatprep.subr.mxu0 0.0
        %1471 = vmatpush1.msra.mxu0 0.0
        %1472 = vmatprep.subr.mxu0 0.0
        %1473 = vmatpush1.msra.mxu0 0.0
        %1474 = vmatprep.subr.mxu0 0.0
        %1475 = vmatpush1.msra.mxu0 0.0
        %1476 = vmatprep.subr.mxu0 0.0
        %1477 = vmatpush1.msra.mxu0 0.0
        %1478 = vmatprep.subr.mxu0 0.0
        %1479 = vmatpush1.msra.mxu0 0.0
        %1480 = vmatprep.subr.mxu0 0.0
        %1481 = vmatpush1.msra.mxu0 0.0
        %1482 = vmatprep.subr.mxu0 0.0
        %1483 = vmatpush1.msra.mxu0 0.0
        %1484 = vmatprep.subr.mxu0 0.0
        %1485 = vmatpush1.msra.mxu0 0.0
        %1486 = vmatprep.subr.mxu0 0.0
        %1487 = vmatpush1.msra.mxu0 0.0
        %1488 = vmatprep.subr.mxu0 0.0
        %1489 = vmatpush1.msra.mxu0 0.0
        %1490 = vmatprep.subr.mxu0 0.0
        %1491 = vmatpush1.msra.mxu0 0.0
        %1492 = vmatprep.subr.mxu0 0.0
        %1493 = vmatpush1.msra.mxu0 0.0
        %1494 = vmatprep.subr.mxu0 0.0
        %1495 = vmatpush1.msra.mxu0 0.0
        %1496 = vmatprep.subr.mxu0 0.0
        %1497 = vmatpush1.msra.mxu0 0.0
        %1498 = vmatprep.subr.mxu0 0.0
        %1499 = vmatpush1.msra.mxu0 0.0
        %1500 = vmatprep.subr.mxu0 0.0
        %1501 = vmatpush1.msra.mxu0 0.0
        %1502 = vmatprep.subr.mxu0 0.0
        %1503 = vmatpush1.msra.mxu0 0.0
        %1504 = vmatprep.subr.mxu0 0.0
        %1505 = vmatpush1.msra.mxu0 0.0
        %1506 = vmatprep.subr.mxu0 0.0
        %1507 = vmatpush1.msra.mxu0 0.0
        %1508 = vmatprep.mubr.f32.mxu0 0.0
        %1509 = vmatmul.mubr.f32.gmra.mrb[0].mxu0 %v1442
        %v1510 = vpop.f32.mrb[0].mxu0
        %v1511 = vadd.f32 0.0, %v1510
        %v1512 = vpop.f32.mrb[0].mxu0
        %1513 = vdwg.mxu0
        %v1514 = vmax.f32 %v1438, %v1511
        %s1515 = smul.u32 %s1346, 8
        %s1516 = scalar_lea.vmem %s386, %s1515
        %1517 = vst [vmem:[%s1516] sm:$0x1f] %v1514
      $region90: #{forward.2} parent=63 // loop_footer
        %s1350 = sadd.s32 1, %s1346
      $region91: #{forward.2} parent=63 // loop_footer_branch
        %1345 = sbr.rel target = $region87
      $region92: #{forward.2} parent=63 // loop_exit
        _
      %p1518 = scmp.lt.s32.totalorder %s22, 1
      %s1519 = scalar_select %p1518, %s22, 1
      %s1520 = smul.addr %s1519, 5
      %s1521 = smul.addr %s1520, 8
      %s1522 = scalar_lea.vmem %s11, %s1521
      // Predicated region
      $region93: #{forward.2} parent=63 // pred_check
        %p1523 = pneg %p276
      $region94: #{forward.2} parent=63 // pred_check_branch
        %1525 = sbr.rel (%p1523) target = $region96
      $region95: #{forward.2} parent=63 // pred_region
        _
      $region96: #{forward.2} parent=63 // pred_fallthru
        _
    $region64: #{forward.2} parent=5 // pred_fallthru
      _
    %p1526 = scmp.le.s32.totalorder 2, %s17
    // Predicated region
    $region97: #{forward.2} parent=5 // pred_check
      %p1527 = pneg %p1526
    $region98: #{forward.2} parent=5 // pred_check_branch
      %1529 = sbr.rel (%p1527) target = $region100
    $region99: #{forward.2} parent=5 // pred_region
      %s1530 = ssub.s32 %s17, 2
      // Predicated region
      $region101: #{forward.2} parent=99 // pred_check
        %p1531 = pneg %p282
      $region102: #{forward.2} parent=99 // pred_check_branch
        %1533 = sbr.rel (%p1531) target = $region104
      $region103: #{forward.2} parent=99 // pred_region
        %p1534 = scmp.lt.s32.totalorder %s23, 1
        %s1535 = scalar_select %p1534, %s23, 1
        %s1536 = smul.addr %s1535, 5
        %s1537 = smul.addr %s1536, 8
        %s1538 = scalar_lea.vmem %s11, %s1537
      $region104: #{forward.2} parent=99 // pred_fallthru
        _
    $region100: #{forward.2} parent=5 // pred_fallthru
      _
  $region6: #{forward.2} parent=0 // loop_footer
    %s21 = sadd.s32 1, %s17
  $region7: #{forward.2} parent=0 // loop_footer_branch
    %16 = sbr.rel target = $region3
  $region8: #{forward.2} parent=0 // loop_exit
    _

</llo_original>
